<compile_context>
chip_gen: v7x
topology: tpu7x:2x2x1
jax: 0.10.0
libtpu: 0.0.40
codegen_flags: <defaults>
</compile_context>

<pallas_src>
import jax
import jax.numpy as jnp
from jax.experimental import pallas as pl
from jax.experimental.pallas import tpu as pltpu


# --------------------------------------------------------------------------- #
# Kernel: one (batch, row-block) tile of Conv3x3/s2/p1 + folded-BN bias + LeakyReLU(0.1).
# All 9 taps are accumulated in-kernel from space-to-depth activation views.
# --------------------------------------------------------------------------- #
def _conv3x3s2_bn_lrelu_kernel(xe_ref, xo_ref, w_ref, b_ref, o_ref):
    # xe_ref: (1, th+1, Wo+1, 2C) bf16  even padded rows (padded row 2*(oh0+r))
    # xo_ref: (1, th,   Wo+1, 2C) bf16  odd  padded rows (padded row 2*(oh0+r)+1)
    # w_ref : (6, 2C, Cout_p)     bf16  [a0, b0, a1, b1, a2, b2] where
    #           a_dr = [W[dr,0]; W[dr,1]]  (padded cols 2*ow, 2*ow+1)
    #           b_dr = [W[dr,2]; 0      ]  (padded col  2*ow+2)
    # b_ref : (1, Cout_p)         f32   folded conv-bias + BN shift
    # o_ref : (1, th*Wo, Cout_p)
    _, th1, wo1, c2 = xe_ref.shape
    th, wo = th1 - 1, wo1 - 1
    c_out = o_ref.shape[-1]

    xe = xe_ref[...].reshape(th + 1, wo1, c2)
    xo = xo_ref[...].reshape(th, wo1, c2)
    rows = (xe[0:th], xo, xe[1:th + 1])                 # tap rows di = 0, 1, 2

    acc = jnp.zeros((th * wo, c_out), jnp.float32)
    for di in range(3):
        r = rows[di]
        a = r[:, 0:wo, :].reshape(th * wo, c2)          # taps (di,0) and (di,1)
        b = r[:, 1:wo + 1, :].reshape(th * wo, c2)      # tap  (di,2) (+ zero-weighted col)
        acc = acc + jnp.dot(a, w_ref[2 * di], preferred_element_type=jnp.float32)
        acc = acc + jnp.dot(b, w_ref[2 * di + 1], preferred_element_type=jnp.float32)

    y = acc + b_ref[...]
    y = jnp.maximum(y, 0.1 * y)                         # LeakyReLU(0.1)
    o_ref[...] = y.reshape(1, th * wo, c_out).astype(o_ref.dtype)


# --------------------------------------------------------------------------- #
# VMEM budgeting / tile selection
# --------------------------------------------------------------------------- #
def _tpu_vmem_capacity_bytes():
    try:
        return int(pltpu.get_tpu_info().vmem_capacity_bytes)
    except Exception:
        return 64 * 1024 * 1024  # assume the smallest (v7x per-TC) VMEM


def _round_up(x, m):
    return ((x + m - 1) // m) * m


def _block_footprint_bytes(th, wo, c2, c_out_p, out_bytes):
    """Rough tiling-padded VMEM bytes for one grid step (double-buffered)."""
    in_rows = _round_up(wo + 1, 16)                     # bf16 sublane packing
    in_b = (2 * th + 1) * in_rows * _round_up(c2, 128) * 2
    out_b = _round_up(th * wo, 8) * _round_up(c_out_p, 128) * out_bytes
    w_b = 6 * _round_up(c2, 16) * _round_up(c_out_p, 128) * 2
    return 2 * (in_b + out_b + w_b)


def _pick_th(n, ho, wo, c2, c_out_p, out_bytes):
    """Largest divisor of Ho whose block fits the per-generation VMEM budget."""
    budget = _tpu_vmem_capacity_bytes() // 3
    th = 1
    for cand in range(1, ho + 1):
        if ho % cand == 0 and _block_footprint_bytes(cand, wo, c2, c_out_p, out_bytes) <= budget:
            th = cand
    # Keep the number of grid steps even (>= 2) when free, so v7x's two TensorCores
    # sharing the "parallel" axis stay balanced.
    if (n * (ho // th)) % 2 == 1 and th % 2 == 0:
        th //= 2
    return th


# --------------------------------------------------------------------------- #
# One fused layer
# --------------------------------------------------------------------------- #
def conv_bn_lrelu(h, wcat, bias, *, out_dtype):
    """Conv2d(3x3, s=2, p=1) + BatchNorm2d(eval, folded) + LeakyReLU(0.1).

    h    : (N, H, W, C) NHWC bf16 activation; C may include lane-padding channels from the
           previous layer (their weight rows are zero).
    wcat : (6, 2C, Cout_p) bf16 repacked / BN-folded weights (see prepare_params).
    bias : (1, Cout_p) f32 folded conv-bias + BN shift.
    Returns (N, Ho, Wo, Cout_p) with Cout_p = Cout rounded up to a multiple of 128.
    """
    n, hh, ww, c = h.shape
    c2, c_out_p = wcat.shape[1], wcat.shape[2]
    assert c2 == 2 * c, (c2, c)

    ho, wo = -(-hh // 2), -(-ww // 2)                   # ceil(H/2), ceil(W/2)
    hp, wp = 2 * ho + 2, 2 * wo + 2

    # pad=1 conv padding (plus <=1 extra bottom/right row/col that only meets zero weights),
    # free stride-2 space-to-depth along W, and an even/odd split of padded rows.  Total XLA
    # intermediate is ~1x the activation; this replaces the old 9x-expanded im2col tensor.
    xp = jnp.pad(h, ((0, 0), (1, hp - hh - 1), (1, wp - ww - 1), (0, 0)))
    xr = xp.reshape(n, hp, wo + 1, c2)                  # free reshape: (Wp, C) -> (Wp/2, 2C)
    xe = xr[:, 0::2]                                    # (N, Ho+1, Wo+1, 2C)
    xo = xr[:, 1::2]                                    # (N, Ho+1, Wo+1, 2C)

    out_bytes = jnp.dtype(out_dtype).itemsize
    th = _pick_th(n, ho, wo, c2, c_out_p, out_bytes)
    nb = ho // th
    if nb == 1:
        xe_b, xo_b = xe, xo[:, :ho]
    else:
        # one duplicated boundary row per th rows (~1/th extra bytes)
        xe_b = jnp.stack([xe[:, i * th:i * th + th + 1] for i in range(nb)], axis=1
                         ).reshape(n * nb, th + 1, wo + 1, c2)
        xo_b = xo[:, :ho].reshape(n * nb, th, wo + 1, c2)
    g = n * nb

    out = pl.pallas_call(
        _conv3x3s2_bn_lrelu_kernel,
        out_shape=jax.ShapeDtypeStruct((g, th * wo, c_out_p), out_dtype),
        grid=(g,),
        in_specs=[
            # TODO(synk): if conv1's DMA latency is exposed (tiny per-tile compute), add
            # pipeline_mode=pl.Buffered(3) on these two specs and sweep.
            pl.BlockSpec((1, th + 1, wo + 1, c2), lambda i: (i, 0, 0, 0)),
            pl.BlockSpec((1, th, wo + 1, c2), lambda i: (i, 0, 0, 0)),
            pl.BlockSpec((6, c2, c_out_p), lambda i: (0, 0, 0)),   # resident weights
            pl.BlockSpec((1, c_out_p), lambda i: (0, 0)),
        ],
        out_specs=pl.BlockSpec((1, th * wo, c_out_p), lambda i: (i, 0, 0)),
        compiler_params=pltpu.CompilerParams(
            dimension_semantics=("parallel",),
            vmem_limit_bytes=int(_tpu_vmem_capacity_bytes() * 3 // 4)),
    )(xe_b, xo_b, wcat, bias)

    # (G, th*Wo, Cout_p) -> (N, Ho, Wo, Cout_p): pure reshape, no data movement.
    return out.reshape(n, ho, wo, c_out_p)


# --------------------------------------------------------------------------- #
# One-time parameter preparation (BN fold + tap repack + padding + bf16 cast)
# --------------------------------------------------------------------------- #
def _prepare_layer(w, b_conv, gamma, beta, mean, var, c_in_actual, eps=1e-5):
    kh, kw, c_in_w, c_out = w.shape
    assert (kh, kw) == (3, 3)
    scale = (gamma / jnp.sqrt(var + eps)).astype(jnp.float32)
    bias = (beta + (b_conv - mean) * scale).astype(jnp.float32)
    w_f = w.astype(jnp.float32) * scale[None, None, None, :]

    # zero rows for lane-padding channels carried from the previous layer
    if c_in_actual > c_in_w:
        w_f = jnp.pad(w_f, ((0, 0), (0, 0), (0, c_in_actual - c_in_w), (0, 0)))
    c = c_in_actual

    # lane-dense output channels (next multiple of 128, never more); padded bias = 0
    c_out_p = ((c_out + 127) // 128) * 128
    if c_out_p > c_out:
        w_f = jnp.pad(w_f, ((0, 0), (0, 0), (0, 0), (0, c_out_p - c_out)))
        bias = jnp.pad(bias, (0, c_out_p - c_out))

    # repack taps for the space-to-depth kernel: per tap-row dr,
    #   a_dr = [W[dr,0]; W[dr,1]] , b_dr = [W[dr,2]; 0]
    wa = jnp.concatenate([w_f[:, 0], w_f[:, 1]], axis=1)                     # (3, 2C, Cout_p)
    wb = jnp.concatenate([w_f[:, 2], jnp.zeros_like(w_f[:, 2])], axis=1)     # (3, 2C, Cout_p)
    wcat = jnp.stack([wa, wb], axis=1).reshape(6, 2 * c, c_out_p).astype(jnp.bfloat16)
    return wcat, bias.reshape(1, c_out_p)


def prepare_params(params):
    layers = []
    c_in = 3
    for i in (1, 2, 3):
        w, b = params[f"conv{i}"]
        g, be, m, v = params[f"bn{i}"]
        wcat, bias = _prepare_layer(w, b, g, be, m, v, c_in)
        layers.append((wcat, bias))
        c_in = wcat.shape[-1]          # next layer consumes the lane-padded channel count
    return tuple(layers)


def init_params(key):
    """Deterministic init matching the __init__ shapes of SharedConvBase."""
    def conv_init(k, c_in, c_out, ksize=3):
        fan_in = c_in * ksize * ksize
        w = jax.random.normal(k, (ksize, ksize, c_in, c_out), jnp.float32)
        w = w * (1.0 / jnp.sqrt(fan_in))
        b = jnp.zeros((c_out,), jnp.float32)
        return w, b

    def bn_init(c):
        # PyTorch BatchNorm2d defaults: weight=1, bias=0, running_mean=0, running_var=1
        return (jnp.ones((c,), jnp.float32), jnp.zeros((c,), jnp.float32),
                jnp.zeros((c,), jnp.float32), jnp.ones((c,), jnp.float32))

    k1, k2, k3 = jax.random.split(key, 3)
    return {
        "conv1": conv_init(k1, 3, 64), "bn1": bn_init(64),
        "conv2": conv_init(k2, 64, 128), "bn2": bn_init(128),
        "conv3": conv_init(k3, 128, 256), "bn3": bn_init(256),
    }


# --------------------------------------------------------------------------- #
# Forward + pure-JAX reference
# --------------------------------------------------------------------------- #
@jax.jit
def shared_conv_base_forward(x_nchw, prepped):
    # NCHW -> NHWC; cast to bf16 *before* the layout transpose (halves its HBM traffic).
    h = jnp.transpose(x_nchw.astype(jnp.bfloat16), (0, 2, 3, 1))
    n_layers = len(prepped)
    for idx, (wcat, bias) in enumerate(prepped):
        last = idx == n_layers - 1
        h = conv_bn_lrelu(h, wcat, bias,
                          out_dtype=jnp.float32 if last else jnp.bfloat16)
    # conv3's 256 output channels are already a multiple of 128 -> no lane padding to strip.
    return jnp.transpose(h, (0, 3, 1, 2))


def _reference_forward(x_nchw, params):
    """Pure-JAX f32 reference for a loose numerical check."""
    h = jnp.transpose(x_nchw, (0, 2, 3, 1)).astype(jnp.float32)
    for i in (1, 2, 3):
        w, b = params[f"conv{i}"]
        g, be, m, v = params[f"bn{i}"]
        h = jax.lax.conv_general_dilated(
            h, w.astype(jnp.float32), window_strides=(2, 2),
            padding=((1, 1), (1, 1)),
            dimension_numbers=("NHWC", "HWIO", "NHWC"))
        h = h + b
        h = (h - m) * (g * jax.lax.rsqrt(v + 1e-5)) + be
        h = jnp.where(h >= 0, h, 0.1 * h)
    return jnp.transpose(h, (0, 3, 1, 2))


if __name__ == "__main__":
    key = jax.random.PRNGKey(0)
    k_x, k_p = jax.random.split(key)
    x = jax.random.normal(k_x, (2, 3, 16, 16), dtype=jnp.float32)   # NCHW, like torch
    params = init_params(k_p)
    prepped = prepare_params(params)                                # one-time weight prep

    out = shared_conv_base_forward(x, prepped)
    out = jax.block_until_ready(out)

    assert out.shape == (2, 256, 2, 2), out.shape                   # 16 -> 8 -> 4 -> 2
    assert bool(jnp.all(jnp.isfinite(out)))

    ref = _reference_forward(x, params)
    assert bool(jnp.allclose(out, ref, atol=1e-1, rtol=1e-1)), \
        float(jnp.max(jnp.abs(out - ref)))
    print("KERNEL_OK")
</pallas_src>

<mosaic_0001>
module attributes {stable_mosaic.version = 11 : i64} {
  func.func @_conv3x3s2_bn_lrelu_kernel(%arg0: i32, %arg1: memref<1x9x9x6xbf16, #tpu.memory_space<vmem>>, %arg2: memref<1x8x9x6xbf16, #tpu.memory_space<vmem>>, %arg3: memref<6x6x128xbf16, #tpu.memory_space<vmem>>, %arg4: memref<1x128xf32, #tpu.memory_space<vmem>>, %arg5: memref<1x64x128xbf16, #tpu.memory_space<vmem>>) attributes {dimension_semantics = [#tpu.dimension_semantics<parallel>], iteration_bounds = array<i64: 2>, scalar_prefetch = 0 : i64, scratch_operands = 0 : i64, tpu.core_type = #tpu.core_type<tc>, window_params = [{transform_indices = @transform_0, window_bounds = array<i64: 1, 9, 9, 6>}, {transform_indices = @transform_1, window_bounds = array<i64: 1, 8, 9, 6>}, {pipeline_mode = #tpu.pipeline_mode<synchronous>, transform_indices = @transform_2, window_bounds = array<i64: 6, 6, 128>}, {pipeline_mode = #tpu.pipeline_mode<synchronous>, transform_indices = @transform_3, window_bounds = array<i64: 1, 128>}, {transform_indices = @transform_4, window_bounds = array<i64: 1, 64, 128>}]} {
    %c0 = arith.constant 0 : index
    %c0_0 = arith.constant 0 : index
    %c0_1 = arith.constant 0 : index
    %c0_2 = arith.constant 0 : index
    %0 = vector.load %arg1[%c0, %c0_0, %c0_1, %c0_2] : memref<1x9x9x6xbf16, #tpu.memory_space<vmem>>, vector<1x9x9x6xbf16>
    %1 = vector.shape_cast %0 : vector<1x9x9x6xbf16> to vector<9x9x6xbf16>
    %c0_3 = arith.constant 0 : index
    %c0_4 = arith.constant 0 : index
    %c0_5 = arith.constant 0 : index
    %c0_6 = arith.constant 0 : index
    %2 = vector.load %arg2[%c0_3, %c0_4, %c0_5, %c0_6] : memref<1x8x9x6xbf16, #tpu.memory_space<vmem>>, vector<1x8x9x6xbf16>
    %3 = vector.shape_cast %2 : vector<1x8x9x6xbf16> to vector<8x9x6xbf16>
    %4 = vector.extract_strided_slice %1 {offsets = [0, 0, 0], sizes = [8, 9, 6], strides = [1, 1, 1]} : vector<9x9x6xbf16> to vector<8x9x6xbf16>
    %5 = vector.extract_strided_slice %1 {offsets = [1, 0, 0], sizes = [8, 9, 6], strides = [1, 1, 1]} : vector<9x9x6xbf16> to vector<8x9x6xbf16>
    %cst = arith.constant 0.000000e+00 : f32
    %6 = vector.broadcast %cst : f32 to vector<64x128xf32>
    %7 = vector.extract_strided_slice %4 {offsets = [0, 0, 0], sizes = [8, 8, 6], strides = [1, 1, 1]} : vector<8x9x6xbf16> to vector<8x8x6xbf16>
    %8 = vector.shape_cast %7 : vector<8x8x6xbf16> to vector<64x6xbf16>
    %9 = vector.extract_strided_slice %4 {offsets = [0, 1, 0], sizes = [8, 8, 6], strides = [1, 1, 1]} : vector<8x9x6xbf16> to vector<8x8x6xbf16>
    %10 = vector.shape_cast %9 : vector<8x8x6xbf16> to vector<64x6xbf16>
    %c0_7 = arith.constant 0 : index
    %c0_8 = arith.constant 0 : index
    %c0_9 = arith.constant 0 : index
    %11 = vector.load %arg3[%c0_7, %c0_8, %c0_9] : memref<6x6x128xbf16, #tpu.memory_space<vmem>>, vector<1x6x128xbf16>
    %12 = vector.shape_cast %11 : vector<1x6x128xbf16> to vector<6x128xbf16>
    %cst_10 = arith.constant dense<0.000000e+00> : vector<64x128xf32>
    %13 = tpu.matmul %8, %12, %cst_10 {dimension_numbers = #tpu.dot_dimension_numbers<[1], [0], [0], [1], [0, 0, 1, 1], [], []>} : vector<64x6xbf16>, vector<6x128xbf16>, vector<64x128xf32> -> vector<64x128xf32>
    %14 = arith.addf %6, %13 : vector<64x128xf32>
    %c1 = arith.constant 1 : index
    %c0_11 = arith.constant 0 : index
    %c0_12 = arith.constant 0 : index
    %15 = vector.load %arg3[%c1, %c0_11, %c0_12] : memref<6x6x128xbf16, #tpu.memory_space<vmem>>, vector<1x6x128xbf16>
    %16 = vector.shape_cast %15 : vector<1x6x128xbf16> to vector<6x128xbf16>
    %cst_13 = arith.constant dense<0.000000e+00> : vector<64x128xf32>
    %17 = tpu.matmul %10, %16, %cst_13 {dimension_numbers = #tpu.dot_dimension_numbers<[1], [0], [0], [1], [0, 0, 1, 1], [], []>} : vector<64x6xbf16>, vector<6x128xbf16>, vector<64x128xf32> -> vector<64x128xf32>
    %18 = arith.addf %14, %17 : vector<64x128xf32>
    %19 = vector.extract_strided_slice %3 {offsets = [0, 0, 0], sizes = [8, 8, 6], strides = [1, 1, 1]} : vector<8x9x6xbf16> to vector<8x8x6xbf16>
    %20 = vector.shape_cast %19 : vector<8x8x6xbf16> to vector<64x6xbf16>
    %21 = vector.extract_strided_slice %3 {offsets = [0, 1, 0], sizes = [8, 8, 6], strides = [1, 1, 1]} : vector<8x9x6xbf16> to vector<8x8x6xbf16>
    %22 = vector.shape_cast %21 : vector<8x8x6xbf16> to vector<64x6xbf16>
    %c2 = arith.constant 2 : index
    %c0_14 = arith.constant 0 : index
    %c0_15 = arith.constant 0 : index
    %23 = vector.load %arg3[%c2, %c0_14, %c0_15] : memref<6x6x128xbf16, #tpu.memory_space<vmem>>, vector<1x6x128xbf16>
    %24 = vector.shape_cast %23 : vector<1x6x128xbf16> to vector<6x128xbf16>
    %cst_16 = arith.constant dense<0.000000e+00> : vector<64x128xf32>
    %25 = tpu.matmul %20, %24, %cst_16 {dimension_numbers = #tpu.dot_dimension_numbers<[1], [0], [0], [1], [0, 0, 1, 1], [], []>} : vector<64x6xbf16>, vector<6x128xbf16>, vector<64x128xf32> -> vector<64x128xf32>
    %26 = arith.addf %18, %25 : vector<64x128xf32>
    %c3 = arith.constant 3 : index
    %c0_17 = arith.constant 0 : index
    %c0_18 = arith.constant 0 : index
    %27 = vector.load %arg3[%c3, %c0_17, %c0_18] : memref<6x6x128xbf16, #tpu.memory_space<vmem>>, vector<1x6x128xbf16>
    %28 = vector.shape_cast %27 : vector<1x6x128xbf16> to vector<6x128xbf16>
    %cst_19 = arith.constant dense<0.000000e+00> : vector<64x128xf32>
    %29 = tpu.matmul %22, %28, %cst_19 {dimension_numbers = #tpu.dot_dimension_numbers<[1], [0], [0], [1], [0, 0, 1, 1], [], []>} : vector<64x6xbf16>, vector<6x128xbf16>, vector<64x128xf32> -> vector<64x128xf32>
    %30 = arith.addf %26, %29 : vector<64x128xf32>
    %31 = vector.extract_strided_slice %5 {offsets = [0, 0, 0], sizes = [8, 8, 6], strides = [1, 1, 1]} : vector<8x9x6xbf16> to vector<8x8x6xbf16>
    %32 = vector.shape_cast %31 : vector<8x8x6xbf16> to vector<64x6xbf16>
    %33 = vector.extract_strided_slice %5 {offsets = [0, 1, 0], sizes = [8, 8, 6], strides = [1, 1, 1]} : vector<8x9x6xbf16> to vector<8x8x6xbf16>
    %34 = vector.shape_cast %33 : vector<8x8x6xbf16> to vector<64x6xbf16>
    %c4 = arith.constant 4 : index
    %c0_20 = arith.constant 0 : index
    %c0_21 = arith.constant 0 : index
    %35 = vector.load %arg3[%c4, %c0_20, %c0_21] : memref<6x6x128xbf16, #tpu.memory_space<vmem>>, vector<1x6x128xbf16>
    %36 = vector.shape_cast %35 : vector<1x6x128xbf16> to vector<6x128xbf16>
    %cst_22 = arith.constant dense<0.000000e+00> : vector<64x128xf32>
    %37 = tpu.matmul %32, %36, %cst_22 {dimension_numbers = #tpu.dot_dimension_numbers<[1], [0], [0], [1], [0, 0, 1, 1], [], []>} : vector<64x6xbf16>, vector<6x128xbf16>, vector<64x128xf32> -> vector<64x128xf32>
    %38 = arith.addf %30, %37 : vector<64x128xf32>
    %c5 = arith.constant 5 : index
    %c0_23 = arith.constant 0 : index
    %c0_24 = arith.constant 0 : index
    %39 = vector.load %arg3[%c5, %c0_23, %c0_24] : memref<6x6x128xbf16, #tpu.memory_space<vmem>>, vector<1x6x128xbf16>
    %40 = vector.shape_cast %39 : vector<1x6x128xbf16> to vector<6x128xbf16>
    %cst_25 = arith.constant dense<0.000000e+00> : vector<64x128xf32>
    %41 = tpu.matmul %34, %40, %cst_25 {dimension_numbers = #tpu.dot_dimension_numbers<[1], [0], [0], [1], [0, 0, 1, 1], [], []>} : vector<64x6xbf16>, vector<6x128xbf16>, vector<64x128xf32> -> vector<64x128xf32>
    %42 = arith.addf %38, %41 : vector<64x128xf32>
    %c0_26 = arith.constant 0 : index
    %c0_27 = arith.constant 0 : index
    %43 = vector.load %arg4[%c0_26, %c0_27] : memref<1x128xf32, #tpu.memory_space<vmem>>, vector<1x128xf32>
    %44 = vector.broadcast %43 : vector<1x128xf32> to vector<64x128xf32>
    %45 = arith.addf %42, %44 : vector<64x128xf32>
    %cst_28 = arith.constant 1.000000e-01 : f32
    %46 = vector.broadcast %cst_28 : f32 to vector<64x128xf32>
    %47 = arith.mulf %46, %45 : vector<64x128xf32>
    %48 = arith.maximumf %45, %47 : vector<64x128xf32>
    %49 = vector.shape_cast %48 : vector<64x128xf32> to vector<1x64x128xf32>
    %50 = arith.truncf %49 : vector<1x64x128xf32> to vector<1x64x128xbf16>
    %c0_29 = arith.constant 0 : index
    %c0_30 = arith.constant 0 : index
    %c0_31 = arith.constant 0 : index
    %51 = vector.load %arg5[%c0_29, %c0_30, %c0_31] : memref<1x64x128xbf16, #tpu.memory_space<vmem>>, vector<1x64x128xbf16>
    tpu.vector_store %arg5[%c0_29, %c0_30, %c0_31], %50 {strides = array<i32>} : memref<1x64x128xbf16, #tpu.memory_space<vmem>>, vector<1x64x128xbf16>,
    return
  }
  func.func @transform_0(%arg0: i32) -> (i32, i32, i32, i32) {
    %c0_i32 = arith.constant 0 : i32
    %c0_i32_0 = arith.constant 0 : i32
    %c0_i32_1 = arith.constant 0 : i32
    %c0_i32_2 = arith.constant 0 : i32
    return %arg0, %c0_i32, %c0_i32_0, %c0_i32_1 : i32, i32, i32, i32
  }
  func.func @transform_1(%arg0: i32) -> (i32, i32, i32, i32) {
    %c0_i32 = arith.constant 0 : i32
    %c0_i32_0 = arith.constant 0 : i32
    %c0_i32_1 = arith.constant 0 : i32
    %c0_i32_2 = arith.constant 0 : i32
    return %arg0, %c0_i32, %c0_i32_0, %c0_i32_1 : i32, i32, i32, i32
  }
  func.func @transform_2(%arg0: i32) -> (i32, i32, i32) {
    %c0_i32 = arith.constant 0 : i32
    %c0_i32_0 = arith.constant 0 : i32
    %c0_i32_1 = arith.constant 0 : i32
    %c0_i32_2 = arith.constant 0 : i32
    return %c0_i32, %c0_i32_0, %c0_i32_1 : i32, i32, i32
  }
  func.func @transform_3(%arg0: i32) -> (i32, i32) {
    %c0_i32 = arith.constant 0 : i32
    %c0_i32_0 = arith.constant 0 : i32
    %c0_i32_1 = arith.constant 0 : i32
    return %c0_i32, %c0_i32_0 : i32, i32
  }
  func.func @transform_4(%arg0: i32) -> (i32, i32, i32) {
    %c0_i32 = arith.constant 0 : i32
    %c0_i32_0 = arith.constant 0 : i32
    %c0_i32_1 = arith.constant 0 : i32
    return %arg0, %c0_i32, %c0_i32_0 : i32, i32, i32
  }
}

module attributes {stable_mosaic.version = 11 : i64} {
  func.func @_conv3x3s2_bn_lrelu_kernel(%arg0: i32, %arg1: memref<1x5x5x256xbf16, #tpu.memory_space<vmem>>, %arg2: memref<1x4x5x256xbf16, #tpu.memory_space<vmem>>, %arg3: memref<6x256x128xbf16, #tpu.memory_space<vmem>>, %arg4: memref<1x128xf32, #tpu.memory_space<vmem>>, %arg5: memref<1x16x128xbf16, #tpu.memory_space<vmem>>) attributes {dimension_semantics = [#tpu.dimension_semantics<parallel>], iteration_bounds = array<i64: 2>, scalar_prefetch = 0 : i64, scratch_operands = 0 : i64, tpu.core_type = #tpu.core_type<tc>, window_params = [{transform_indices = @transform_0, window_bounds = array<i64: 1, 5, 5, 256>}, {transform_indices = @transform_1, window_bounds = array<i64: 1, 4, 5, 256>}, {pipeline_mode = #tpu.pipeline_mode<synchronous>, transform_indices = @transform_2, window_bounds = array<i64: 6, 256, 128>}, {pipeline_mode = #tpu.pipeline_mode<synchronous>, transform_indices = @transform_3, window_bounds = array<i64: 1, 128>}, {transform_indices = @transform_4, window_bounds = array<i64: 1, 16, 128>}]} {
    %c0 = arith.constant 0 : index
    %c0_0 = arith.constant 0 : index
    %c0_1 = arith.constant 0 : index
    %c0_2 = arith.constant 0 : index
    %0 = vector.load %arg1[%c0, %c0_0, %c0_1, %c0_2] : memref<1x5x5x256xbf16, #tpu.memory_space<vmem>>, vector<1x5x5x256xbf16>
    %1 = vector.shape_cast %0 : vector<1x5x5x256xbf16> to vector<5x5x256xbf16>
    %c0_3 = arith.constant 0 : index
    %c0_4 = arith.constant 0 : index
    %c0_5 = arith.constant 0 : index
    %c0_6 = arith.constant 0 : index
    %2 = vector.load %arg2[%c0_3, %c0_4, %c0_5, %c0_6] : memref<1x4x5x256xbf16, #tpu.memory_space<vmem>>, vector<1x4x5x256xbf16>
    %3 = vector.shape_cast %2 : vector<1x4x5x256xbf16> to vector<4x5x256xbf16>
    %4 = vector.extract_strided_slice %1 {offsets = [0, 0, 0], sizes = [4, 5, 256], strides = [1, 1, 1]} : vector<5x5x256xbf16> to vector<4x5x256xbf16>
    %5 = vector.extract_strided_slice %1 {offsets = [1, 0, 0], sizes = [4, 5, 256], strides = [1, 1, 1]} : vector<5x5x256xbf16> to vector<4x5x256xbf16>
    %cst = arith.constant 0.000000e+00 : f32
    %6 = vector.broadcast %cst : f32 to vector<16x128xf32>
    %7 = vector.extract_strided_slice %4 {offsets = [0, 0, 0], sizes = [4, 4, 256], strides = [1, 1, 1]} : vector<4x5x256xbf16> to vector<4x4x256xbf16>
    %8 = vector.shape_cast %7 : vector<4x4x256xbf16> to vector<16x256xbf16>
    %9 = vector.extract_strided_slice %4 {offsets = [0, 1, 0], sizes = [4, 4, 256], strides = [1, 1, 1]} : vector<4x5x256xbf16> to vector<4x4x256xbf16>
    %10 = vector.shape_cast %9 : vector<4x4x256xbf16> to vector<16x256xbf16>
    %c0_7 = arith.constant 0 : index
    %c0_8 = arith.constant 0 : index
    %c0_9 = arith.constant 0 : index
    %11 = vector.load %arg3[%c0_7, %c0_8, %c0_9] : memref<6x256x128xbf16, #tpu.memory_space<vmem>>, vector<1x256x128xbf16>
    %12 = vector.shape_cast %11 : vector<1x256x128xbf16> to vector<256x128xbf16>
    %cst_10 = arith.constant dense<0.000000e+00> : vector<16x128xf32>
    %13 = tpu.matmul %8, %12, %cst_10 {dimension_numbers = #tpu.dot_dimension_numbers<[1], [0], [0], [1], [0, 0, 1, 1], [], []>} : vector<16x256xbf16>, vector<256x128xbf16>, vector<16x128xf32> -> vector<16x128xf32>
    %14 = arith.addf %6, %13 : vector<16x128xf32>
    %c1 = arith.constant 1 : index
    %c0_11 = arith.constant 0 : index
    %c0_12 = arith.constant 0 : index
    %15 = vector.load %arg3[%c1, %c0_11, %c0_12] : memref<6x256x128xbf16, #tpu.memory_space<vmem>>, vector<1x256x128xbf16>
    %16 = vector.shape_cast %15 : vector<1x256x128xbf16> to vector<256x128xbf16>
    %cst_13 = arith.constant dense<0.000000e+00> : vector<16x128xf32>
    %17 = tpu.matmul %10, %16, %cst_13 {dimension_numbers = #tpu.dot_dimension_numbers<[1], [0], [0], [1], [0, 0, 1, 1], [], []>} : vector<16x256xbf16>, vector<256x128xbf16>, vector<16x128xf32> -> vector<16x128xf32>
    %18 = arith.addf %14, %17 : vector<16x128xf32>
    %19 = vector.extract_strided_slice %3 {offsets = [0, 0, 0], sizes = [4, 4, 256], strides = [1, 1, 1]} : vector<4x5x256xbf16> to vector<4x4x256xbf16>
    %20 = vector.shape_cast %19 : vector<4x4x256xbf16> to vector<16x256xbf16>
    %21 = vector.extract_strided_slice %3 {offsets = [0, 1, 0], sizes = [4, 4, 256], strides = [1, 1, 1]} : vector<4x5x256xbf16> to vector<4x4x256xbf16>
    %22 = vector.shape_cast %21 : vector<4x4x256xbf16> to vector<16x256xbf16>
    %c2 = arith.constant 2 : index
    %c0_14 = arith.constant 0 : index
    %c0_15 = arith.constant 0 : index
    %23 = vector.load %arg3[%c2, %c0_14, %c0_15] : memref<6x256x128xbf16, #tpu.memory_space<vmem>>, vector<1x256x128xbf16>
    %24 = vector.shape_cast %23 : vector<1x256x128xbf16> to vector<256x128xbf16>
    %cst_16 = arith.constant dense<0.000000e+00> : vector<16x128xf32>
    %25 = tpu.matmul %20, %24, %cst_16 {dimension_numbers = #tpu.dot_dimension_numbers<[1], [0], [0], [1], [0, 0, 1, 1], [], []>} : vector<16x256xbf16>, vector<256x128xbf16>, vector<16x128xf32> -> vector<16x128xf32>
    %26 = arith.addf %18, %25 : vector<16x128xf32>
    %c3 = arith.constant 3 : index
    %c0_17 = arith.constant 0 : index
    %c0_18 = arith.constant 0 : index
    %27 = vector.load %arg3[%c3, %c0_17, %c0_18] : memref<6x256x128xbf16, #tpu.memory_space<vmem>>, vector<1x256x128xbf16>
    %28 = vector.shape_cast %27 : vector<1x256x128xbf16> to vector<256x128xbf16>
    %cst_19 = arith.constant dense<0.000000e+00> : vector<16x128xf32>
    %29 = tpu.matmul %22, %28, %cst_19 {dimension_numbers = #tpu.dot_dimension_numbers<[1], [0], [0], [1], [0, 0, 1, 1], [], []>} : vector<16x256xbf16>, vector<256x128xbf16>, vector<16x128xf32> -> vector<16x128xf32>
    %30 = arith.addf %26, %29 : vector<16x128xf32>
    %31 = vector.extract_strided_slice %5 {offsets = [0, 0, 0], sizes = [4, 4, 256], strides = [1, 1, 1]} : vector<4x5x256xbf16> to vector<4x4x256xbf16>
    %32 = vector.shape_cast %31 : vector<4x4x256xbf16> to vector<16x256xbf16>
    %33 = vector.extract_strided_slice %5 {offsets = [0, 1, 0], sizes = [4, 4, 256], strides = [1, 1, 1]} : vector<4x5x256xbf16> to vector<4x4x256xbf16>
    %34 = vector.shape_cast %33 : vector<4x4x256xbf16> to vector<16x256xbf16>
    %c4 = arith.constant 4 : index
    %c0_20 = arith.constant 0 : index
    %c0_21 = arith.constant 0 : index
    %35 = vector.load %arg3[%c4, %c0_20, %c0_21] : memref<6x256x128xbf16, #tpu.memory_space<vmem>>, vector<1x256x128xbf16>
    %36 = vector.shape_cast %35 : vector<1x256x128xbf16> to vector<256x128xbf16>
    %cst_22 = arith.constant dense<0.000000e+00> : vector<16x128xf32>
    %37 = tpu.matmul %32, %36, %cst_22 {dimension_numbers = #tpu.dot_dimension_numbers<[1], [0], [0], [1], [0, 0, 1, 1], [], []>} : vector<16x256xbf16>, vector<256x128xbf16>, vector<16x128xf32> -> vector<16x128xf32>
    %38 = arith.addf %30, %37 : vector<16x128xf32>
    %c5 = arith.constant 5 : index
    %c0_23 = arith.constant 0 : index
    %c0_24 = arith.constant 0 : index
    %39 = vector.load %arg3[%c5, %c0_23, %c0_24] : memref<6x256x128xbf16, #tpu.memory_space<vmem>>, vector<1x256x128xbf16>
    %40 = vector.shape_cast %39 : vector<1x256x128xbf16> to vector<256x128xbf16>
    %cst_25 = arith.constant dense<0.000000e+00> : vector<16x128xf32>
    %41 = tpu.matmul %34, %40, %cst_25 {dimension_numbers = #tpu.dot_dimension_numbers<[1], [0], [0], [1], [0, 0, 1, 1], [], []>} : vector<16x256xbf16>, vector<256x128xbf16>, vector<16x128xf32> -> vector<16x128xf32>
    %42 = arith.addf %38, %41 : vector<16x128xf32>
    %c0_26 = arith.constant 0 : index
    %c0_27 = arith.constant 0 : index
    %43 = vector.load %arg4[%c0_26, %c0_27] : memref<1x128xf32, #tpu.memory_space<vmem>>, vector<1x128xf32>
    %44 = vector.broadcast %43 : vector<1x128xf32> to vector<16x128xf32>
    %45 = arith.addf %42, %44 : vector<16x128xf32>
    %cst_28 = arith.constant 1.000000e-01 : f32
    %46 = vector.broadcast %cst_28 : f32 to vector<16x128xf32>
    %47 = arith.mulf %46, %45 : vector<16x128xf32>
    %48 = arith.maximumf %45, %47 : vector<16x128xf32>
    %49 = vector.shape_cast %48 : vector<16x128xf32> to vector<1x16x128xf32>
    %50 = arith.truncf %49 : vector<1x16x128xf32> to vector<1x16x128xbf16>
    %c0_29 = arith.constant 0 : index
    %c0_30 = arith.constant 0 : index
    %c0_31 = arith.constant 0 : index
    %51 = vector.load %arg5[%c0_29, %c0_30, %c0_31] : memref<1x16x128xbf16, #tpu.memory_space<vmem>>, vector<1x16x128xbf16>
    tpu.vector_store %arg5[%c0_29, %c0_30, %c0_31], %50 {strides = array<i32>} : memref<1x16x128xbf16, #tpu.memory_space<vmem>>, vector<1x16x128xbf16>,
    return
  }
  func.func @transform_0(%arg0: i32) -> (i32, i32, i32, i32) {
    %c0_i32 = arith.constant 0 : i32
    %c0_i32_0 = arith.constant 0 : i32
    %c0_i32_1 = arith.constant 0 : i32
    %c0_i32_2 = arith.constant 0 : i32
    return %arg0, %c0_i32, %c0_i32_0, %c0_i32_1 : i32, i32, i32, i32
  }
  func.func @transform_1(%arg0: i32) -> (i32, i32, i32, i32) {
    %c0_i32 = arith.constant 0 : i32
    %c0_i32_0 = arith.constant 0 : i32
    %c0_i32_1 = arith.constant 0 : i32
    %c0_i32_2 = arith.constant 0 : i32
    return %arg0, %c0_i32, %c0_i32_0, %c0_i32_1 : i32, i32, i32, i32
  }
  func.func @transform_2(%arg0: i32) -> (i32, i32, i32) {
    %c0_i32 = arith.constant 0 : i32
    %c0_i32_0 = arith.constant 0 : i32
    %c0_i32_1 = arith.constant 0 : i32
    %c0_i32_2 = arith.constant 0 : i32
    return %c0_i32, %c0_i32_0, %c0_i32_1 : i32, i32, i32
  }
  func.func @transform_3(%arg0: i32) -> (i32, i32) {
    %c0_i32 = arith.constant 0 : i32
    %c0_i32_0 = arith.constant 0 : i32
    %c0_i32_1 = arith.constant 0 : i32
    return %c0_i32, %c0_i32_0 : i32, i32
  }
  func.func @transform_4(%arg0: i32) -> (i32, i32, i32) {
    %c0_i32 = arith.constant 0 : i32
    %c0_i32_0 = arith.constant 0 : i32
    %c0_i32_1 = arith.constant 0 : i32
    return %arg0, %c0_i32, %c0_i32_0 : i32, i32, i32
  }
}

module attributes {stable_mosaic.version = 11 : i64} {
  func.func @_conv3x3s2_bn_lrelu_kernel(%arg0: i32, %arg1: memref<1x3x3x256xbf16, #tpu.memory_space<vmem>>, %arg2: memref<1x2x3x256xbf16, #tpu.memory_space<vmem>>, %arg3: memref<6x256x256xbf16, #tpu.memory_space<vmem>>, %arg4: memref<1x256xf32, #tpu.memory_space<vmem>>, %arg5: memref<1x4x256xf32, #tpu.memory_space<vmem>>) attributes {dimension_semantics = [#tpu.dimension_semantics<parallel>], iteration_bounds = array<i64: 2>, scalar_prefetch = 0 : i64, scratch_operands = 0 : i64, tpu.core_type = #tpu.core_type<tc>, window_params = [{transform_indices = @transform_0, window_bounds = array<i64: 1, 3, 3, 256>}, {transform_indices = @transform_1, window_bounds = array<i64: 1, 2, 3, 256>}, {pipeline_mode = #tpu.pipeline_mode<synchronous>, transform_indices = @transform_2, window_bounds = array<i64: 6, 256, 256>}, {pipeline_mode = #tpu.pipeline_mode<synchronous>, transform_indices = @transform_3, window_bounds = array<i64: 1, 256>}, {transform_indices = @transform_4, window_bounds = array<i64: 1, 4, 256>}]} {
    %c0 = arith.constant 0 : index
    %c0_0 = arith.constant 0 : index
    %c0_1 = arith.constant 0 : index
    %c0_2 = arith.constant 0 : index
    %0 = vector.load %arg1[%c0, %c0_0, %c0_1, %c0_2] : memref<1x3x3x256xbf16, #tpu.memory_space<vmem>>, vector<1x3x3x256xbf16>
    %1 = vector.shape_cast %0 : vector<1x3x3x256xbf16> to vector<3x3x256xbf16>
    %c0_3 = arith.constant 0 : index
    %c0_4 = arith.constant 0 : index
    %c0_5 = arith.constant 0 : index
    %c0_6 = arith.constant 0 : index
    %2 = vector.load %arg2[%c0_3, %c0_4, %c0_5, %c0_6] : memref<1x2x3x256xbf16, #tpu.memory_space<vmem>>, vector<1x2x3x256xbf16>
    %3 = vector.shape_cast %2 : vector<1x2x3x256xbf16> to vector<2x3x256xbf16>
    %4 = vector.extract_strided_slice %1 {offsets = [0, 0, 0], sizes = [2, 3, 256], strides = [1, 1, 1]} : vector<3x3x256xbf16> to vector<2x3x256xbf16>
    %5 = vector.extract_strided_slice %1 {offsets = [1, 0, 0], sizes = [2, 3, 256], strides = [1, 1, 1]} : vector<3x3x256xbf16> to vector<2x3x256xbf16>
    %cst = arith.constant 0.000000e+00 : f32
    %6 = vector.broadcast %cst : f32 to vector<4x256xf32>
    %7 = vector.extract_strided_slice %4 {offsets = [0, 0, 0], sizes = [2, 2, 256], strides = [1, 1, 1]} : vector<2x3x256xbf16> to vector<2x2x256xbf16>
    %8 = vector.shape_cast %7 : vector<2x2x256xbf16> to vector<4x256xbf16>
    %9 = vector.extract_strided_slice %4 {offsets = [0, 1, 0], sizes = [2, 2, 256], strides = [1, 1, 1]} : vector<2x3x256xbf16> to vector<2x2x256xbf16>
    %10 = vector.shape_cast %9 : vector<2x2x256xbf16> to vector<4x256xbf16>
    %c0_7 = arith.constant 0 : index
    %c0_8 = arith.constant 0 : index
    %c0_9 = arith.constant 0 : index
    %11 = vector.load %arg3[%c0_7, %c0_8, %c0_9] : memref<6x256x256xbf16, #tpu.memory_space<vmem>>, vector<1x256x256xbf16>
    %12 = vector.shape_cast %11 : vector<1x256x256xbf16> to vector<256x256xbf16>
    %cst_10 = arith.constant dense<0.000000e+00> : vector<4x256xf32>
    %13 = tpu.matmul %8, %12, %cst_10 {dimension_numbers = #tpu.dot_dimension_numbers<[1], [0], [0], [1], [0, 0, 1, 1], [], []>} : vector<4x256xbf16>, vector<256x256xbf16>, vector<4x256xf32> -> vector<4x256xf32>
    %14 = arith.addf %6, %13 : vector<4x256xf32>
    %c1 = arith.constant 1 : index
    %c0_11 = arith.constant 0 : index
    %c0_12 = arith.constant 0 : index
    %15 = vector.load %arg3[%c1, %c0_11, %c0_12] : memref<6x256x256xbf16, #tpu.memory_space<vmem>>, vector<1x256x256xbf16>
    %16 = vector.shape_cast %15 : vector<1x256x256xbf16> to vector<256x256xbf16>
    %cst_13 = arith.constant dense<0.000000e+00> : vector<4x256xf32>
    %17 = tpu.matmul %10, %16, %cst_13 {dimension_numbers = #tpu.dot_dimension_numbers<[1], [0], [0], [1], [0, 0, 1, 1], [], []>} : vector<4x256xbf16>, vector<256x256xbf16>, vector<4x256xf32> -> vector<4x256xf32>
    %18 = arith.addf %14, %17 : vector<4x256xf32>
    %19 = vector.extract_strided_slice %3 {offsets = [0, 0, 0], sizes = [2, 2, 256], strides = [1, 1, 1]} : vector<2x3x256xbf16> to vector<2x2x256xbf16>
    %20 = vector.shape_cast %19 : vector<2x2x256xbf16> to vector<4x256xbf16>
    %21 = vector.extract_strided_slice %3 {offsets = [0, 1, 0], sizes = [2, 2, 256], strides = [1, 1, 1]} : vector<2x3x256xbf16> to vector<2x2x256xbf16>
    %22 = vector.shape_cast %21 : vector<2x2x256xbf16> to vector<4x256xbf16>
    %c2 = arith.constant 2 : index
    %c0_14 = arith.constant 0 : index
    %c0_15 = arith.constant 0 : index
    %23 = vector.load %arg3[%c2, %c0_14, %c0_15] : memref<6x256x256xbf16, #tpu.memory_space<vmem>>, vector<1x256x256xbf16>
    %24 = vector.shape_cast %23 : vector<1x256x256xbf16> to vector<256x256xbf16>
    %cst_16 = arith.constant dense<0.000000e+00> : vector<4x256xf32>
    %25 = tpu.matmul %20, %24, %cst_16 {dimension_numbers = #tpu.dot_dimension_numbers<[1], [0], [0], [1], [0, 0, 1, 1], [], []>} : vector<4x256xbf16>, vector<256x256xbf16>, vector<4x256xf32> -> vector<4x256xf32>
    %26 = arith.addf %18, %25 : vector<4x256xf32>
    %c3 = arith.constant 3 : index
    %c0_17 = arith.constant 0 : index
    %c0_18 = arith.constant 0 : index
    %27 = vector.load %arg3[%c3, %c0_17, %c0_18] : memref<6x256x256xbf16, #tpu.memory_space<vmem>>, vector<1x256x256xbf16>
    %28 = vector.shape_cast %27 : vector<1x256x256xbf16> to vector<256x256xbf16>
    %cst_19 = arith.constant dense<0.000000e+00> : vector<4x256xf32>
    %29 = tpu.matmul %22, %28, %cst_19 {dimension_numbers = #tpu.dot_dimension_numbers<[1], [0], [0], [1], [0, 0, 1, 1], [], []>} : vector<4x256xbf16>, vector<256x256xbf16>, vector<4x256xf32> -> vector<4x256xf32>
    %30 = arith.addf %26, %29 : vector<4x256xf32>
    %31 = vector.extract_strided_slice %5 {offsets = [0, 0, 0], sizes = [2, 2, 256], strides = [1, 1, 1]} : vector<2x3x256xbf16> to vector<2x2x256xbf16>
    %32 = vector.shape_cast %31 : vector<2x2x256xbf16> to vector<4x256xbf16>
    %33 = vector.extract_strided_slice %5 {offsets = [0, 1, 0], sizes = [2, 2, 256], strides = [1, 1, 1]} : vector<2x3x256xbf16> to vector<2x2x256xbf16>
    %34 = vector.shape_cast %33 : vector<2x2x256xbf16> to vector<4x256xbf16>
    %c4 = arith.constant 4 : index
    %c0_20 = arith.constant 0 : index
    %c0_21 = arith.constant 0 : index
    %35 = vector.load %arg3[%c4, %c0_20, %c0_21] : memref<6x256x256xbf16, #tpu.memory_space<vmem>>, vector<1x256x256xbf16>
    %36 = vector.shape_cast %35 : vector<1x256x256xbf16> to vector<256x256xbf16>
    %cst_22 = arith.constant dense<0.000000e+00> : vector<4x256xf32>
    %37 = tpu.matmul %32, %36, %cst_22 {dimension_numbers = #tpu.dot_dimension_numbers<[1], [0], [0], [1], [0, 0, 1, 1], [], []>} : vector<4x256xbf16>, vector<256x256xbf16>, vector<4x256xf32> -> vector<4x256xf32>
    %38 = arith.addf %30, %37 : vector<4x256xf32>
    %c5 = arith.constant 5 : index
    %c0_23 = arith.constant 0 : index
    %c0_24 = arith.constant 0 : index
    %39 = vector.load %arg3[%c5, %c0_23, %c0_24] : memref<6x256x256xbf16, #tpu.memory_space<vmem>>, vector<1x256x256xbf16>
    %40 = vector.shape_cast %39 : vector<1x256x256xbf16> to vector<256x256xbf16>
    %cst_25 = arith.constant dense<0.000000e+00> : vector<4x256xf32>
    %41 = tpu.matmul %34, %40, %cst_25 {dimension_numbers = #tpu.dot_dimension_numbers<[1], [0], [0], [1], [0, 0, 1, 1], [], []>} : vector<4x256xbf16>, vector<256x256xbf16>, vector<4x256xf32> -> vector<4x256xf32>
    %42 = arith.addf %38, %41 : vector<4x256xf32>
    %c0_26 = arith.constant 0 : index
    %c0_27 = arith.constant 0 : index
    %43 = vector.load %arg4[%c0_26, %c0_27] : memref<1x256xf32, #tpu.memory_space<vmem>>, vector<1x256xf32>
    %44 = vector.broadcast %43 : vector<1x256xf32> to vector<4x256xf32>
    %45 = arith.addf %42, %44 : vector<4x256xf32>
    %cst_28 = arith.constant 1.000000e-01 : f32
    %46 = vector.broadcast %cst_28 : f32 to vector<4x256xf32>
    %47 = arith.mulf %46, %45 : vector<4x256xf32>
    %48 = arith.maximumf %45, %47 : vector<4x256xf32>
    %49 = vector.shape_cast %48 : vector<4x256xf32> to vector<1x4x256xf32>
    %c0_29 = arith.constant 0 : index
    %c0_30 = arith.constant 0 : index
    %c0_31 = arith.constant 0 : index
    %50 = vector.load %arg5[%c0_29, %c0_30, %c0_31] : memref<1x4x256xf32, #tpu.memory_space<vmem>>, vector<1x4x256xf32>
    tpu.vector_store %arg5[%c0_29, %c0_30, %c0_31], %49 {strides = array<i32>} : memref<1x4x256xf32, #tpu.memory_space<vmem>>, vector<1x4x256xf32>,
    return
  }
  func.func @transform_0(%arg0: i32) -> (i32, i32, i32, i32) {
    %c0_i32 = arith.constant 0 : i32
    %c0_i32_0 = arith.constant 0 : i32
    %c0_i32_1 = arith.constant 0 : i32
    %c0_i32_2 = arith.constant 0 : i32
    return %arg0, %c0_i32, %c0_i32_0, %c0_i32_1 : i32, i32, i32, i32
  }
  func.func @transform_1(%arg0: i32) -> (i32, i32, i32, i32) {
    %c0_i32 = arith.constant 0 : i32
    %c0_i32_0 = arith.constant 0 : i32
    %c0_i32_1 = arith.constant 0 : i32
    %c0_i32_2 = arith.constant 0 : i32
    return %arg0, %c0_i32, %c0_i32_0, %c0_i32_1 : i32, i32, i32, i32
  }
  func.func @transform_2(%arg0: i32) -> (i32, i32, i32) {
    %c0_i32 = arith.constant 0 : i32
    %c0_i32_0 = arith.constant 0 : i32
    %c0_i32_1 = arith.constant 0 : i32
    %c0_i32_2 = arith.constant 0 : i32
    return %c0_i32, %c0_i32_0, %c0_i32_1 : i32, i32, i32
  }
  func.func @transform_3(%arg0: i32) -> (i32, i32) {
    %c0_i32 = arith.constant 0 : i32
    %c0_i32_0 = arith.constant 0 : i32
    %c0_i32_1 = arith.constant 0 : i32
    return %c0_i32, %c0_i32_0 : i32, i32
  }
  func.func @transform_4(%arg0: i32) -> (i32, i32, i32) {
    %c0_i32 = arith.constant 0 : i32
    %c0_i32_0 = arith.constant 0 : i32
    %c0_i32_1 = arith.constant 0 : i32
    return %arg0, %c0_i32, %c0_i32_0 : i32, i32, i32
  }
}

</mosaic_0001>

<llo_original>
// kernel: shared_conv_base_forward.3
$region0: #{shared_conv_base_forward.3}
  #allocation0 [shape = 'u32[]', space=smem, size = 0x4, offset = 0x4, fixed_abs, tag = 'smem constant byte address 0x4 - core index']
  #allocation1 [shape = 'u32[144,128]{1,0:T(1,128)}', space=vmem, size = 0x12000, scoped, tag = 'internal scratch']
  %s0 = inlined_call_operand.vmem [shape: bf16[2,9,9,6], index: 0, kind: input, shape index: {}]
  %s1 = inlined_call_operand.vmem [shape: bf16[2,8,9,6], index: 1, kind: input, shape index: {}]
  %s2 = inlined_call_operand.vmem [shape: bf16[6,6,128], index: 2, kind: input, shape index: {}]
  %s3 = inlined_call_operand.vmem [shape: f32[1,128], index: 3, kind: input, shape index: {}]
  %s4 = inlined_call_operand.vmem [shape: bf16[2,64,128], index: 4, kind: output, shape index: {}]
  %s5 = sld [smem:[#allocation0]]
  $region49: #{shared_conv_base_forward.3} parent=0
    _
  %s7 = ssub.s32 1, %s5
  %s8 = scalar_select 0, %s7, %s5
  loop: start=0, step=1, limit=4
  $region2: #{shared_conv_base_forward.3} parent=0 // loop_pre_header
    _
  $region3: #{shared_conv_base_forward.3} parent=0 // loop_header
    %s10 = sphi 0, %s14
    %p11 = scmp.ge.s32.totalorder %s10, 4
    %s20 = sphi 0, %s22
    %s23 = sphi 0, %s20
    %s24 = sphi 0, %s23
    %s40 = sphi 0, %s24
    %s46 = sphi 0, %s48
    %s49 = sphi 0, %s46
    %s50 = sphi 0, %s49
    %s66 = sphi 0, %s50
    %s70 = sphi 0, %s70
    %s72 = sphi 0, %s70
    %s73 = sphi 0, %s72
    %s87 = sphi 0, %s73
    %s91 = sphi 0, %s91
    %s93 = sphi 0, %s91
    %s94 = sphi 0, %s93
    %s108 = sphi 0, %s94
    %s114 = sphi 0, %s116
    %s117 = sphi 0, %s114
    %s118 = sphi 0, %s117
    %s134 = sphi 0, %s118
  $region4: #{shared_conv_base_forward.3} parent=0 // loop_header_branch
    %13 = sbr.rel (%p11) target = $region8
  $region5: #{shared_conv_base_forward.3} parent=0 // loop_body
    %s15 = ssub.s32 %s10, 1
    %s16 = ssub.s32 %s10, 2
    %s17 = sadd.s32 %s10, 1
    %s18 = ssub.s32 %s10, %s17
    %p19 = scmp.eq.s32.totalorder %s18, 0
    %s21 = sadd.s32 %s20, 1
    %s22 = scalar_select %p19, %s20, %s21
    %p25 = pneg %p19
    %p26 = scmp.eq.s32.totalorder %s10, 1
    %p27 = por %p25, %p26
    %p28 = scmp.ne.s32.totalorder %s20, %s23
    %p29 = scmp.eq.s32.totalorder %s10, 0
    %p30 = por %p28, %p29
    %p31 = scmp.ne.s32.totalorder %s20, %s23
    %p32 = scmp.eq.s32.totalorder %s15, 1
    %p33 = por %p31, %p32
    %p34 = scmp.ne.s32.totalorder %s23, %s24
    %p35 = scmp.eq.s32.totalorder %s15, 0
    %p36 = por %p34, %p35
    %p37 = scmp.ne.s32.totalorder %s23, %s24
    %p38 = scmp.eq.s32.totalorder %s16, 1
    %p39 = por %p37, %p38
    %p41 = scmp.ne.s32.totalorder %s24, %s40
    %p42 = scmp.eq.s32.totalorder %s16, 0
    %p43 = por %p41, %p42
    %s44 = ssub.s32 %s10, %s17
    %p45 = scmp.eq.s32.totalorder %s44, 0
    %s47 = sadd.s32 %s46, 1
    %s48 = scalar_select %p45, %s46, %s47
    %p51 = pneg %p45
    %p52 = scmp.eq.s32.totalorder %s10, 1
    %p53 = por %p51, %p52
    %p54 = scmp.ne.s32.totalorder %s46, %s49
    %p55 = scmp.eq.s32.totalorder %s10, 0
    %p56 = por %p54, %p55
    %p57 = scmp.ne.s32.totalorder %s46, %s49
    %p58 = scmp.eq.s32.totalorder %s15, 1
    %p59 = por %p57, %p58
    %p60 = scmp.ne.s32.totalorder %s49, %s50
    %p61 = scmp.eq.s32.totalorder %s15, 0
    %p62 = por %p60, %p61
    %p63 = scmp.ne.s32.totalorder %s49, %s50
    %p64 = scmp.eq.s32.totalorder %s16, 1
    %p65 = por %p63, %p64
    %p67 = scmp.ne.s32.totalorder %s50, %s66
    %p68 = scmp.eq.s32.totalorder %s16, 0
    %p69 = por %p67, %p68
    %s71 = sadd.s32 %s70, 1
    %p74 = scmp.eq.s32.totalorder %s10, 1
    %p75 = scmp.ne.s32.totalorder %s70, %s72
    %p76 = scmp.eq.s32.totalorder %s10, 0
    %p77 = por %p75, %p76
    %p78 = scmp.ne.s32.totalorder %s70, %s72
    %p79 = scmp.eq.s32.totalorder %s15, 1
    %p80 = por %p78, %p79
    %p81 = scmp.ne.s32.totalorder %s72, %s73
    %p82 = scmp.eq.s32.totalorder %s15, 0
    %p83 = por %p81, %p82
    %p84 = scmp.ne.s32.totalorder %s72, %s73
    %p85 = scmp.eq.s32.totalorder %s16, 1
    %p86 = por %p84, %p85
    %p88 = scmp.ne.s32.totalorder %s73, %s87
    %p89 = scmp.eq.s32.totalorder %s16, 0
    %p90 = por %p88, %p89
    %s92 = sadd.s32 %s91, 1
    %p95 = scmp.eq.s32.totalorder %s10, 1
    %p96 = scmp.ne.s32.totalorder %s91, %s93
    %p97 = scmp.eq.s32.totalorder %s10, 0
    %p98 = por %p96, %p97
    %p99 = scmp.ne.s32.totalorder %s91, %s93
    %p100 = scmp.eq.s32.totalorder %s15, 1
    %p101 = por %p99, %p100
    %p102 = scmp.ne.s32.totalorder %s93, %s94
    %p103 = scmp.eq.s32.totalorder %s15, 0
    %p104 = por %p102, %p103
    %p105 = scmp.ne.s32.totalorder %s93, %s94
    %p106 = scmp.eq.s32.totalorder %s16, 1
    %p107 = por %p105, %p106
    %p109 = scmp.ne.s32.totalorder %s94, %s108
    %p110 = scmp.eq.s32.totalorder %s16, 0
    %p111 = por %p109, %p110
    %s112 = ssub.s32 %s10, %s17
    %p113 = scmp.eq.s32.totalorder %s112, 0
    %s115 = sadd.s32 %s114, 1
    %s116 = scalar_select %p113, %s114, %s115
    %p119 = pneg %p113
    %p120 = scmp.eq.s32.totalorder %s10, 1
    %p121 = por %p119, %p120
    %p122 = scmp.ne.s32.totalorder %s114, %s117
    %p123 = scmp.eq.s32.totalorder %s10, 0
    %p124 = por %p122, %p123
    %p125 = scmp.ne.s32.totalorder %s114, %s117
    %p126 = scmp.eq.s32.totalorder %s15, 1
    %p127 = por %p125, %p126
    %p128 = scmp.ne.s32.totalorder %s117, %s118
    %p129 = scmp.eq.s32.totalorder %s15, 0
    %p130 = por %p128, %p129
    %p131 = scmp.ne.s32.totalorder %s117, %s118
    %p132 = scmp.eq.s32.totalorder %s16, 1
    %p133 = por %p131, %p132
    %p135 = scmp.ne.s32.totalorder %s118, %s134
    %p136 = scmp.eq.s32.totalorder %s16, 0
    %p137 = por %p135, %p136
    %p138 = scmp.le.s32.totalorder 1, %s10
    %p139 = scmp.lt.s32.totalorder %s10, 3
    %p140 = pnand %p138, %p139
    %p141 = pneg %p140
    // Predicated region
    $region9: #{shared_conv_base_forward.3} parent=5 // pred_check
      _
    $region10: #{shared_conv_base_forward.3} parent=5 // pred_check_branch
      %143 = sbr.rel (%p140) target = $region12
    $region11: #{shared_conv_base_forward.3} parent=5 // pred_region
      %s144 = ssub.s32 %s10, 1
      // Predicated region
      $region13: #{shared_conv_base_forward.3} parent=11 // pred_check
        %p145 = pneg %p83
      $region14: #{shared_conv_base_forward.3} parent=11 // pred_check_branch
        %147 = sbr.rel (%p145) target = $region16
      $region15: #{shared_conv_base_forward.3} parent=11 // pred_region
        _
      $region16: #{shared_conv_base_forward.3} parent=11 // pred_fallthru
        _
      // Predicated region
      $region17: #{shared_conv_base_forward.3} parent=11 // pred_check
        %p148 = pneg %p104
      $region18: #{shared_conv_base_forward.3} parent=11 // pred_check_branch
        %150 = sbr.rel (%p148) target = $region20
      $region19: #{shared_conv_base_forward.3} parent=11 // pred_region
        _
      $region20: #{shared_conv_base_forward.3} parent=11 // pred_fallthru
        _
    $region12: #{shared_conv_base_forward.3} parent=5 // pred_fallthru
      _
    %p151 = scmp.lt.s32.totalorder %s10, 2
    // Predicated region
    $region21: #{shared_conv_base_forward.3} parent=5 // pred_check
      %p152 = pneg %p151
    $region22: #{shared_conv_base_forward.3} parent=5 // pred_check_branch
      %154 = sbr.rel (%p152) target = $region24
    $region23: #{shared_conv_base_forward.3} parent=5 // pred_region
      // Predicated region
      $region25: #{shared_conv_base_forward.3} parent=23 // pred_check
        %p155 = pneg %p30
      $region26: #{shared_conv_base_forward.3} parent=23 // pred_check_branch
        %157 = sbr.rel (%p155) target = $region28
      $region27: #{shared_conv_base_forward.3} parent=23 // pred_region
        %p158 = scmp.lt.s32.totalorder %s10, 1
        %s159 = scalar_select %p158, %s10, 1
        %s160 = smul.addr %s159, 18
        %s161 = smul.addr %s160, 4
        %s162 = scalar_lea.vmem %s0, %s161
      $region28: #{shared_conv_base_forward.3} parent=23 // pred_fallthru
        _
      // Predicated region
      $region29: #{shared_conv_base_forward.3} parent=23 // pred_check
        %p163 = pneg %p56
      $region30: #{shared_conv_base_forward.3} parent=23 // pred_check_branch
        %165 = sbr.rel (%p163) target = $region32
      $region31: #{shared_conv_base_forward.3} parent=23 // pred_region
        %p166 = scmp.lt.s32.totalorder %s10, 1
        %s167 = scalar_select %p166, %s10, 1
        %s168 = smul.addr %s167, 16
        %s169 = smul.addr %s168, 4
        %s170 = scalar_lea.vmem %s1, %s169
      $region32: #{shared_conv_base_forward.3} parent=23 // pred_fallthru
        _
    $region24: #{shared_conv_base_forward.3} parent=5 // pred_fallthru
      _
    %p171 = scmp.le.s32.totalorder 1, %s10
    %p172 = scmp.lt.s32.totalorder %s10, 3
    %p173 = pnand %p171, %p172
    %p174 = pneg %p173
    // Predicated region
    $region33: #{shared_conv_base_forward.3} parent=5 // pred_check
      _
    $region34: #{shared_conv_base_forward.3} parent=5 // pred_check_branch
      %176 = sbr.rel (%p173) target = $region36
    $region35: #{shared_conv_base_forward.3} parent=5 // pred_region
      %s177 = ssub.s32 %s10, 1
      %p178 = scmp.lt.s32.totalorder %s15, 1
      %s179 = scalar_select %p178, %s15, 1
      %s180 = smul.addr %s179, 18
      %s181 = smul.addr %s180, 4
      %s182 = scalar_lea.vmem %s0, %s181
      %p183 = pneg %p36
      %p184 = pneg %p33
      %p185 = scmp.lt.s32.totalorder %s15, 1
      %s186 = scalar_select %p185, %s15, 1
      %s187 = smul.addr %s186, 16
      %s188 = smul.addr %s187, 4
      %s189 = scalar_lea.vmem %s1, %s188
      %p190 = pneg %p62
      %p191 = pneg %p59
      %p192 = pneg %p83
      %p193 = pneg %p80
      %p194 = pneg %p104
      %p195 = pneg %p101
      %p196 = pneg %p130
      %p197 = pneg %p127
      %p198 = scmp.lt.s32.totalorder %s15, 1
      %s199 = scalar_select %p198, %s15, 1
      %s200 = smul.addr %s199, 8
      %s201 = smul.addr %s200, 4
      %s202 = scalar_lea.vmem %s4, %s201
      %p203 = scmp.lt.s32.totalorder %s15, 1
      %s204 = scalar_select %p203, %s15, 1
      %s205 = smul.addr %s204, 18
      %s206 = smul.addr %s205, 4
      %s207 = scalar_lea.vmem %s0, %s206
      %p208 = scmp.lt.s32.totalorder %s15, 1
      %s209 = scalar_select %p208, %s15, 1
      %s210 = smul.addr %s209, 16
      %s211 = smul.addr %s210, 4
      %s212 = scalar_lea.vmem %s1, %s211
      %p213 = scmp.lt.s32.totalorder %s15, 1
      %s214 = scalar_select %p213, %s15, 1
      %s215 = smul.addr %s214, 8
      %s216 = smul.addr %s215, 4
      %s217 = scalar_lea.vmem %s4, %s216
      %v219 = vld [vmem:[%s207] sm:$0xf]
      %v220 = vld [vmem:[%s207 + $0x4] sm:$0x1]
      %v221 = vld [vmem:[%s207 + $0x8] sm:$0xf]
      %v222 = vld [vmem:[%s207 + $0xc] sm:$0x1]
      %v223 = vld [vmem:[%s207 + $0x10] sm:$0xf]
      %v224 = vld [vmem:[%s207 + $0x14] sm:$0x1]
      %v225 = vld [vmem:[%s207 + $0x18] sm:$0xf]
      %v226 = vld [vmem:[%s207 + $0x1c] sm:$0x1]
      %v227 = vld [vmem:[%s207 + $0x20] sm:$0xf]
      %v228 = vld [vmem:[%s207 + $0x24] sm:$0x1]
      %v229 = vld [vmem:[%s207 + $0x28] sm:$0xf]
      %v230 = vld [vmem:[%s207 + $0x2c] sm:$0x1]
      %v231 = vld [vmem:[%s207 + $0x30] sm:$0xf]
      %v232 = vld [vmem:[%s207 + $0x34] sm:$0x1]
      %v233 = vld [vmem:[%s207 + $0x38] sm:$0xf]
      %v234 = vld [vmem:[%s207 + $0x3c] sm:$0x1]
      %v235 = vld [vmem:[%s207 + $0x40] sm:$0xf]
      %v236 = vld [vmem:[%s207 + $0x44] sm:$0x1]
      %v237 = vld [vmem:[%s212] sm:$0xf]
      %v238 = vld [vmem:[%s212 + $0x4] sm:$0x1]
      %v239 = vld [vmem:[%s212 + $0x8] sm:$0xf]
      %v240 = vld [vmem:[%s212 + $0xc] sm:$0x1]
      %v241 = vld [vmem:[%s212 + $0x10] sm:$0xf]
      %v242 = vld [vmem:[%s212 + $0x14] sm:$0x1]
      %v243 = vld [vmem:[%s212 + $0x18] sm:$0xf]
      %v244 = vld [vmem:[%s212 + $0x1c] sm:$0x1]
      %v245 = vld [vmem:[%s212 + $0x20] sm:$0xf]
      %v246 = vld [vmem:[%s212 + $0x24] sm:$0x1]
      %v247 = vld [vmem:[%s212 + $0x28] sm:$0xf]
      %v248 = vld [vmem:[%s212 + $0x2c] sm:$0x1]
      %v249 = vld [vmem:[%s212 + $0x30] sm:$0xf]
      %v250 = vld [vmem:[%s212 + $0x34] sm:$0x1]
      %v251 = vld [vmem:[%s212 + $0x38] sm:$0xf]
      %v252 = vld [vmem:[%s212 + $0x3c] sm:$0x1]
      %vm253 = vsmask.f32 3328
      %vm254 = vsmask.f32 7440
      %vm255 = vmor %vm253, %vm254
      %v257 = vshrl.u32 %v219, 16
      %v259 = vrot.slane %v257, 4
      %v260 = vshll.u32 %v219, 16
      %v262 = vrot.slane %v260, 5
      %v263 = vor.u32 %v259, %v262
      %v264 = vrot.slane %v263, 4
      %v266 = vshll.u32 %v220, 16
      %v268 = vrot.slane %v266, 5
      %v269 = vsel %vm255, %v264, %v268
      %v271 = vshrl.u32 %v221, 16
      %v273 = vrot.slane %v271, 4
      %v274 = vshll.u32 %v221, 16
      %v276 = vrot.slane %v274, 5
      %v277 = vor.u32 %v273, %v276
      %v278 = vrot.slane %v277, 4
      %v280 = vshll.u32 %v222, 16
      %v282 = vrot.slane %v280, 5
      %v283 = vsel %vm255, %v278, %v282
      %v285 = vshrl.u32 %v223, 16
      %v287 = vrot.slane %v285, 4
      %v288 = vshll.u32 %v223, 16
      %v290 = vrot.slane %v288, 5
      %v291 = vor.u32 %v287, %v290
      %v292 = vrot.slane %v291, 4
      %v294 = vshll.u32 %v224, 16
      %v296 = vrot.slane %v294, 5
      %v297 = vsel %vm255, %v292, %v296
      %v299 = vshrl.u32 %v225, 16
      %v301 = vrot.slane %v299, 4
      %v302 = vshll.u32 %v225, 16
      %v304 = vrot.slane %v302, 5
      %v305 = vor.u32 %v301, %v304
      %v306 = vrot.slane %v305, 4
      %v308 = vshll.u32 %v226, 16
      %v310 = vrot.slane %v308, 5
      %v311 = vsel %vm255, %v306, %v310
      %v313 = vshrl.u32 %v227, 16
      %v315 = vrot.slane %v313, 4
      %v316 = vshll.u32 %v227, 16
      %v318 = vrot.slane %v316, 5
      %v319 = vor.u32 %v315, %v318
      %v320 = vrot.slane %v319, 4
      %v322 = vshll.u32 %v228, 16
      %v324 = vrot.slane %v322, 5
      %v325 = vsel %vm255, %v320, %v324
      %v327 = vshrl.u32 %v229, 16
      %v329 = vrot.slane %v327, 4
      %v330 = vshll.u32 %v229, 16
      %v332 = vrot.slane %v330, 5
      %v333 = vor.u32 %v329, %v332
      %v334 = vrot.slane %v333, 4
      %v336 = vshll.u32 %v230, 16
      %v338 = vrot.slane %v336, 5
      %v339 = vsel %vm255, %v334, %v338
      %v341 = vshrl.u32 %v231, 16
      %v343 = vrot.slane %v341, 4
      %v344 = vshll.u32 %v231, 16
      %v346 = vrot.slane %v344, 5
      %v347 = vor.u32 %v343, %v346
      %v348 = vrot.slane %v347, 4
      %v350 = vshll.u32 %v232, 16
      %v352 = vrot.slane %v350, 5
      %v353 = vsel %vm255, %v348, %v352
      %v355 = vshrl.u32 %v233, 16
      %v357 = vrot.slane %v355, 4
      %v358 = vshll.u32 %v233, 16
      %v360 = vrot.slane %v358, 5
      %v361 = vor.u32 %v357, %v360
      %v362 = vrot.slane %v361, 4
      %v364 = vshll.u32 %v234, 16
      %v366 = vrot.slane %v364, 5
      %v367 = vsel %vm255, %v362, %v366
      %v368 = vld [vmem:[%s2] sm:$0x7]
      %s369 = scalar_lea.vmem %s2, 4
      %v370 = vld [vmem:[%s369] sm:$0x7]
      %v371 = vunpack.c.l.b16 %v269
      %v372 = vunpack.c.l.b16 %v283
      %v373 = vunpack.c.l.b16 %v297
      %v374 = vunpack.c.l.b16 %v311
      %v375 = vunpack.c.l.b16 %v325
      %v376 = vunpack.c.l.b16 %v339
      %v377 = vunpack.c.l.b16 %v353
      %v378 = vunpack.c.l.b16 %v367
      %v379 = vpack.c.b16 %v372, %v371
      %v380 = vpack.c.b16 %v374, %v373
      %v381 = vpack.c.b16 %v376, %v375
      %v382 = vpack.c.b16 %v378, %v377
      %vm383 = vcmask 48128
      %v385 = vsel %vm383, %v379, 0
      %v388 = vsel %vm383, %v380, 0
      %v391 = vsel %vm383, %v381, 0
      %v394 = vsel %vm383, %v382, 0
      %vm396 = vcmask 1042432
      %v398 = vsel %vm396, %v370, 0
      %400 = vmatprep.subr.bf16.mxu0 0
      %401 = vmatpush1.bf16.msra.mxu0 %v398
      %402 = vmatprep.subr.bf16.mxu0 0
      %403 = vmatpush1.bf16.msra.mxu0 0
      %404 = vmatprep.subr.bf16.mxu0 0
      %405 = vmatpush1.bf16.msra.mxu0 0
      %406 = vmatprep.subr.bf16.mxu0 0
      %407 = vmatpush1.bf16.msra.mxu0 0
      %408 = vmatprep.subr.bf16.mxu0 0
      %409 = vmatpush1.bf16.msra.mxu0 0
      %410 = vmatprep.subr.bf16.mxu0 0
      %411 = vmatpush1.bf16.msra.mxu0 0
      %412 = vmatprep.subr.bf16.mxu0 0
      %413 = vmatpush1.bf16.msra.mxu0 0
      %414 = vmatprep.subr.bf16.mxu0 0
      %415 = vmatpush1.bf16.msra.mxu0 0
      %416 = vmatprep.subr.bf16.mxu0 0
      %417 = vmatpush1.bf16.msra.mxu0 0
      %418 = vmatprep.subr.bf16.mxu0 0
      %419 = vmatpush1.bf16.msra.mxu0 0
      %420 = vmatprep.subr.bf16.mxu0 0
      %421 = vmatpush1.bf16.msra.mxu0 0
      %422 = vmatprep.subr.bf16.mxu0 0
      %423 = vmatpush1.bf16.msra.mxu0 0
      %424 = vmatprep.subr.bf16.mxu0 0
      %425 = vmatpush1.bf16.msra.mxu0 0
      %426 = vmatprep.subr.bf16.mxu0 0
      %427 = vmatpush1.bf16.msra.mxu0 0
      %428 = vmatprep.subr.bf16.mxu0 0
      %429 = vmatpush1.bf16.msra.mxu0 0
      %430 = vmatprep.subr.bf16.mxu0 0
      %431 = vmatpush1.bf16.msra.mxu0 0
      %432 = vmatprep.mubr.bf16.mxu0 0
      %433 = vmatmul.mubr.bf16.gmra.mrb[0].mxu0 %v385
      %v434 = vpop.f32.mrb[0].mxu0
      %v435 = vadd.f32 0.0, %v434
      %v436 = vpop.f32.mrb[0].mxu0
      %v437 = vpop.f32.mrb[0].mxu0
      %v438 = vadd.f32 0.0, %v437
      %v439 = vpop.f32.mrb[0].mxu0
      %440 = vmatprep.mubr.bf16.mxu0 0
      %441 = vmatmul.mubr.bf16.gmra.mrb[0].mxu0 %v388
      %v442 = vpop.f32.mrb[0].mxu0
      %v443 = vadd.f32 0.0, %v442
      %v444 = vpop.f32.mrb[0].mxu0
      %v445 = vpop.f32.mrb[0].mxu0
      %v446 = vadd.f32 0.0, %v445
      %v447 = vpop.f32.mrb[0].mxu0
      %448 = vmatprep.mubr.bf16.mxu0 0
      %449 = vmatmul.mubr.bf16.gmra.mrb[0].mxu0 %v391
      %v450 = vpop.f32.mrb[0].mxu0
      %v451 = vadd.f32 0.0, %v450
      %v452 = vpop.f32.mrb[0].mxu0
      %v453 = vpop.f32.mrb[0].mxu0
      %v454 = vadd.f32 0.0, %v453
      %v455 = vpop.f32.mrb[0].mxu0
      %456 = vmatprep.mubr.bf16.mxu0 0
      %457 = vmatmul.mubr.bf16.gmra.mrb[0].mxu0 %v394
      %v458 = vpop.f32.mrb[0].mxu0
      %v459 = vadd.f32 0.0, %v458
      %v460 = vpop.f32.mrb[0].mxu0
      %v461 = vpop.f32.mrb[0].mxu0
      %v462 = vadd.f32 0.0, %v461
      %v463 = vpop.f32.mrb[0].mxu0
      %464 = vdwg.mxu0
      %v473 = vunpack.c.l.b16 %v219
      %v474 = vunpack.c.l.b16 %v221
      %v475 = vunpack.c.l.b16 %v223
      %v476 = vunpack.c.l.b16 %v225
      %v477 = vunpack.c.l.b16 %v227
      %v478 = vunpack.c.l.b16 %v229
      %v479 = vunpack.c.l.b16 %v231
      %v480 = vunpack.c.l.b16 %v233
      %v481 = vpack.c.b16 %v474, %v473
      %v482 = vpack.c.b16 %v476, %v475
      %v483 = vpack.c.b16 %v478, %v477
      %v484 = vpack.c.b16 %v480, %v479
      %v486 = vsel %vm383, %v481, 0
      %v489 = vsel %vm383, %v482, 0
      %v492 = vsel %vm383, %v483, 0
      %v495 = vsel %vm383, %v484, 0
      %v498 = vsel %vm396, %v368, 0
      %500 = vmatprep.subr.bf16.mxu0 0
      %501 = vmatpush1.bf16.msra.mxu0 %v498
      %502 = vmatprep.subr.bf16.mxu0 0
      %503 = vmatpush1.bf16.msra.mxu0 0
      %504 = vmatprep.subr.bf16.mxu0 0
      %505 = vmatpush1.bf16.msra.mxu0 0
      %506 = vmatprep.subr.bf16.mxu0 0
      %507 = vmatpush1.bf16.msra.mxu0 0
      %508 = vmatprep.subr.bf16.mxu0 0
      %509 = vmatpush1.bf16.msra.mxu0 0
      %510 = vmatprep.subr.bf16.mxu0 0
      %511 = vmatpush1.bf16.msra.mxu0 0
      %512 = vmatprep.subr.bf16.mxu0 0
      %513 = vmatpush1.bf16.msra.mxu0 0
      %514 = vmatprep.subr.bf16.mxu0 0
      %515 = vmatpush1.bf16.msra.mxu0 0
      %516 = vmatprep.subr.bf16.mxu0 0
      %517 = vmatpush1.bf16.msra.mxu0 0
      %518 = vmatprep.subr.bf16.mxu0 0
      %519 = vmatpush1.bf16.msra.mxu0 0
      %520 = vmatprep.subr.bf16.mxu0 0
      %521 = vmatpush1.bf16.msra.mxu0 0
      %522 = vmatprep.subr.bf16.mxu0 0
      %523 = vmatpush1.bf16.msra.mxu0 0
      %524 = vmatprep.subr.bf16.mxu0 0
      %525 = vmatpush1.bf16.msra.mxu0 0
      %526 = vmatprep.subr.bf16.mxu0 0
      %527 = vmatpush1.bf16.msra.mxu0 0
      %528 = vmatprep.subr.bf16.mxu0 0
      %529 = vmatpush1.bf16.msra.mxu0 0
      %530 = vmatprep.subr.bf16.mxu0 0
      %531 = vmatpush1.bf16.msra.mxu0 0
      %532 = vmatprep.mubr.bf16.mxu0 0
      %533 = vmatmul.mubr.bf16.gmra.mrb[0].mxu0 %v486
      %v534 = vpop.f32.mrb[0].mxu0
      %v535 = vadd.f32 %v435, %v534
      %v536 = vpop.f32.mrb[0].mxu0
      %v537 = vpop.f32.mrb[0].mxu0
      %v538 = vadd.f32 %v438, %v537
      %v539 = vpop.f32.mrb[0].mxu0
      %540 = vmatprep.mubr.bf16.mxu0 0
      %541 = vmatmul.mubr.bf16.gmra.mrb[0].mxu0 %v489
      %v542 = vpop.f32.mrb[0].mxu0
      %v543 = vadd.f32 %v443, %v542
      %v544 = vpop.f32.mrb[0].mxu0
      %v545 = vpop.f32.mrb[0].mxu0
      %v546 = vadd.f32 %v446, %v545
      %v547 = vpop.f32.mrb[0].mxu0
      %548 = vmatprep.mubr.bf16.mxu0 0
      %549 = vmatmul.mubr.bf16.gmra.mrb[0].mxu0 %v492
      %v550 = vpop.f32.mrb[0].mxu0
      %v551 = vadd.f32 %v451, %v550
      %v552 = vpop.f32.mrb[0].mxu0
      %v553 = vpop.f32.mrb[0].mxu0
      %v554 = vadd.f32 %v454, %v553
      %v555 = vpop.f32.mrb[0].mxu0
      %556 = vmatprep.mubr.bf16.mxu0 0
      %557 = vmatmul.mubr.bf16.gmra.mrb[0].mxu0 %v495
      %v558 = vpop.f32.mrb[0].mxu0
      %v559 = vadd.f32 %v459, %v558
      %v560 = vpop.f32.mrb[0].mxu0
      %v561 = vpop.f32.mrb[0].mxu0
      %v562 = vadd.f32 %v462, %v561
      %v563 = vpop.f32.mrb[0].mxu0
      %564 = vdwg.mxu0
      %v566 = vshrl.u32 %v237, 16
      %v568 = vrot.slane %v566, 4
      %v569 = vshll.u32 %v237, 16
      %v571 = vrot.slane %v569, 5
      %v572 = vor.u32 %v568, %v571
      %v573 = vrot.slane %v572, 4
      %v575 = vshll.u32 %v238, 16
      %v577 = vrot.slane %v575, 5
      %v578 = vsel %vm255, %v573, %v577
      %v580 = vshrl.u32 %v239, 16
      %v582 = vrot.slane %v580, 4
      %v583 = vshll.u32 %v239, 16
      %v585 = vrot.slane %v583, 5
      %v586 = vor.u32 %v582, %v585
      %v587 = vrot.slane %v586, 4
      %v589 = vshll.u32 %v240, 16
      %v591 = vrot.slane %v589, 5
      %v592 = vsel %vm255, %v587, %v591
      %v594 = vshrl.u32 %v241, 16
      %v596 = vrot.slane %v594, 4
      %v597 = vshll.u32 %v241, 16
      %v599 = vrot.slane %v597, 5
      %v600 = vor.u32 %v596, %v599
      %v601 = vrot.slane %v600, 4
      %v603 = vshll.u32 %v242, 16
      %v605 = vrot.slane %v603, 5
      %v606 = vsel %vm255, %v601, %v605
      %v608 = vshrl.u32 %v243, 16
      %v610 = vrot.slane %v608, 4
      %v611 = vshll.u32 %v243, 16
      %v613 = vrot.slane %v611, 5
      %v614 = vor.u32 %v610, %v613
      %v615 = vrot.slane %v614, 4
      %v617 = vshll.u32 %v244, 16
      %v619 = vrot.slane %v617, 5
      %v620 = vsel %vm255, %v615, %v619
      %v622 = vshrl.u32 %v245, 16
      %v624 = vrot.slane %v622, 4
      %v625 = vshll.u32 %v245, 16
      %v627 = vrot.slane %v625, 5
      %v628 = vor.u32 %v624, %v627
      %v629 = vrot.slane %v628, 4
      %v631 = vshll.u32 %v246, 16
      %v633 = vrot.slane %v631, 5
      %v634 = vsel %vm255, %v629, %v633
      %v636 = vshrl.u32 %v247, 16
      %v638 = vrot.slane %v636, 4
      %v639 = vshll.u32 %v247, 16
      %v641 = vrot.slane %v639, 5
      %v642 = vor.u32 %v638, %v641
      %v643 = vrot.slane %v642, 4
      %v645 = vshll.u32 %v248, 16
      %v647 = vrot.slane %v645, 5
      %v648 = vsel %vm255, %v643, %v647
      %v650 = vshrl.u32 %v249, 16
      %v652 = vrot.slane %v650, 4
      %v653 = vshll.u32 %v249, 16
      %v655 = vrot.slane %v653, 5
      %v656 = vor.u32 %v652, %v655
      %v657 = vrot.slane %v656, 4
      %v659 = vshll.u32 %v250, 16
      %v661 = vrot.slane %v659, 5
      %v662 = vsel %vm255, %v657, %v661
      %v664 = vshrl.u32 %v251, 16
      %v666 = vrot.slane %v664, 4
      %v667 = vshll.u32 %v251, 16
      %v669 = vrot.slane %v667, 5
      %v670 = vor.u32 %v666, %v669
      %v671 = vrot.slane %v670, 4
      %v673 = vshll.u32 %v252, 16
      %v675 = vrot.slane %v673, 5
      %v676 = vsel %vm255, %v671, %v675
      %s677 = scalar_lea.vmem %s2, 8
      %v678 = vld [vmem:[%s677] sm:$0x7]
      %v687 = vunpack.c.l.b16 %v237
      %v688 = vunpack.c.l.b16 %v239
      %v689 = vunpack.c.l.b16 %v241
      %v690 = vunpack.c.l.b16 %v243
      %v691 = vunpack.c.l.b16 %v245
      %v692 = vunpack.c.l.b16 %v247
      %v693 = vunpack.c.l.b16 %v249
      %v694 = vunpack.c.l.b16 %v251
      %v695 = vpack.c.b16 %v688, %v687
      %v696 = vpack.c.b16 %v690, %v689
      %v697 = vpack.c.b16 %v692, %v691
      %v698 = vpack.c.b16 %v694, %v693
      %v700 = vsel %vm383, %v695, 0
      %v703 = vsel %vm383, %v696, 0
      %v706 = vsel %vm383, %v697, 0
      %v709 = vsel %vm383, %v698, 0
      %v712 = vsel %vm396, %v678, 0
      %714 = vmatprep.subr.bf16.mxu0 0
      %715 = vmatpush1.bf16.msra.mxu0 %v712
      %716 = vmatprep.subr.bf16.mxu0 0
      %717 = vmatpush1.bf16.msra.mxu0 0
      %718 = vmatprep.subr.bf16.mxu0 0
      %719 = vmatpush1.bf16.msra.mxu0 0
      %720 = vmatprep.subr.bf16.mxu0 0
      %721 = vmatpush1.bf16.msra.mxu0 0
      %722 = vmatprep.subr.bf16.mxu0 0
      %723 = vmatpush1.bf16.msra.mxu0 0
      %724 = vmatprep.subr.bf16.mxu0 0
      %725 = vmatpush1.bf16.msra.mxu0 0
      %726 = vmatprep.subr.bf16.mxu0 0
      %727 = vmatpush1.bf16.msra.mxu0 0
      %728 = vmatprep.subr.bf16.mxu0 0
      %729 = vmatpush1.bf16.msra.mxu0 0
      %730 = vmatprep.subr.bf16.mxu0 0
      %731 = vmatpush1.bf16.msra.mxu0 0
      %732 = vmatprep.subr.bf16.mxu0 0
      %733 = vmatpush1.bf16.msra.mxu0 0
      %734 = vmatprep.subr.bf16.mxu0 0
      %735 = vmatpush1.bf16.msra.mxu0 0
      %736 = vmatprep.subr.bf16.mxu0 0
      %737 = vmatpush1.bf16.msra.mxu0 0
      %738 = vmatprep.subr.bf16.mxu0 0
      %739 = vmatpush1.bf16.msra.mxu0 0
      %740 = vmatprep.subr.bf16.mxu0 0
      %741 = vmatpush1.bf16.msra.mxu0 0
      %742 = vmatprep.subr.bf16.mxu0 0
      %743 = vmatpush1.bf16.msra.mxu0 0
      %744 = vmatprep.subr.bf16.mxu0 0
      %745 = vmatpush1.bf16.msra.mxu0 0
      %746 = vmatprep.mubr.bf16.mxu0 0
      %747 = vmatmul.mubr.bf16.gmra.mrb[0].mxu0 %v700
      %v748 = vpop.f32.mrb[0].mxu0
      %v749 = vadd.f32 0.0, %v748
      %v750 = vpop.f32.mrb[0].mxu0
      %v751 = vpop.f32.mrb[0].mxu0
      %v752 = vadd.f32 0.0, %v751
      %v753 = vpop.f32.mrb[0].mxu0
      %754 = vmatprep.mubr.bf16.mxu0 0
      %755 = vmatmul.mubr.bf16.gmra.mrb[0].mxu0 %v703
      %v756 = vpop.f32.mrb[0].mxu0
      %v757 = vadd.f32 0.0, %v756
      %v758 = vpop.f32.mrb[0].mxu0
      %v759 = vpop.f32.mrb[0].mxu0
      %v760 = vadd.f32 0.0, %v759
      %v761 = vpop.f32.mrb[0].mxu0
      %762 = vmatprep.mubr.bf16.mxu0 0
      %763 = vmatmul.mubr.bf16.gmra.mrb[0].mxu0 %v706
      %v764 = vpop.f32.mrb[0].mxu0
      %v765 = vadd.f32 0.0, %v764
      %v766 = vpop.f32.mrb[0].mxu0
      %v767 = vpop.f32.mrb[0].mxu0
      %v768 = vadd.f32 0.0, %v767
      %v769 = vpop.f32.mrb[0].mxu0
      %770 = vmatprep.mubr.bf16.mxu0 0
      %771 = vmatmul.mubr.bf16.gmra.mrb[0].mxu0 %v709
      %v772 = vpop.f32.mrb[0].mxu0
      %v773 = vadd.f32 0.0, %v772
      %v774 = vpop.f32.mrb[0].mxu0
      %v775 = vpop.f32.mrb[0].mxu0
      %v776 = vadd.f32 0.0, %v775
      %v777 = vpop.f32.mrb[0].mxu0
      %778 = vdwg.mxu0
      %v779 = vadd.f32 %v535, %v749
      %v780 = vadd.f32 %v538, %v752
      %v781 = vadd.f32 %v543, %v757
      %v782 = vadd.f32 %v546, %v760
      %v783 = vadd.f32 %v551, %v765
      %v784 = vadd.f32 %v554, %v768
      %v785 = vadd.f32 %v559, %v773
      %v786 = vadd.f32 %v562, %v776
      %s787 = scalar_lea.vmem %s2, 12
      %v788 = vld [vmem:[%s787] sm:$0x7]
      %v789 = vunpack.c.l.b16 %v578
      %v790 = vunpack.c.l.b16 %v592
      %v791 = vunpack.c.l.b16 %v606
      %v792 = vunpack.c.l.b16 %v620
      %v793 = vunpack.c.l.b16 %v634
      %v794 = vunpack.c.l.b16 %v648
      %v795 = vunpack.c.l.b16 %v662
      %v796 = vunpack.c.l.b16 %v676
      %v797 = vpack.c.b16 %v790, %v789
      %v798 = vpack.c.b16 %v792, %v791
      %v799 = vpack.c.b16 %v794, %v793
      %v800 = vpack.c.b16 %v796, %v795
      %v802 = vsel %vm383, %v797, 0
      %v805 = vsel %vm383, %v798, 0
      %v808 = vsel %vm383, %v799, 0
      %v811 = vsel %vm383, %v800, 0
      %v814 = vsel %vm396, %v788, 0
      %816 = vmatprep.subr.bf16.mxu0 0
      %817 = vmatpush1.bf16.msra.mxu0 %v814
      %818 = vmatprep.subr.bf16.mxu0 0
      %819 = vmatpush1.bf16.msra.mxu0 0
      %820 = vmatprep.subr.bf16.mxu0 0
      %821 = vmatpush1.bf16.msra.mxu0 0
      %822 = vmatprep.subr.bf16.mxu0 0
      %823 = vmatpush1.bf16.msra.mxu0 0
      %824 = vmatprep.subr.bf16.mxu0 0
      %825 = vmatpush1.bf16.msra.mxu0 0
      %826 = vmatprep.subr.bf16.mxu0 0
      %827 = vmatpush1.bf16.msra.mxu0 0
      %828 = vmatprep.subr.bf16.mxu0 0
      %829 = vmatpush1.bf16.msra.mxu0 0
      %830 = vmatprep.subr.bf16.mxu0 0
      %831 = vmatpush1.bf16.msra.mxu0 0
      %832 = vmatprep.subr.bf16.mxu0 0
      %833 = vmatpush1.bf16.msra.mxu0 0
      %834 = vmatprep.subr.bf16.mxu0 0
      %835 = vmatpush1.bf16.msra.mxu0 0
      %836 = vmatprep.subr.bf16.mxu0 0
      %837 = vmatpush1.bf16.msra.mxu0 0
      %838 = vmatprep.subr.bf16.mxu0 0
      %839 = vmatpush1.bf16.msra.mxu0 0
      %840 = vmatprep.subr.bf16.mxu0 0
      %841 = vmatpush1.bf16.msra.mxu0 0
      %842 = vmatprep.subr.bf16.mxu0 0
      %843 = vmatpush1.bf16.msra.mxu0 0
      %844 = vmatprep.subr.bf16.mxu0 0
      %845 = vmatpush1.bf16.msra.mxu0 0
      %846 = vmatprep.subr.bf16.mxu0 0
      %847 = vmatpush1.bf16.msra.mxu0 0
      %848 = vmatprep.mubr.bf16.mxu0 0
      %849 = vmatmul.mubr.bf16.gmra.mrb[0].mxu0 %v802
      %v850 = vpop.f32.mrb[0].mxu0
      %v851 = vadd.f32 0.0, %v850
      %v852 = vpop.f32.mrb[0].mxu0
      %v853 = vpop.f32.mrb[0].mxu0
      %v854 = vadd.f32 0.0, %v853
      %v855 = vpop.f32.mrb[0].mxu0
      %856 = vmatprep.mubr.bf16.mxu0 0
      %857 = vmatmul.mubr.bf16.gmra.mrb[0].mxu0 %v805
      %v858 = vpop.f32.mrb[0].mxu0
      %v859 = vadd.f32 0.0, %v858
      %v860 = vpop.f32.mrb[0].mxu0
      %v861 = vpop.f32.mrb[0].mxu0
      %v862 = vadd.f32 0.0, %v861
      %v863 = vpop.f32.mrb[0].mxu0
      %864 = vmatprep.mubr.bf16.mxu0 0
      %865 = vmatmul.mubr.bf16.gmra.mrb[0].mxu0 %v808
      %v866 = vpop.f32.mrb[0].mxu0
      %v867 = vadd.f32 0.0, %v866
      %v868 = vpop.f32.mrb[0].mxu0
      %v869 = vpop.f32.mrb[0].mxu0
      %v870 = vadd.f32 0.0, %v869
      %v871 = vpop.f32.mrb[0].mxu0
      %872 = vmatprep.mubr.bf16.mxu0 0
      %873 = vmatmul.mubr.bf16.gmra.mrb[0].mxu0 %v811
      %v874 = vpop.f32.mrb[0].mxu0
      %v875 = vadd.f32 0.0, %v874
      %v876 = vpop.f32.mrb[0].mxu0
      %v877 = vpop.f32.mrb[0].mxu0
      %v878 = vadd.f32 0.0, %v877
      %v879 = vpop.f32.mrb[0].mxu0
      %880 = vdwg.mxu0
      %v881 = vadd.f32 %v779, %v851
      %v882 = vadd.f32 %v780, %v854
      %v883 = vadd.f32 %v781, %v859
      %v884 = vadd.f32 %v782, %v862
      %v885 = vadd.f32 %v783, %v867
      %v886 = vadd.f32 %v784, %v870
      %v887 = vadd.f32 %v785, %v875
      %v888 = vadd.f32 %v786, %v878
      %v890 = vshrl.u32 %v235, 16
      %v892 = vrot.slane %v890, 4
      %v893 = vshll.u32 %v235, 16
      %v895 = vrot.slane %v893, 5
      %v896 = vor.u32 %v892, %v895
      %v897 = vrot.slane %v896, 4
      %v899 = vshll.u32 %v236, 16
      %v901 = vrot.slane %v899, 5
      %v902 = vsel %vm255, %v897, %v901
      %s903 = scalar_lea.vmem %s2, 16
      %v904 = vld [vmem:[%s903] sm:$0x7]
      %v906 = vunpack.c.l.b16 %v235
      %v907 = vpack.c.b16 %v475, %v474
      %v908 = vpack.c.b16 %v477, %v476
      %v909 = vpack.c.b16 %v479, %v478
      %v910 = vpack.c.b16 %v906, %v480
      %v912 = vsel %vm383, %v907, 0
      %v915 = vsel %vm383, %v908, 0
      %v918 = vsel %vm383, %v909, 0
      %v921 = vsel %vm383, %v910, 0
      %v924 = vsel %vm396, %v904, 0
      %926 = vmatprep.subr.bf16.mxu0 0
      %927 = vmatpush1.bf16.msra.mxu0 %v924
      %928 = vmatprep.subr.bf16.mxu0 0
      %929 = vmatpush1.bf16.msra.mxu0 0
      %930 = vmatprep.subr.bf16.mxu0 0
      %931 = vmatpush1.bf16.msra.mxu0 0
      %932 = vmatprep.subr.bf16.mxu0 0
      %933 = vmatpush1.bf16.msra.mxu0 0
      %934 = vmatprep.subr.bf16.mxu0 0
      %935 = vmatpush1.bf16.msra.mxu0 0
      %936 = vmatprep.subr.bf16.mxu0 0
      %937 = vmatpush1.bf16.msra.mxu0 0
      %938 = vmatprep.subr.bf16.mxu0 0
      %939 = vmatpush1.bf16.msra.mxu0 0
      %940 = vmatprep.subr.bf16.mxu0 0
      %941 = vmatpush1.bf16.msra.mxu0 0
      %942 = vmatprep.subr.bf16.mxu0 0
      %943 = vmatpush1.bf16.msra.mxu0 0
      %944 = vmatprep.subr.bf16.mxu0 0
      %945 = vmatpush1.bf16.msra.mxu0 0
      %946 = vmatprep.subr.bf16.mxu0 0
      %947 = vmatpush1.bf16.msra.mxu0 0
      %948 = vmatprep.subr.bf16.mxu0 0
      %949 = vmatpush1.bf16.msra.mxu0 0
      %950 = vmatprep.subr.bf16.mxu0 0
      %951 = vmatpush1.bf16.msra.mxu0 0
      %952 = vmatprep.subr.bf16.mxu0 0
      %953 = vmatpush1.bf16.msra.mxu0 0
      %954 = vmatprep.subr.bf16.mxu0 0
      %955 = vmatpush1.bf16.msra.mxu0 0
      %956 = vmatprep.subr.bf16.mxu0 0
      %957 = vmatpush1.bf16.msra.mxu0 0
      %958 = vmatprep.mubr.bf16.mxu0 0
      %959 = vmatmul.mubr.bf16.gmra.mrb[0].mxu0 %v912
      %v960 = vpop.f32.mrb[0].mxu0
      %v961 = vadd.f32 0.0, %v960
      %v962 = vpop.f32.mrb[0].mxu0
      %v963 = vpop.f32.mrb[0].mxu0
      %v964 = vadd.f32 0.0, %v963
      %v965 = vpop.f32.mrb[0].mxu0
      %966 = vmatprep.mubr.bf16.mxu0 0
      %967 = vmatmul.mubr.bf16.gmra.mrb[0].mxu0 %v915
      %v968 = vpop.f32.mrb[0].mxu0
      %v969 = vadd.f32 0.0, %v968
      %v970 = vpop.f32.mrb[0].mxu0
      %v971 = vpop.f32.mrb[0].mxu0
      %v972 = vadd.f32 0.0, %v971
      %v973 = vpop.f32.mrb[0].mxu0
      %974 = vmatprep.mubr.bf16.mxu0 0
      %975 = vmatmul.mubr.bf16.gmra.mrb[0].mxu0 %v918
      %v976 = vpop.f32.mrb[0].mxu0
      %v977 = vadd.f32 0.0, %v976
      %v978 = vpop.f32.mrb[0].mxu0
      %v979 = vpop.f32.mrb[0].mxu0
      %v980 = vadd.f32 0.0, %v979
      %v981 = vpop.f32.mrb[0].mxu0
      %982 = vmatprep.mubr.bf16.mxu0 0
      %983 = vmatmul.mubr.bf16.gmra.mrb[0].mxu0 %v921
      %v984 = vpop.f32.mrb[0].mxu0
      %v985 = vadd.f32 0.0, %v984
      %v986 = vpop.f32.mrb[0].mxu0
      %v987 = vpop.f32.mrb[0].mxu0
      %v988 = vadd.f32 0.0, %v987
      %v989 = vpop.f32.mrb[0].mxu0
      %990 = vdwg.mxu0
      %v991 = vadd.f32 %v881, %v961
      %v992 = vadd.f32 %v882, %v964
      %v993 = vadd.f32 %v883, %v969
      %v994 = vadd.f32 %v884, %v972
      %v995 = vadd.f32 %v885, %v977
      %v996 = vadd.f32 %v886, %v980
      %v997 = vadd.f32 %v887, %v985
      %v998 = vadd.f32 %v888, %v988
      %s999 = scalar_lea.vmem %s2, 20
      %v1000 = vld [vmem:[%s999] sm:$0x7]
      %v1001 = vunpack.c.l.b16 %v902
      %v1002 = vpack.c.b16 %v373, %v372
      %v1003 = vpack.c.b16 %v375, %v374
      %v1004 = vpack.c.b16 %v377, %v376
      %v1005 = vpack.c.b16 %v1001, %v378
      %v1007 = vsel %vm383, %v1002, 0
      %v1010 = vsel %vm383, %v1003, 0
      %v1013 = vsel %vm383, %v1004, 0
      %v1016 = vsel %vm383, %v1005, 0
      %v1019 = vsel %vm396, %v1000, 0
      %1021 = vmatprep.subr.bf16.mxu0 0
      %1022 = vmatpush1.bf16.msra.mxu0 %v1019
      %1023 = vmatprep.subr.bf16.mxu0 0
      %1024 = vmatpush1.bf16.msra.mxu0 0
      %1025 = vmatprep.subr.bf16.mxu0 0
      %1026 = vmatpush1.bf16.msra.mxu0 0
      %1027 = vmatprep.subr.bf16.mxu0 0
      %1028 = vmatpush1.bf16.msra.mxu0 0
      %1029 = vmatprep.subr.bf16.mxu0 0
      %1030 = vmatpush1.bf16.msra.mxu0 0
      %1031 = vmatprep.subr.bf16.mxu0 0
      %1032 = vmatpush1.bf16.msra.mxu0 0
      %1033 = vmatprep.subr.bf16.mxu0 0
      %1034 = vmatpush1.bf16.msra.mxu0 0
      %1035 = vmatprep.subr.bf16.mxu0 0
      %1036 = vmatpush1.bf16.msra.mxu0 0
      %1037 = vmatprep.subr.bf16.mxu0 0
      %1038 = vmatpush1.bf16.msra.mxu0 0
      %1039 = vmatprep.subr.bf16.mxu0 0
      %1040 = vmatpush1.bf16.msra.mxu0 0
      %1041 = vmatprep.subr.bf16.mxu0 0
      %1042 = vmatpush1.bf16.msra.mxu0 0
      %1043 = vmatprep.subr.bf16.mxu0 0
      %1044 = vmatpush1.bf16.msra.mxu0 0
      %1045 = vmatprep.subr.bf16.mxu0 0
      %1046 = vmatpush1.bf16.msra.mxu0 0
      %1047 = vmatprep.subr.bf16.mxu0 0
      %1048 = vmatpush1.bf16.msra.mxu0 0
      %1049 = vmatprep.subr.bf16.mxu0 0
      %1050 = vmatpush1.bf16.msra.mxu0 0
      %1051 = vmatprep.subr.bf16.mxu0 0
      %1052 = vmatpush1.bf16.msra.mxu0 0
      %1053 = vmatprep.mubr.bf16.mxu0 0
      %1054 = vmatmul.mubr.bf16.gmra.mrb[0].mxu0 %v1007
      %v1055 = vpop.f32.mrb[0].mxu0
      %v1056 = vadd.f32 0.0, %v1055
      %v1057 = vpop.f32.mrb[0].mxu0
      %v1058 = vpop.f32.mrb[0].mxu0
      %v1059 = vadd.f32 0.0, %v1058
      %v1060 = vpop.f32.mrb[0].mxu0
      %1061 = vmatprep.mubr.bf16.mxu0 0
      %1062 = vmatmul.mubr.bf16.gmra.mrb[0].mxu0 %v1010
      %v1063 = vpop.f32.mrb[0].mxu0
      %v1064 = vadd.f32 0.0, %v1063
      %v1065 = vpop.f32.mrb[0].mxu0
      %v1066 = vpop.f32.mrb[0].mxu0
      %v1067 = vadd.f32 0.0, %v1066
      %v1068 = vpop.f32.mrb[0].mxu0
      %1069 = vmatprep.mubr.bf16.mxu0 0
      %1070 = vmatmul.mubr.bf16.gmra.mrb[0].mxu0 %v1013
      %v1071 = vpop.f32.mrb[0].mxu0
      %v1072 = vadd.f32 0.0, %v1071
      %v1073 = vpop.f32.mrb[0].mxu0
      %v1074 = vpop.f32.mrb[0].mxu0
      %v1075 = vadd.f32 0.0, %v1074
      %v1076 = vpop.f32.mrb[0].mxu0
      %1077 = vmatprep.mubr.bf16.mxu0 0
      %1078 = vmatmul.mubr.bf16.gmra.mrb[0].mxu0 %v1016
      %v1079 = vpop.f32.mrb[0].mxu0
      %v1080 = vadd.f32 0.0, %v1079
      %v1081 = vpop.f32.mrb[0].mxu0
      %v1082 = vpop.f32.mrb[0].mxu0
      %v1083 = vadd.f32 0.0, %v1082
      %v1084 = vpop.f32.mrb[0].mxu0
      %1085 = vdwg.mxu0
      %v1086 = vadd.f32 %v991, %v1056
      %v1087 = vadd.f32 %v992, %v1059
      %v1088 = vadd.f32 %v993, %v1064
      %v1089 = vadd.f32 %v994, %v1067
      %v1090 = vadd.f32 %v995, %v1072
      %v1091 = vadd.f32 %v996, %v1075
      %v1092 = vadd.f32 %v997, %v1080
      %v1093 = vadd.f32 %v998, %v1083
      %v1094 = vld [vmem:[%s3] sm:$0x1]
      %v1096 = vlaneseq
      %v1097 = vshrl.u32 %v1096, 7
      %v1098 = vsub.s32 0, %v1097
      %v1099 = vrot.slane %v1094, %v1098
      %v1101 = vadd.f32 %v1086, %v1099
      %v1102 = vadd.f32 %v1087, %v1099
      %v1103 = vadd.f32 %v1088, %v1099
      %v1104 = vadd.f32 %v1089, %v1099
      %v1105 = vadd.f32 %v1090, %v1099
      %v1106 = vadd.f32 %v1091, %v1099
      %v1107 = vadd.f32 %v1092, %v1099
      %v1108 = vadd.f32 %v1093, %v1099
      %v1109 = vmul.f32 %v1101, 0.1
      %v1110 = vmul.f32 %v1102, 0.1
      %v1111 = vmul.f32 %v1103, 0.1
      %v1112 = vmul.f32 %v1104, 0.1
      %v1113 = vmul.f32 %v1105, 0.1
      %v1114 = vmul.f32 %v1106, 0.1
      %v1115 = vmul.f32 %v1107, 0.1
      %v1116 = vmul.f32 %v1108, 0.1
      %v1117 = vmax.f32 %v1101, %v1109
      %v1118 = vmax.f32 %v1102, %v1110
      %v1119 = vmax.f32 %v1103, %v1111
      %v1120 = vmax.f32 %v1104, %v1112
      %v1121 = vmax.f32 %v1105, %v1113
      %v1122 = vmax.f32 %v1106, %v1114
      %v1123 = vmax.f32 %v1107, %v1115
      %v1124 = vmax.f32 %v1108, %v1116
      %v1125 = vpack.c.bf16 %v1118, %v1117
      %v1126 = vpack.c.bf16 %v1120, %v1119
      %v1127 = vpack.c.bf16 %v1122, %v1121
      %v1128 = vpack.c.bf16 %v1124, %v1123
      %v1133 = vunpack.c.l.b16 %v1125
      %v1134 = vunpack.c.h.b16 %v1125
      %v1135 = vunpack.c.l.b16 %v1126
      %v1136 = vunpack.c.h.b16 %v1126
      %v1137 = vunpack.c.l.b16 %v1127
      %v1138 = vunpack.c.h.b16 %v1127
      %v1139 = vunpack.c.l.b16 %v1128
      %v1140 = vunpack.c.h.b16 %v1128
      %v1141 = vpack.c.b16 %v1133, %v1133
      %v1142 = vpack.c.b16 %v1134, %v1134
      %v1143 = vpack.c.b16 %v1135, %v1135
      %v1144 = vpack.c.b16 %v1136, %v1136
      %v1145 = vpack.c.b16 %v1137, %v1137
      %v1146 = vpack.c.b16 %v1138, %v1138
      %v1147 = vpack.c.b16 %v1139, %v1139
      %v1148 = vpack.c.b16 %v1140, %v1140
      %1157 = vst [vmem:[%s217] sm:$0xf] %v1141
      %1158 = vst [vmem:[%s217 + $0x4] sm:$0xf] %v1142
      %1159 = vst [vmem:[%s217 + $0x8] sm:$0xf] %v1143
      %1160 = vst [vmem:[%s217 + $0xc] sm:$0xf] %v1144
      %1161 = vst [vmem:[%s217 + $0x10] sm:$0xf] %v1145
      %1162 = vst [vmem:[%s217 + $0x14] sm:$0xf] %v1146
      %1163 = vst [vmem:[%s217 + $0x18] sm:$0xf] %v1147
      %1164 = vst [vmem:[%s217 + $0x1c] sm:$0xf] %v1148
      %p1165 = scmp.lt.s32.totalorder %s15, 1
      %s1166 = scalar_select %p1165, %s15, 1
      %s1167 = smul.addr %s1166, 8
      %s1168 = smul.addr %s1167, 4
      %s1169 = scalar_lea.vmem %s4, %s1168
      // Predicated region
      $region37: #{shared_conv_base_forward.3} parent=35 // pred_check
        %p1170 = pneg %p127
      $region38: #{shared_conv_base_forward.3} parent=35 // pred_check_branch
        %1172 = sbr.rel (%p1170) target = $region40
      $region39: #{shared_conv_base_forward.3} parent=35 // pred_region
        _
      $region40: #{shared_conv_base_forward.3} parent=35 // pred_fallthru
        _
    $region36: #{shared_conv_base_forward.3} parent=5 // pred_fallthru
      _
    %p1173 = scmp.le.s32.totalorder 2, %s10
    // Predicated region
    $region41: #{shared_conv_base_forward.3} parent=5 // pred_check
      %p1174 = pneg %p1173
    $region42: #{shared_conv_base_forward.3} parent=5 // pred_check_branch
      %1176 = sbr.rel (%p1174) target = $region44
    $region43: #{shared_conv_base_forward.3} parent=5 // pred_region
      %s1177 = ssub.s32 %s10, 2
      // Predicated region
      $region45: #{shared_conv_base_forward.3} parent=43 // pred_check
        %p1178 = pneg %p133
      $region46: #{shared_conv_base_forward.3} parent=43 // pred_check_branch
        %1180 = sbr.rel (%p1178) target = $region48
      $region47: #{shared_conv_base_forward.3} parent=43 // pred_region
        %p1181 = scmp.lt.s32.totalorder %s16, 1
        %s1182 = scalar_select %p1181, %s16, 1
        %s1183 = smul.addr %s1182, 8
        %s1184 = smul.addr %s1183, 4
        %s1185 = scalar_lea.vmem %s4, %s1184
      $region48: #{shared_conv_base_forward.3} parent=43 // pred_fallthru
        _
    $region44: #{shared_conv_base_forward.3} parent=5 // pred_fallthru
      _
  $region6: #{shared_conv_base_forward.3} parent=0 // loop_footer
    %s14 = sadd.s32 1, %s10
  $region7: #{shared_conv_base_forward.3} parent=0 // loop_footer_branch
    %9 = sbr.rel target = $region3
  $region8: #{shared_conv_base_forward.3} parent=0 // loop_exit
    _

// kernel: shared_conv_base_forward.4
$region0: #{shared_conv_base_forward.4}
  #allocation0 [shape = 'u32[]', space=smem, size = 0x4, offset = 0x4, fixed_abs, tag = 'smem constant byte address 0x4 - core index']
  #allocation1 [shape = 'u32[144,128]{1,0:T(1,128)}', space=vmem, size = 0x12000, scoped, tag = 'internal scratch']
  %s0 = inlined_call_operand.vmem [shape: bf16[2,5,5,256], index: 0, kind: input, shape index: {}]
  %s1 = inlined_call_operand.vmem [shape: bf16[2,4,5,256], index: 1, kind: input, shape index: {}]
  %s2 = inlined_call_operand.vmem [shape: bf16[6,256,128], index: 2, kind: input, shape index: {}]
  %s3 = inlined_call_operand.vmem [shape: f32[1,128], index: 3, kind: input, shape index: {}]
  %s4 = inlined_call_operand.vmem [shape: bf16[2,16,128], index: 4, kind: output, shape index: {}]
  %s5 = sld [smem:[#allocation0]]
  $region49: #{shared_conv_base_forward.4} parent=0
    _
  %s7 = ssub.s32 1, %s5
  %s8 = scalar_select 0, %s7, %s5
  loop: start=0, step=1, limit=4
  $region2: #{shared_conv_base_forward.4} parent=0 // loop_pre_header
    _
  $region3: #{shared_conv_base_forward.4} parent=0 // loop_header
    %s10 = sphi 0, %s14
    %p11 = scmp.ge.s32.totalorder %s10, 4
    %s20 = sphi 0, %s22
    %s23 = sphi 0, %s20
    %s24 = sphi 0, %s23
    %s40 = sphi 0, %s24
    %s46 = sphi 0, %s48
    %s49 = sphi 0, %s46
    %s50 = sphi 0, %s49
    %s66 = sphi 0, %s50
    %s70 = sphi 0, %s70
    %s72 = sphi 0, %s70
    %s73 = sphi 0, %s72
    %s87 = sphi 0, %s73
    %s91 = sphi 0, %s91
    %s93 = sphi 0, %s91
    %s94 = sphi 0, %s93
    %s108 = sphi 0, %s94
    %s114 = sphi 0, %s116
    %s117 = sphi 0, %s114
    %s118 = sphi 0, %s117
    %s134 = sphi 0, %s118
  $region4: #{shared_conv_base_forward.4} parent=0 // loop_header_branch
    %13 = sbr.rel (%p11) target = $region8
  $region5: #{shared_conv_base_forward.4} parent=0 // loop_body
    %s15 = ssub.s32 %s10, 1
    %s16 = ssub.s32 %s10, 2
    %s17 = sadd.s32 %s10, 1
    %s18 = ssub.s32 %s10, %s17
    %p19 = scmp.eq.s32.totalorder %s18, 0
    %s21 = sadd.s32 %s20, 1
    %s22 = scalar_select %p19, %s20, %s21
    %p25 = pneg %p19
    %p26 = scmp.eq.s32.totalorder %s10, 1
    %p27 = por %p25, %p26
    %p28 = scmp.ne.s32.totalorder %s20, %s23
    %p29 = scmp.eq.s32.totalorder %s10, 0
    %p30 = por %p28, %p29
    %p31 = scmp.ne.s32.totalorder %s20, %s23
    %p32 = scmp.eq.s32.totalorder %s15, 1
    %p33 = por %p31, %p32
    %p34 = scmp.ne.s32.totalorder %s23, %s24
    %p35 = scmp.eq.s32.totalorder %s15, 0
    %p36 = por %p34, %p35
    %p37 = scmp.ne.s32.totalorder %s23, %s24
    %p38 = scmp.eq.s32.totalorder %s16, 1
    %p39 = por %p37, %p38
    %p41 = scmp.ne.s32.totalorder %s24, %s40
    %p42 = scmp.eq.s32.totalorder %s16, 0
    %p43 = por %p41, %p42
    %s44 = ssub.s32 %s10, %s17
    %p45 = scmp.eq.s32.totalorder %s44, 0
    %s47 = sadd.s32 %s46, 1
    %s48 = scalar_select %p45, %s46, %s47
    %p51 = pneg %p45
    %p52 = scmp.eq.s32.totalorder %s10, 1
    %p53 = por %p51, %p52
    %p54 = scmp.ne.s32.totalorder %s46, %s49
    %p55 = scmp.eq.s32.totalorder %s10, 0
    %p56 = por %p54, %p55
    %p57 = scmp.ne.s32.totalorder %s46, %s49
    %p58 = scmp.eq.s32.totalorder %s15, 1
    %p59 = por %p57, %p58
    %p60 = scmp.ne.s32.totalorder %s49, %s50
    %p61 = scmp.eq.s32.totalorder %s15, 0
    %p62 = por %p60, %p61
    %p63 = scmp.ne.s32.totalorder %s49, %s50
    %p64 = scmp.eq.s32.totalorder %s16, 1
    %p65 = por %p63, %p64
    %p67 = scmp.ne.s32.totalorder %s50, %s66
    %p68 = scmp.eq.s32.totalorder %s16, 0
    %p69 = por %p67, %p68
    %s71 = sadd.s32 %s70, 1
    %p74 = scmp.eq.s32.totalorder %s10, 1
    %p75 = scmp.ne.s32.totalorder %s70, %s72
    %p76 = scmp.eq.s32.totalorder %s10, 0
    %p77 = por %p75, %p76
    %p78 = scmp.ne.s32.totalorder %s70, %s72
    %p79 = scmp.eq.s32.totalorder %s15, 1
    %p80 = por %p78, %p79
    %p81 = scmp.ne.s32.totalorder %s72, %s73
    %p82 = scmp.eq.s32.totalorder %s15, 0
    %p83 = por %p81, %p82
    %p84 = scmp.ne.s32.totalorder %s72, %s73
    %p85 = scmp.eq.s32.totalorder %s16, 1
    %p86 = por %p84, %p85
    %p88 = scmp.ne.s32.totalorder %s73, %s87
    %p89 = scmp.eq.s32.totalorder %s16, 0
    %p90 = por %p88, %p89
    %s92 = sadd.s32 %s91, 1
    %p95 = scmp.eq.s32.totalorder %s10, 1
    %p96 = scmp.ne.s32.totalorder %s91, %s93
    %p97 = scmp.eq.s32.totalorder %s10, 0
    %p98 = por %p96, %p97
    %p99 = scmp.ne.s32.totalorder %s91, %s93
    %p100 = scmp.eq.s32.totalorder %s15, 1
    %p101 = por %p99, %p100
    %p102 = scmp.ne.s32.totalorder %s93, %s94
    %p103 = scmp.eq.s32.totalorder %s15, 0
    %p104 = por %p102, %p103
    %p105 = scmp.ne.s32.totalorder %s93, %s94
    %p106 = scmp.eq.s32.totalorder %s16, 1
    %p107 = por %p105, %p106
    %p109 = scmp.ne.s32.totalorder %s94, %s108
    %p110 = scmp.eq.s32.totalorder %s16, 0
    %p111 = por %p109, %p110
    %s112 = ssub.s32 %s10, %s17
    %p113 = scmp.eq.s32.totalorder %s112, 0
    %s115 = sadd.s32 %s114, 1
    %s116 = scalar_select %p113, %s114, %s115
    %p119 = pneg %p113
    %p120 = scmp.eq.s32.totalorder %s10, 1
    %p121 = por %p119, %p120
    %p122 = scmp.ne.s32.totalorder %s114, %s117
    %p123 = scmp.eq.s32.totalorder %s10, 0
    %p124 = por %p122, %p123
    %p125 = scmp.ne.s32.totalorder %s114, %s117
    %p126 = scmp.eq.s32.totalorder %s15, 1
    %p127 = por %p125, %p126
    %p128 = scmp.ne.s32.totalorder %s117, %s118
    %p129 = scmp.eq.s32.totalorder %s15, 0
    %p130 = por %p128, %p129
    %p131 = scmp.ne.s32.totalorder %s117, %s118
    %p132 = scmp.eq.s32.totalorder %s16, 1
    %p133 = por %p131, %p132
    %p135 = scmp.ne.s32.totalorder %s118, %s134
    %p136 = scmp.eq.s32.totalorder %s16, 0
    %p137 = por %p135, %p136
    %p138 = scmp.le.s32.totalorder 1, %s10
    %p139 = scmp.lt.s32.totalorder %s10, 3
    %p140 = pnand %p138, %p139
    %p141 = pneg %p140
    // Predicated region
    $region9: #{shared_conv_base_forward.4} parent=5 // pred_check
      _
    $region10: #{shared_conv_base_forward.4} parent=5 // pred_check_branch
      %143 = sbr.rel (%p140) target = $region12
    $region11: #{shared_conv_base_forward.4} parent=5 // pred_region
      %s144 = ssub.s32 %s10, 1
      // Predicated region
      $region13: #{shared_conv_base_forward.4} parent=11 // pred_check
        %p145 = pneg %p83
      $region14: #{shared_conv_base_forward.4} parent=11 // pred_check_branch
        %147 = sbr.rel (%p145) target = $region16
      $region15: #{shared_conv_base_forward.4} parent=11 // pred_region
        _
      $region16: #{shared_conv_base_forward.4} parent=11 // pred_fallthru
        _
      // Predicated region
      $region17: #{shared_conv_base_forward.4} parent=11 // pred_check
        %p148 = pneg %p104
      $region18: #{shared_conv_base_forward.4} parent=11 // pred_check_branch
        %150 = sbr.rel (%p148) target = $region20
      $region19: #{shared_conv_base_forward.4} parent=11 // pred_region
        _
      $region20: #{shared_conv_base_forward.4} parent=11 // pred_fallthru
        _
    $region12: #{shared_conv_base_forward.4} parent=5 // pred_fallthru
      _
    %p151 = scmp.lt.s32.totalorder %s10, 2
    // Predicated region
    $region21: #{shared_conv_base_forward.4} parent=5 // pred_check
      %p152 = pneg %p151
    $region22: #{shared_conv_base_forward.4} parent=5 // pred_check_branch
      %154 = sbr.rel (%p152) target = $region24
    $region23: #{shared_conv_base_forward.4} parent=5 // pred_region
      // Predicated region
      $region25: #{shared_conv_base_forward.4} parent=23 // pred_check
        %p155 = pneg %p30
      $region26: #{shared_conv_base_forward.4} parent=23 // pred_check_branch
        %157 = sbr.rel (%p155) target = $region28
      $region27: #{shared_conv_base_forward.4} parent=23 // pred_region
        %p158 = scmp.lt.s32.totalorder %s10, 1
        %s159 = scalar_select %p158, %s10, 1
        %s160 = smul.addr %s159, 10
        %s161 = smul.addr %s160, 4
        %s162 = scalar_lea.vmem %s0, %s161
      $region28: #{shared_conv_base_forward.4} parent=23 // pred_fallthru
        _
      // Predicated region
      $region29: #{shared_conv_base_forward.4} parent=23 // pred_check
        %p163 = pneg %p56
      $region30: #{shared_conv_base_forward.4} parent=23 // pred_check_branch
        %165 = sbr.rel (%p163) target = $region32
      $region31: #{shared_conv_base_forward.4} parent=23 // pred_region
        %p166 = scmp.lt.s32.totalorder %s10, 1
        %s167 = scalar_select %p166, %s10, 1
        %s168 = smul.addr %s167, 8
        %s169 = smul.addr %s168, 4
        %s170 = scalar_lea.vmem %s1, %s169
      $region32: #{shared_conv_base_forward.4} parent=23 // pred_fallthru
        _
    $region24: #{shared_conv_base_forward.4} parent=5 // pred_fallthru
      _
    %p171 = scmp.le.s32.totalorder 1, %s10
    %p172 = scmp.lt.s32.totalorder %s10, 3
    %p173 = pnand %p171, %p172
    %p174 = pneg %p173
    // Predicated region
    $region33: #{shared_conv_base_forward.4} parent=5 // pred_check
      _
    $region34: #{shared_conv_base_forward.4} parent=5 // pred_check_branch
      %176 = sbr.rel (%p173) target = $region36
    $region35: #{shared_conv_base_forward.4} parent=5 // pred_region
      %s177 = ssub.s32 %s10, 1
      %p178 = scmp.lt.s32.totalorder %s15, 1
      %s179 = scalar_select %p178, %s15, 1
      %s180 = smul.addr %s179, 10
      %s181 = smul.addr %s180, 4
      %s182 = scalar_lea.vmem %s0, %s181
      %p183 = pneg %p36
      %p184 = pneg %p33
      %p185 = scmp.lt.s32.totalorder %s15, 1
      %s186 = scalar_select %p185, %s15, 1
      %s187 = smul.addr %s186, 8
      %s188 = smul.addr %s187, 4
      %s189 = scalar_lea.vmem %s1, %s188
      %p190 = pneg %p62
      %p191 = pneg %p59
      %p192 = pneg %p83
      %p193 = pneg %p80
      %p194 = pneg %p104
      %p195 = pneg %p101
      %p196 = pneg %p130
      %p197 = pneg %p127
      %p198 = scmp.lt.s32.totalorder %s15, 1
      %s199 = scalar_select %p198, %s15, 1
      %s200 = smul.addr %s199, 2
      %s201 = smul.addr %s200, 4
      %s202 = scalar_lea.vmem %s4, %s201
      %p203 = scmp.lt.s32.totalorder %s15, 1
      %s204 = scalar_select %p203, %s15, 1
      %s205 = smul.addr %s204, 10
      %s206 = smul.addr %s205, 4
      %s207 = scalar_lea.vmem %s0, %s206
      %p208 = scmp.lt.s32.totalorder %s15, 1
      %s209 = scalar_select %p208, %s15, 1
      %s210 = smul.addr %s209, 8
      %s211 = smul.addr %s210, 4
      %s212 = scalar_lea.vmem %s1, %s211
      %p213 = scmp.lt.s32.totalorder %s15, 1
      %s214 = scalar_select %p213, %s15, 1
      %s215 = smul.addr %s214, 2
      %s216 = smul.addr %s215, 4
      %s217 = scalar_lea.vmem %s4, %s216
      %v219 = vld [vmem:[%s207] sm:$0x77]
      %v220 = vld [vmem:[%s207 + $0x8] sm:$0x77]
      %v221 = vld [vmem:[%s207 + $0x10] sm:$0x77]
      %v222 = vld [vmem:[%s207 + $0x18] sm:$0x77]
      %v223 = vld [vmem:[%s207 + $0x20] sm:$0x77]
      %v224 = vld [vmem:[%s212] sm:$0x77]
      %v225 = vld [vmem:[%s212 + $0x8] sm:$0x77]
      %v226 = vld [vmem:[%s212 + $0x10] sm:$0x77]
      %v227 = vld [vmem:[%s212 + $0x18] sm:$0x77]
      %v233 = vunpack.c.l.s4 1983009808
      %v234 = vunpack.c.0.s8 %v233
      %v235 = vlaneseq
      %v236 = vshrl.u32 %v235, 7
      %v237 = vsub.s32 %v234, %v236
      %v238 = vrot.slane %v219, %v237
      %v240 = vunpack.c.l.s4 1983009808
      %v241 = vunpack.c.0.s8 %v240
      %v242 = vlaneseq
      %v243 = vshrl.u32 %v242, 7
      %v244 = vsub.s32 %v241, %v243
      %v245 = vrot.slane %v220, %v244
      %v247 = vunpack.c.l.s4 1983009808
      %v248 = vunpack.c.0.s8 %v247
      %v249 = vlaneseq
      %v250 = vshrl.u32 %v249, 7
      %v251 = vsub.s32 %v248, %v250
      %v252 = vrot.slane %v221, %v251
      %v254 = vunpack.c.l.s4 1983009808
      %v255 = vunpack.c.0.s8 %v254
      %v256 = vlaneseq
      %v257 = vshrl.u32 %v256, 7
      %v258 = vsub.s32 %v255, %v257
      %v259 = vrot.slane %v222, %v258
      %v260 = vcombine.high %v238, %v238
      %v261 = vcombine.high %v245, %v245
      %v262 = vcombine.high %v252, %v252
      %v263 = vcombine.high %v259, %v259
      %vm264 = vsmask.f32 1280
      %vm265 = vsmask.f32 3336
      %vm266 = vmor %vm264, %vm265
      %vm267 = vsmask.f32 5392
      %vm268 = vmor %vm266, %vm267
      %vm269 = vsmask.f32 7448
      %vm270 = vmor %vm268, %vm269
      %v272 = vshrl.u32 %v238, 16
      %v274 = vrot.slane %v272, 6
      %v275 = vshll.u32 %v238, 16
      %v277 = vrot.slane %v275, 7
      %v278 = vor.u32 %v274, %v277
      %v279 = vrot.slane %v278, 2
      %v281 = vshll.u32 %v260, 16
      %v283 = vrot.slane %v281, 7
      %v284 = vsel %vm270, %v279, %v283
      %v286 = vshrl.u32 %v245, 16
      %v288 = vrot.slane %v286, 6
      %v289 = vshll.u32 %v245, 16
      %v291 = vrot.slane %v289, 7
      %v292 = vor.u32 %v288, %v291
      %v293 = vrot.slane %v292, 2
      %v295 = vshll.u32 %v261, 16
      %v297 = vrot.slane %v295, 7
      %v298 = vsel %vm270, %v293, %v297
      %v300 = vshrl.u32 %v252, 16
      %v302 = vrot.slane %v300, 6
      %v303 = vshll.u32 %v252, 16
      %v305 = vrot.slane %v303, 7
      %v306 = vor.u32 %v302, %v305
      %v307 = vrot.slane %v306, 2
      %v309 = vshll.u32 %v262, 16
      %v311 = vrot.slane %v309, 7
      %v312 = vsel %vm270, %v307, %v311
      %v314 = vshrl.u32 %v259, 16
      %v316 = vrot.slane %v314, 6
      %v317 = vshll.u32 %v259, 16
      %v319 = vrot.slane %v317, 7
      %v320 = vor.u32 %v316, %v319
      %v321 = vrot.slane %v320, 2
      %v323 = vshll.u32 %v263, 16
      %v325 = vrot.slane %v323, 7
      %v326 = vsel %vm270, %v321, %v325
      %v327 = vld [vmem:[%s2] sm:$0xf]
      %v328 = vld [vmem:[%s2 + $0x4] sm:$0xf]
      %v329 = vld [vmem:[%s2 + $0x8] sm:$0xf]
      %v330 = vld [vmem:[%s2 + $0xc] sm:$0xf]
      %v331 = vld [vmem:[%s2 + $0x10] sm:$0xf]
      %v332 = vld [vmem:[%s2 + $0x14] sm:$0xf]
      %v333 = vld [vmem:[%s2 + $0x18] sm:$0xf]
      %v334 = vld [vmem:[%s2 + $0x1c] sm:$0xf]
      %v335 = vld [vmem:[%s2 + $0x20] sm:$0xf]
      %v336 = vld [vmem:[%s2 + $0x24] sm:$0xf]
      %v337 = vld [vmem:[%s2 + $0x28] sm:$0xf]
      %v338 = vld [vmem:[%s2 + $0x2c] sm:$0xf]
      %v339 = vld [vmem:[%s2 + $0x30] sm:$0xf]
      %v340 = vld [vmem:[%s2 + $0x34] sm:$0xf]
      %v341 = vld [vmem:[%s2 + $0x38] sm:$0xf]
      %v342 = vld [vmem:[%s2 + $0x3c] sm:$0xf]
      %v343 = vld [vmem:[%s2 + $0x40] sm:$0xf]
      %v344 = vld [vmem:[%s2 + $0x44] sm:$0xf]
      %v345 = vld [vmem:[%s2 + $0x48] sm:$0xf]
      %v346 = vld [vmem:[%s2 + $0x4c] sm:$0xf]
      %v347 = vld [vmem:[%s2 + $0x50] sm:$0xf]
      %v348 = vld [vmem:[%s2 + $0x54] sm:$0xf]
      %v349 = vld [vmem:[%s2 + $0x58] sm:$0xf]
      %v350 = vld [vmem:[%s2 + $0x5c] sm:$0xf]
      %v351 = vld [vmem:[%s2 + $0x60] sm:$0xf]
      %v352 = vld [vmem:[%s2 + $0x64] sm:$0xf]
      %v353 = vld [vmem:[%s2 + $0x68] sm:$0xf]
      %v354 = vld [vmem:[%s2 + $0x6c] sm:$0xf]
      %v355 = vld [vmem:[%s2 + $0x70] sm:$0xf]
      %v356 = vld [vmem:[%s2 + $0x74] sm:$0xf]
      %v357 = vld [vmem:[%s2 + $0x78] sm:$0xf]
      %v358 = vld [vmem:[%s2 + $0x7c] sm:$0xf]
      %s359 = scalar_lea.vmem %s2, 128
      %v360 = vld [vmem:[%s359] sm:$0xf]
      %v361 = vld [vmem:[%s359 + $0x4] sm:$0xf]
      %v362 = vld [vmem:[%s359 + $0x8] sm:$0xf]
      %v363 = vld [vmem:[%s359 + $0xc] sm:$0xf]
      %v364 = vld [vmem:[%s359 + $0x10] sm:$0xf]
      %v365 = vld [vmem:[%s359 + $0x14] sm:$0xf]
      %v366 = vld [vmem:[%s359 + $0x18] sm:$0xf]
      %v367 = vld [vmem:[%s359 + $0x1c] sm:$0xf]
      %v368 = vld [vmem:[%s359 + $0x20] sm:$0xf]
      %v369 = vld [vmem:[%s359 + $0x24] sm:$0xf]
      %v370 = vld [vmem:[%s359 + $0x28] sm:$0xf]
      %v371 = vld [vmem:[%s359 + $0x2c] sm:$0xf]
      %v372 = vld [vmem:[%s359 + $0x30] sm:$0xf]
      %v373 = vld [vmem:[%s359 + $0x34] sm:$0xf]
      %v374 = vld [vmem:[%s359 + $0x38] sm:$0xf]
      %v375 = vld [vmem:[%s359 + $0x3c] sm:$0xf]
      %v376 = vld [vmem:[%s359 + $0x40] sm:$0xf]
      %v377 = vld [vmem:[%s359 + $0x44] sm:$0xf]
      %v378 = vld [vmem:[%s359 + $0x48] sm:$0xf]
      %v379 = vld [vmem:[%s359 + $0x4c] sm:$0xf]
      %v380 = vld [vmem:[%s359 + $0x50] sm:$0xf]
      %v381 = vld [vmem:[%s359 + $0x54] sm:$0xf]
      %v382 = vld [vmem:[%s359 + $0x58] sm:$0xf]
      %v383 = vld [vmem:[%s359 + $0x5c] sm:$0xf]
      %v384 = vld [vmem:[%s359 + $0x60] sm:$0xf]
      %v385 = vld [vmem:[%s359 + $0x64] sm:$0xf]
      %v386 = vld [vmem:[%s359 + $0x68] sm:$0xf]
      %v387 = vld [vmem:[%s359 + $0x6c] sm:$0xf]
      %v388 = vld [vmem:[%s359 + $0x70] sm:$0xf]
      %v389 = vld [vmem:[%s359 + $0x74] sm:$0xf]
      %v390 = vld [vmem:[%s359 + $0x78] sm:$0xf]
      %v391 = vld [vmem:[%s359 + $0x7c] sm:$0xf]
      %v392 = vcombine.low %v284, %v298
      %v393 = vcombine.low %v312, %v326
      %v395 = vunpack.c.l.s4 1983009808
      %v396 = vunpack.c.0.s8 %v395
      %v397 = vlaneseq
      %v398 = vshrl.u32 %v397, 7
      %v399 = vsub.s32 %v396, %v398
      %v400 = vrot.slane %v392, %v399
      %v402 = vunpack.c.l.s4 1983009808
      %v403 = vunpack.c.0.s8 %v402
      %v404 = vlaneseq
      %v405 = vshrl.u32 %v404, 7
      %v406 = vsub.s32 %v403, %v405
      %v407 = vrot.slane %v393, %v406
      %v408 = vcombine.low %v400, %v407
      %v409 = vcombine.high %v400, %v407
      %v444 = vunpack.c.l.b16 %v360
      %v445 = vunpack.c.l.b16 %v361
      %v446 = vunpack.c.l.b16 %v362
      %v447 = vunpack.c.l.b16 %v363
      %v448 = vunpack.c.l.b16 %v364
      %v449 = vunpack.c.l.b16 %v365
      %v450 = vunpack.c.l.b16 %v366
      %v451 = vunpack.c.l.b16 %v367
      %v452 = vunpack.c.l.b16 %v368
      %v453 = vunpack.c.l.b16 %v369
      %v454 = vunpack.c.l.b16 %v370
      %v455 = vunpack.c.l.b16 %v371
      %v456 = vunpack.c.l.b16 %v372
      %v457 = vunpack.c.l.b16 %v373
      %v458 = vunpack.c.l.b16 %v374
      %v459 = vunpack.c.l.b16 %v375
      %v460 = vunpack.c.l.b16 %v376
      %v461 = vunpack.c.l.b16 %v377
      %v462 = vunpack.c.l.b16 %v378
      %v463 = vunpack.c.l.b16 %v379
      %v464 = vunpack.c.l.b16 %v380
      %v465 = vunpack.c.l.b16 %v381
      %v466 = vunpack.c.l.b16 %v382
      %v467 = vunpack.c.l.b16 %v383
      %v468 = vunpack.c.l.b16 %v384
      %v469 = vunpack.c.l.b16 %v385
      %v470 = vunpack.c.l.b16 %v386
      %v471 = vunpack.c.l.b16 %v387
      %v472 = vunpack.c.l.b16 %v388
      %v473 = vunpack.c.l.b16 %v389
      %v474 = vunpack.c.l.b16 %v390
      %v475 = vunpack.c.l.b16 %v391
      %v476 = vpack.c.b16 %v445, %v444
      %v477 = vpack.c.b16 %v447, %v446
      %v478 = vpack.c.b16 %v449, %v448
      %v479 = vpack.c.b16 %v451, %v450
      %v480 = vpack.c.b16 %v453, %v452
      %v481 = vpack.c.b16 %v455, %v454
      %v482 = vpack.c.b16 %v457, %v456
      %v483 = vpack.c.b16 %v459, %v458
      %v484 = vpack.c.b16 %v461, %v460
      %v485 = vpack.c.b16 %v463, %v462
      %v486 = vpack.c.b16 %v465, %v464
      %v487 = vpack.c.b16 %v467, %v466
      %v488 = vpack.c.b16 %v469, %v468
      %v489 = vpack.c.b16 %v471, %v470
      %v490 = vpack.c.b16 %v473, %v472
      %v491 = vpack.c.b16 %v475, %v474
      %508 = vmatprep.subr.bf16.mxu0 0
      %509 = vmatpush1.bf16.msra.mxu0 %v476
      %510 = vmatprep.subr.bf16.mxu0 0
      %511 = vmatpush1.bf16.msra.mxu0 %v477
      %512 = vmatprep.subr.bf16.mxu0 0
      %513 = vmatpush1.bf16.msra.mxu0 %v478
      %514 = vmatprep.subr.bf16.mxu0 0
      %515 = vmatpush1.bf16.msra.mxu0 %v479
      %516 = vmatprep.subr.bf16.mxu0 0
      %517 = vmatpush1.bf16.msra.mxu0 %v480
      %518 = vmatprep.subr.bf16.mxu0 0
      %519 = vmatpush1.bf16.msra.mxu0 %v481
      %520 = vmatprep.subr.bf16.mxu0 0
      %521 = vmatpush1.bf16.msra.mxu0 %v482
      %522 = vmatprep.subr.bf16.mxu0 0
      %523 = vmatpush1.bf16.msra.mxu0 %v483
      %524 = vmatprep.subr.bf16.mxu0 0
      %525 = vmatpush1.bf16.msra.mxu0 %v484
      %526 = vmatprep.subr.bf16.mxu0 0
      %527 = vmatpush1.bf16.msra.mxu0 %v485
      %528 = vmatprep.subr.bf16.mxu0 0
      %529 = vmatpush1.bf16.msra.mxu0 %v486
      %530 = vmatprep.subr.bf16.mxu0 0
      %531 = vmatpush1.bf16.msra.mxu0 %v487
      %532 = vmatprep.subr.bf16.mxu0 0
      %533 = vmatpush1.bf16.msra.mxu0 %v488
      %534 = vmatprep.subr.bf16.mxu0 0
      %535 = vmatpush1.bf16.msra.mxu0 %v489
      %536 = vmatprep.subr.bf16.mxu0 0
      %537 = vmatpush1.bf16.msra.mxu0 %v490
      %538 = vmatprep.subr.bf16.mxu0 0
      %539 = vmatpush1.bf16.msra.mxu0 %v491
      %540 = vmatprep.mubr.bf16.mxu0 %v409
      %541 = vmatmul.mubr.bf16.gmra.mrb[0].mxu0 %v408
      %v542 = vpop.f32.mrb[0].mxu0
      %v543 = vadd.f32 0.0, %v542
      %v544 = vpop.f32.mrb[0].mxu0
      %v545 = vpop.f32.mrb[0].mxu0
      %v546 = vadd.f32 0.0, %v545
      %v547 = vpop.f32.mrb[0].mxu0
      %548 = vdwg.mxu0
      %v549 = vcombine.low %v238, %v245
      %v550 = vcombine.low %v252, %v259
      %v552 = vunpack.c.l.s4 1983009808
      %v553 = vunpack.c.0.s8 %v552
      %v554 = vlaneseq
      %v555 = vshrl.u32 %v554, 7
      %v556 = vsub.s32 %v553, %v555
      %v557 = vrot.slane %v549, %v556
      %v559 = vunpack.c.l.s4 1983009808
      %v560 = vunpack.c.0.s8 %v559
      %v561 = vlaneseq
      %v562 = vshrl.u32 %v561, 7
      %v563 = vsub.s32 %v560, %v562
      %v564 = vrot.slane %v550, %v563
      %v565 = vcombine.low %v557, %v564
      %v566 = vcombine.high %v557, %v564
      %v601 = vunpack.c.l.b16 %v327
      %v602 = vunpack.c.l.b16 %v328
      %v603 = vunpack.c.l.b16 %v329
      %v604 = vunpack.c.l.b16 %v330
      %v605 = vunpack.c.l.b16 %v331
      %v606 = vunpack.c.l.b16 %v332
      %v607 = vunpack.c.l.b16 %v333
      %v608 = vunpack.c.l.b16 %v334
      %v609 = vunpack.c.l.b16 %v335
      %v610 = vunpack.c.l.b16 %v336
      %v611 = vunpack.c.l.b16 %v337
      %v612 = vunpack.c.l.b16 %v338
      %v613 = vunpack.c.l.b16 %v339
      %v614 = vunpack.c.l.b16 %v340
      %v615 = vunpack.c.l.b16 %v341
      %v616 = vunpack.c.l.b16 %v342
      %v617 = vunpack.c.l.b16 %v343
      %v618 = vunpack.c.l.b16 %v344
      %v619 = vunpack.c.l.b16 %v345
      %v620 = vunpack.c.l.b16 %v346
      %v621 = vunpack.c.l.b16 %v347
      %v622 = vunpack.c.l.b16 %v348
      %v623 = vunpack.c.l.b16 %v349
      %v624 = vunpack.c.l.b16 %v350
      %v625 = vunpack.c.l.b16 %v351
      %v626 = vunpack.c.l.b16 %v352
      %v627 = vunpack.c.l.b16 %v353
      %v628 = vunpack.c.l.b16 %v354
      %v629 = vunpack.c.l.b16 %v355
      %v630 = vunpack.c.l.b16 %v356
      %v631 = vunpack.c.l.b16 %v357
      %v632 = vunpack.c.l.b16 %v358
      %v633 = vpack.c.b16 %v602, %v601
      %v634 = vpack.c.b16 %v604, %v603
      %v635 = vpack.c.b16 %v606, %v605
      %v636 = vpack.c.b16 %v608, %v607
      %v637 = vpack.c.b16 %v610, %v609
      %v638 = vpack.c.b16 %v612, %v611
      %v639 = vpack.c.b16 %v614, %v613
      %v640 = vpack.c.b16 %v616, %v615
      %v641 = vpack.c.b16 %v618, %v617
      %v642 = vpack.c.b16 %v620, %v619
      %v643 = vpack.c.b16 %v622, %v621
      %v644 = vpack.c.b16 %v624, %v623
      %v645 = vpack.c.b16 %v626, %v625
      %v646 = vpack.c.b16 %v628, %v627
      %v647 = vpack.c.b16 %v630, %v629
      %v648 = vpack.c.b16 %v632, %v631
      %665 = vmatprep.subr.bf16.mxu0 0
      %666 = vmatpush1.bf16.msra.mxu0 %v633
      %667 = vmatprep.subr.bf16.mxu0 0
      %668 = vmatpush1.bf16.msra.mxu0 %v634
      %669 = vmatprep.subr.bf16.mxu0 0
      %670 = vmatpush1.bf16.msra.mxu0 %v635
      %671 = vmatprep.subr.bf16.mxu0 0
      %672 = vmatpush1.bf16.msra.mxu0 %v636
      %673 = vmatprep.subr.bf16.mxu0 0
      %674 = vmatpush1.bf16.msra.mxu0 %v637
      %675 = vmatprep.subr.bf16.mxu0 0
      %676 = vmatpush1.bf16.msra.mxu0 %v638
      %677 = vmatprep.subr.bf16.mxu0 0
      %678 = vmatpush1.bf16.msra.mxu0 %v639
      %679 = vmatprep.subr.bf16.mxu0 0
      %680 = vmatpush1.bf16.msra.mxu0 %v640
      %681 = vmatprep.subr.bf16.mxu0 0
      %682 = vmatpush1.bf16.msra.mxu0 %v641
      %683 = vmatprep.subr.bf16.mxu0 0
      %684 = vmatpush1.bf16.msra.mxu0 %v642
      %685 = vmatprep.subr.bf16.mxu0 0
      %686 = vmatpush1.bf16.msra.mxu0 %v643
      %687 = vmatprep.subr.bf16.mxu0 0
      %688 = vmatpush1.bf16.msra.mxu0 %v644
      %689 = vmatprep.subr.bf16.mxu0 0
      %690 = vmatpush1.bf16.msra.mxu0 %v645
      %691 = vmatprep.subr.bf16.mxu0 0
      %692 = vmatpush1.bf16.msra.mxu0 %v646
      %693 = vmatprep.subr.bf16.mxu0 0
      %694 = vmatpush1.bf16.msra.mxu0 %v647
      %695 = vmatprep.subr.bf16.mxu0 0
      %696 = vmatpush1.bf16.msra.mxu0 %v648
      %697 = vmatprep.mubr.bf16.mxu0 %v566
      %698 = vmatmul.mubr.bf16.gmra.mrb[0].mxu0 %v565
      %v699 = vpop.f32.mrb[0].mxu0
      %v700 = vadd.f32 %v543, %v699
      %v701 = vpop.f32.mrb[0].mxu0
      %v702 = vpop.f32.mrb[0].mxu0
      %v703 = vadd.f32 %v546, %v702
      %v704 = vpop.f32.mrb[0].mxu0
      %705 = vdwg.mxu0
      %v711 = vunpack.c.l.s4 1983009808
      %v712 = vunpack.c.0.s8 %v711
      %v713 = vlaneseq
      %v714 = vshrl.u32 %v713, 7
      %v715 = vsub.s32 %v712, %v714
      %v716 = vrot.slane %v224, %v715
      %v718 = vunpack.c.l.s4 1983009808
      %v719 = vunpack.c.0.s8 %v718
      %v720 = vlaneseq
      %v721 = vshrl.u32 %v720, 7
      %v722 = vsub.s32 %v719, %v721
      %v723 = vrot.slane %v225, %v722
      %v725 = vunpack.c.l.s4 1983009808
      %v726 = vunpack.c.0.s8 %v725
      %v727 = vlaneseq
      %v728 = vshrl.u32 %v727, 7
      %v729 = vsub.s32 %v726, %v728
      %v730 = vrot.slane %v226, %v729
      %v732 = vunpack.c.l.s4 1983009808
      %v733 = vunpack.c.0.s8 %v732
      %v734 = vlaneseq
      %v735 = vshrl.u32 %v734, 7
      %v736 = vsub.s32 %v733, %v735
      %v737 = vrot.slane %v227, %v736
      %v738 = vcombine.high %v716, %v716
      %v739 = vcombine.high %v723, %v723
      %v740 = vcombine.high %v730, %v730
      %v741 = vcombine.high %v737, %v737
      %v743 = vshrl.u32 %v716, 16
      %v745 = vrot.slane %v743, 6
      %v746 = vshll.u32 %v716, 16
      %v748 = vrot.slane %v746, 7
      %v749 = vor.u32 %v745, %v748
      %v750 = vrot.slane %v749, 2
      %v752 = vshll.u32 %v738, 16
      %v754 = vrot.slane %v752, 7
      %v755 = vsel %vm270, %v750, %v754
      %v757 = vshrl.u32 %v723, 16
      %v759 = vrot.slane %v757, 6
      %v760 = vshll.u32 %v723, 16
      %v762 = vrot.slane %v760, 7
      %v763 = vor.u32 %v759, %v762
      %v764 = vrot.slane %v763, 2
      %v766 = vshll.u32 %v739, 16
      %v768 = vrot.slane %v766, 7
      %v769 = vsel %vm270, %v764, %v768
      %v771 = vshrl.u32 %v730, 16
      %v773 = vrot.slane %v771, 6
      %v774 = vshll.u32 %v730, 16
      %v776 = vrot.slane %v774, 7
      %v777 = vor.u32 %v773, %v776
      %v778 = vrot.slane %v777, 2
      %v780 = vshll.u32 %v740, 16
      %v782 = vrot.slane %v780, 7
      %v783 = vsel %vm270, %v778, %v782
      %v785 = vshrl.u32 %v737, 16
      %v787 = vrot.slane %v785, 6
      %v788 = vshll.u32 %v737, 16
      %v790 = vrot.slane %v788, 7
      %v791 = vor.u32 %v787, %v790
      %v792 = vrot.slane %v791, 2
      %v794 = vshll.u32 %v741, 16
      %v796 = vrot.slane %v794, 7
      %v797 = vsel %vm270, %v792, %v796
      %s798 = scalar_lea.vmem %s2, 256
      %v799 = vld [vmem:[%s798] sm:$0xf]
      %v800 = vld [vmem:[%s798 + $0x4] sm:$0xf]
      %v801 = vld [vmem:[%s798 + $0x8] sm:$0xf]
      %v802 = vld [vmem:[%s798 + $0xc] sm:$0xf]
      %v803 = vld [vmem:[%s798 + $0x10] sm:$0xf]
      %v804 = vld [vmem:[%s798 + $0x14] sm:$0xf]
      %v805 = vld [vmem:[%s798 + $0x18] sm:$0xf]
      %v806 = vld [vmem:[%s798 + $0x1c] sm:$0xf]
      %v807 = vld [vmem:[%s798 + $0x20] sm:$0xf]
      %v808 = vld [vmem:[%s798 + $0x24] sm:$0xf]
      %v809 = vld [vmem:[%s798 + $0x28] sm:$0xf]
      %v810 = vld [vmem:[%s798 + $0x2c] sm:$0xf]
      %v811 = vld [vmem:[%s798 + $0x30] sm:$0xf]
      %v812 = vld [vmem:[%s798 + $0x34] sm:$0xf]
      %v813 = vld [vmem:[%s798 + $0x38] sm:$0xf]
      %v814 = vld [vmem:[%s798 + $0x3c] sm:$0xf]
      %v815 = vld [vmem:[%s798 + $0x40] sm:$0xf]
      %v816 = vld [vmem:[%s798 + $0x44] sm:$0xf]
      %v817 = vld [vmem:[%s798 + $0x48] sm:$0xf]
      %v818 = vld [vmem:[%s798 + $0x4c] sm:$0xf]
      %v819 = vld [vmem:[%s798 + $0x50] sm:$0xf]
      %v820 = vld [vmem:[%s798 + $0x54] sm:$0xf]
      %v821 = vld [vmem:[%s798 + $0x58] sm:$0xf]
      %v822 = vld [vmem:[%s798 + $0x5c] sm:$0xf]
      %v823 = vld [vmem:[%s798 + $0x60] sm:$0xf]
      %v824 = vld [vmem:[%s798 + $0x64] sm:$0xf]
      %v825 = vld [vmem:[%s798 + $0x68] sm:$0xf]
      %v826 = vld [vmem:[%s798 + $0x6c] sm:$0xf]
      %v827 = vld [vmem:[%s798 + $0x70] sm:$0xf]
      %v828 = vld [vmem:[%s798 + $0x74] sm:$0xf]
      %v829 = vld [vmem:[%s798 + $0x78] sm:$0xf]
      %v830 = vld [vmem:[%s798 + $0x7c] sm:$0xf]
      %v831 = vcombine.low %v716, %v723
      %v832 = vcombine.low %v730, %v737
      %v834 = vunpack.c.l.s4 1983009808
      %v835 = vunpack.c.0.s8 %v834
      %v836 = vlaneseq
      %v837 = vshrl.u32 %v836, 7
      %v838 = vsub.s32 %v835, %v837
      %v839 = vrot.slane %v831, %v838
      %v841 = vunpack.c.l.s4 1983009808
      %v842 = vunpack.c.0.s8 %v841
      %v843 = vlaneseq
      %v844 = vshrl.u32 %v843, 7
      %v845 = vsub.s32 %v842, %v844
      %v846 = vrot.slane %v832, %v845
      %v847 = vcombine.low %v839, %v846
      %v848 = vcombine.high %v839, %v846
      %v883 = vunpack.c.l.b16 %v799
      %v884 = vunpack.c.l.b16 %v800
      %v885 = vunpack.c.l.b16 %v801
      %v886 = vunpack.c.l.b16 %v802
      %v887 = vunpack.c.l.b16 %v803
      %v888 = vunpack.c.l.b16 %v804
      %v889 = vunpack.c.l.b16 %v805
      %v890 = vunpack.c.l.b16 %v806
      %v891 = vunpack.c.l.b16 %v807
      %v892 = vunpack.c.l.b16 %v808
      %v893 = vunpack.c.l.b16 %v809
      %v894 = vunpack.c.l.b16 %v810
      %v895 = vunpack.c.l.b16 %v811
      %v896 = vunpack.c.l.b16 %v812
      %v897 = vunpack.c.l.b16 %v813
      %v898 = vunpack.c.l.b16 %v814
      %v899 = vunpack.c.l.b16 %v815
      %v900 = vunpack.c.l.b16 %v816
      %v901 = vunpack.c.l.b16 %v817
      %v902 = vunpack.c.l.b16 %v818
      %v903 = vunpack.c.l.b16 %v819
      %v904 = vunpack.c.l.b16 %v820
      %v905 = vunpack.c.l.b16 %v821
      %v906 = vunpack.c.l.b16 %v822
      %v907 = vunpack.c.l.b16 %v823
      %v908 = vunpack.c.l.b16 %v824
      %v909 = vunpack.c.l.b16 %v825
      %v910 = vunpack.c.l.b16 %v826
      %v911 = vunpack.c.l.b16 %v827
      %v912 = vunpack.c.l.b16 %v828
      %v913 = vunpack.c.l.b16 %v829
      %v914 = vunpack.c.l.b16 %v830
      %v915 = vpack.c.b16 %v884, %v883
      %v916 = vpack.c.b16 %v886, %v885
      %v917 = vpack.c.b16 %v888, %v887
      %v918 = vpack.c.b16 %v890, %v889
      %v919 = vpack.c.b16 %v892, %v891
      %v920 = vpack.c.b16 %v894, %v893
      %v921 = vpack.c.b16 %v896, %v895
      %v922 = vpack.c.b16 %v898, %v897
      %v923 = vpack.c.b16 %v900, %v899
      %v924 = vpack.c.b16 %v902, %v901
      %v925 = vpack.c.b16 %v904, %v903
      %v926 = vpack.c.b16 %v906, %v905
      %v927 = vpack.c.b16 %v908, %v907
      %v928 = vpack.c.b16 %v910, %v909
      %v929 = vpack.c.b16 %v912, %v911
      %v930 = vpack.c.b16 %v914, %v913
      %947 = vmatprep.subr.bf16.mxu0 0
      %948 = vmatpush1.bf16.msra.mxu0 %v915
      %949 = vmatprep.subr.bf16.mxu0 0
      %950 = vmatpush1.bf16.msra.mxu0 %v916
      %951 = vmatprep.subr.bf16.mxu0 0
      %952 = vmatpush1.bf16.msra.mxu0 %v917
      %953 = vmatprep.subr.bf16.mxu0 0
      %954 = vmatpush1.bf16.msra.mxu0 %v918
      %955 = vmatprep.subr.bf16.mxu0 0
      %956 = vmatpush1.bf16.msra.mxu0 %v919
      %957 = vmatprep.subr.bf16.mxu0 0
      %958 = vmatpush1.bf16.msra.mxu0 %v920
      %959 = vmatprep.subr.bf16.mxu0 0
      %960 = vmatpush1.bf16.msra.mxu0 %v921
      %961 = vmatprep.subr.bf16.mxu0 0
      %962 = vmatpush1.bf16.msra.mxu0 %v922
      %963 = vmatprep.subr.bf16.mxu0 0
      %964 = vmatpush1.bf16.msra.mxu0 %v923
      %965 = vmatprep.subr.bf16.mxu0 0
      %966 = vmatpush1.bf16.msra.mxu0 %v924
      %967 = vmatprep.subr.bf16.mxu0 0
      %968 = vmatpush1.bf16.msra.mxu0 %v925
      %969 = vmatprep.subr.bf16.mxu0 0
      %970 = vmatpush1.bf16.msra.mxu0 %v926
      %971 = vmatprep.subr.bf16.mxu0 0
      %972 = vmatpush1.bf16.msra.mxu0 %v927
      %973 = vmatprep.subr.bf16.mxu0 0
      %974 = vmatpush1.bf16.msra.mxu0 %v928
      %975 = vmatprep.subr.bf16.mxu0 0
      %976 = vmatpush1.bf16.msra.mxu0 %v929
      %977 = vmatprep.subr.bf16.mxu0 0
      %978 = vmatpush1.bf16.msra.mxu0 %v930
      %979 = vmatprep.mubr.bf16.mxu0 %v848
      %980 = vmatmul.mubr.bf16.gmra.mrb[0].mxu0 %v847
      %v981 = vpop.f32.mrb[0].mxu0
      %v982 = vadd.f32 0.0, %v981
      %v983 = vpop.f32.mrb[0].mxu0
      %v984 = vpop.f32.mrb[0].mxu0
      %v985 = vadd.f32 0.0, %v984
      %v986 = vpop.f32.mrb[0].mxu0
      %987 = vdwg.mxu0
      %v988 = vadd.f32 %v700, %v982
      %v989 = vadd.f32 %v703, %v985
      %s990 = scalar_lea.vmem %s2, 384
      %v991 = vld [vmem:[%s990] sm:$0xf]
      %v992 = vld [vmem:[%s990 + $0x4] sm:$0xf]
      %v993 = vld [vmem:[%s990 + $0x8] sm:$0xf]
      %v994 = vld [vmem:[%s990 + $0xc] sm:$0xf]
      %v995 = vld [vmem:[%s990 + $0x10] sm:$0xf]
      %v996 = vld [vmem:[%s990 + $0x14] sm:$0xf]
      %v997 = vld [vmem:[%s990 + $0x18] sm:$0xf]
      %v998 = vld [vmem:[%s990 + $0x1c] sm:$0xf]
      %v999 = vld [vmem:[%s990 + $0x20] sm:$0xf]
      %v1000 = vld [vmem:[%s990 + $0x24] sm:$0xf]
      %v1001 = vld [vmem:[%s990 + $0x28] sm:$0xf]
      %v1002 = vld [vmem:[%s990 + $0x2c] sm:$0xf]
      %v1003 = vld [vmem:[%s990 + $0x30] sm:$0xf]
      %v1004 = vld [vmem:[%s990 + $0x34] sm:$0xf]
      %v1005 = vld [vmem:[%s990 + $0x38] sm:$0xf]
      %v1006 = vld [vmem:[%s990 + $0x3c] sm:$0xf]
      %v1007 = vld [vmem:[%s990 + $0x40] sm:$0xf]
      %v1008 = vld [vmem:[%s990 + $0x44] sm:$0xf]
      %v1009 = vld [vmem:[%s990 + $0x48] sm:$0xf]
      %v1010 = vld [vmem:[%s990 + $0x4c] sm:$0xf]
      %v1011 = vld [vmem:[%s990 + $0x50] sm:$0xf]
      %v1012 = vld [vmem:[%s990 + $0x54] sm:$0xf]
      %v1013 = vld [vmem:[%s990 + $0x58] sm:$0xf]
      %v1014 = vld [vmem:[%s990 + $0x5c] sm:$0xf]
      %v1015 = vld [vmem:[%s990 + $0x60] sm:$0xf]
      %v1016 = vld [vmem:[%s990 + $0x64] sm:$0xf]
      %v1017 = vld [vmem:[%s990 + $0x68] sm:$0xf]
      %v1018 = vld [vmem:[%s990 + $0x6c] sm:$0xf]
      %v1019 = vld [vmem:[%s990 + $0x70] sm:$0xf]
      %v1020 = vld [vmem:[%s990 + $0x74] sm:$0xf]
      %v1021 = vld [vmem:[%s990 + $0x78] sm:$0xf]
      %v1022 = vld [vmem:[%s990 + $0x7c] sm:$0xf]
      %v1023 = vcombine.low %v755, %v769
      %v1024 = vcombine.low %v783, %v797
      %v1026 = vunpack.c.l.s4 1983009808
      %v1027 = vunpack.c.0.s8 %v1026
      %v1028 = vlaneseq
      %v1029 = vshrl.u32 %v1028, 7
      %v1030 = vsub.s32 %v1027, %v1029
      %v1031 = vrot.slane %v1023, %v1030
      %v1033 = vunpack.c.l.s4 1983009808
      %v1034 = vunpack.c.0.s8 %v1033
      %v1035 = vlaneseq
      %v1036 = vshrl.u32 %v1035, 7
      %v1037 = vsub.s32 %v1034, %v1036
      %v1038 = vrot.slane %v1024, %v1037
      %v1039 = vcombine.low %v1031, %v1038
      %v1040 = vcombine.high %v1031, %v1038
      %v1075 = vunpack.c.l.b16 %v991
      %v1076 = vunpack.c.l.b16 %v992
      %v1077 = vunpack.c.l.b16 %v993
      %v1078 = vunpack.c.l.b16 %v994
      %v1079 = vunpack.c.l.b16 %v995
      %v1080 = vunpack.c.l.b16 %v996
      %v1081 = vunpack.c.l.b16 %v997
      %v1082 = vunpack.c.l.b16 %v998
      %v1083 = vunpack.c.l.b16 %v999
      %v1084 = vunpack.c.l.b16 %v1000
      %v1085 = vunpack.c.l.b16 %v1001
      %v1086 = vunpack.c.l.b16 %v1002
      %v1087 = vunpack.c.l.b16 %v1003
      %v1088 = vunpack.c.l.b16 %v1004
      %v1089 = vunpack.c.l.b16 %v1005
      %v1090 = vunpack.c.l.b16 %v1006
      %v1091 = vunpack.c.l.b16 %v1007
      %v1092 = vunpack.c.l.b16 %v1008
      %v1093 = vunpack.c.l.b16 %v1009
      %v1094 = vunpack.c.l.b16 %v1010
      %v1095 = vunpack.c.l.b16 %v1011
      %v1096 = vunpack.c.l.b16 %v1012
      %v1097 = vunpack.c.l.b16 %v1013
      %v1098 = vunpack.c.l.b16 %v1014
      %v1099 = vunpack.c.l.b16 %v1015
      %v1100 = vunpack.c.l.b16 %v1016
      %v1101 = vunpack.c.l.b16 %v1017
      %v1102 = vunpack.c.l.b16 %v1018
      %v1103 = vunpack.c.l.b16 %v1019
      %v1104 = vunpack.c.l.b16 %v1020
      %v1105 = vunpack.c.l.b16 %v1021
      %v1106 = vunpack.c.l.b16 %v1022
      %v1107 = vpack.c.b16 %v1076, %v1075
      %v1108 = vpack.c.b16 %v1078, %v1077
      %v1109 = vpack.c.b16 %v1080, %v1079
      %v1110 = vpack.c.b16 %v1082, %v1081
      %v1111 = vpack.c.b16 %v1084, %v1083
      %v1112 = vpack.c.b16 %v1086, %v1085
      %v1113 = vpack.c.b16 %v1088, %v1087
      %v1114 = vpack.c.b16 %v1090, %v1089
      %v1115 = vpack.c.b16 %v1092, %v1091
      %v1116 = vpack.c.b16 %v1094, %v1093
      %v1117 = vpack.c.b16 %v1096, %v1095
      %v1118 = vpack.c.b16 %v1098, %v1097
      %v1119 = vpack.c.b16 %v1100, %v1099
      %v1120 = vpack.c.b16 %v1102, %v1101
      %v1121 = vpack.c.b16 %v1104, %v1103
      %v1122 = vpack.c.b16 %v1106, %v1105
      %1139 = vmatprep.subr.bf16.mxu0 0
      %1140 = vmatpush1.bf16.msra.mxu0 %v1107
      %1141 = vmatprep.subr.bf16.mxu0 0
      %1142 = vmatpush1.bf16.msra.mxu0 %v1108
      %1143 = vmatprep.subr.bf16.mxu0 0
      %1144 = vmatpush1.bf16.msra.mxu0 %v1109
      %1145 = vmatprep.subr.bf16.mxu0 0
      %1146 = vmatpush1.bf16.msra.mxu0 %v1110
      %1147 = vmatprep.subr.bf16.mxu0 0
      %1148 = vmatpush1.bf16.msra.mxu0 %v1111
      %1149 = vmatprep.subr.bf16.mxu0 0
      %1150 = vmatpush1.bf16.msra.mxu0 %v1112
      %1151 = vmatprep.subr.bf16.mxu0 0
      %1152 = vmatpush1.bf16.msra.mxu0 %v1113
      %1153 = vmatprep.subr.bf16.mxu0 0
      %1154 = vmatpush1.bf16.msra.mxu0 %v1114
      %1155 = vmatprep.subr.bf16.mxu0 0
      %1156 = vmatpush1.bf16.msra.mxu0 %v1115
      %1157 = vmatprep.subr.bf16.mxu0 0
      %1158 = vmatpush1.bf16.msra.mxu0 %v1116
      %1159 = vmatprep.subr.bf16.mxu0 0
      %1160 = vmatpush1.bf16.msra.mxu0 %v1117
      %1161 = vmatprep.subr.bf16.mxu0 0
      %1162 = vmatpush1.bf16.msra.mxu0 %v1118
      %1163 = vmatprep.subr.bf16.mxu0 0
      %1164 = vmatpush1.bf16.msra.mxu0 %v1119
      %1165 = vmatprep.subr.bf16.mxu0 0
      %1166 = vmatpush1.bf16.msra.mxu0 %v1120
      %1167 = vmatprep.subr.bf16.mxu0 0
      %1168 = vmatpush1.bf16.msra.mxu0 %v1121
      %1169 = vmatprep.subr.bf16.mxu0 0
      %1170 = vmatpush1.bf16.msra.mxu0 %v1122
      %1171 = vmatprep.mubr.bf16.mxu0 %v1040
      %1172 = vmatmul.mubr.bf16.gmra.mrb[0].mxu0 %v1039
      %v1173 = vpop.f32.mrb[0].mxu0
      %v1174 = vadd.f32 0.0, %v1173
      %v1175 = vpop.f32.mrb[0].mxu0
      %v1176 = vpop.f32.mrb[0].mxu0
      %v1177 = vadd.f32 0.0, %v1176
      %v1178 = vpop.f32.mrb[0].mxu0
      %1179 = vdwg.mxu0
      %v1180 = vadd.f32 %v988, %v1174
      %v1181 = vadd.f32 %v989, %v1177
      %v1184 = vunpack.c.l.s4 1983009808
      %v1185 = vunpack.c.0.s8 %v1184
      %v1186 = vlaneseq
      %v1187 = vshrl.u32 %v1186, 7
      %v1188 = vsub.s32 %v1185, %v1187
      %v1189 = vrot.slane %v223, %v1188
      %v1190 = vcombine.high %v1189, %v1189
      %v1192 = vshrl.u32 %v1189, 16
      %v1194 = vrot.slane %v1192, 6
      %v1195 = vshll.u32 %v1189, 16
      %v1197 = vrot.slane %v1195, 7
      %v1198 = vor.u32 %v1194, %v1197
      %v1199 = vrot.slane %v1198, 2
      %v1201 = vshll.u32 %v1190, 16
      %v1203 = vrot.slane %v1201, 7
      %v1204 = vsel %vm270, %v1199, %v1203
      %s1205 = scalar_lea.vmem %s2, 512
      %v1206 = vld [vmem:[%s1205] sm:$0xf]
      %v1207 = vld [vmem:[%s1205 + $0x4] sm:$0xf]
      %v1208 = vld [vmem:[%s1205 + $0x8] sm:$0xf]
      %v1209 = vld [vmem:[%s1205 + $0xc] sm:$0xf]
      %v1210 = vld [vmem:[%s1205 + $0x10] sm:$0xf]
      %v1211 = vld [vmem:[%s1205 + $0x14] sm:$0xf]
      %v1212 = vld [vmem:[%s1205 + $0x18] sm:$0xf]
      %v1213 = vld [vmem:[%s1205 + $0x1c] sm:$0xf]
      %v1214 = vld [vmem:[%s1205 + $0x20] sm:$0xf]
      %v1215 = vld [vmem:[%s1205 + $0x24] sm:$0xf]
      %v1216 = vld [vmem:[%s1205 + $0x28] sm:$0xf]
      %v1217 = vld [vmem:[%s1205 + $0x2c] sm:$0xf]
      %v1218 = vld [vmem:[%s1205 + $0x30] sm:$0xf]
      %v1219 = vld [vmem:[%s1205 + $0x34] sm:$0xf]
      %v1220 = vld [vmem:[%s1205 + $0x38] sm:$0xf]
      %v1221 = vld [vmem:[%s1205 + $0x3c] sm:$0xf]
      %v1222 = vld [vmem:[%s1205 + $0x40] sm:$0xf]
      %v1223 = vld [vmem:[%s1205 + $0x44] sm:$0xf]
      %v1224 = vld [vmem:[%s1205 + $0x48] sm:$0xf]
      %v1225 = vld [vmem:[%s1205 + $0x4c] sm:$0xf]
      %v1226 = vld [vmem:[%s1205 + $0x50] sm:$0xf]
      %v1227 = vld [vmem:[%s1205 + $0x54] sm:$0xf]
      %v1228 = vld [vmem:[%s1205 + $0x58] sm:$0xf]
      %v1229 = vld [vmem:[%s1205 + $0x5c] sm:$0xf]
      %v1230 = vld [vmem:[%s1205 + $0x60] sm:$0xf]
      %v1231 = vld [vmem:[%s1205 + $0x64] sm:$0xf]
      %v1232 = vld [vmem:[%s1205 + $0x68] sm:$0xf]
      %v1233 = vld [vmem:[%s1205 + $0x6c] sm:$0xf]
      %v1234 = vld [vmem:[%s1205 + $0x70] sm:$0xf]
      %v1235 = vld [vmem:[%s1205 + $0x74] sm:$0xf]
      %v1236 = vld [vmem:[%s1205 + $0x78] sm:$0xf]
      %v1237 = vld [vmem:[%s1205 + $0x7c] sm:$0xf]
      %v1238 = vcombine.low %v245, %v252
      %v1239 = vcombine.low %v259, %v1189
      %v1241 = vunpack.c.l.s4 1983009808
      %v1242 = vunpack.c.0.s8 %v1241
      %v1243 = vlaneseq
      %v1244 = vshrl.u32 %v1243, 7
      %v1245 = vsub.s32 %v1242, %v1244
      %v1246 = vrot.slane %v1238, %v1245
      %v1248 = vunpack.c.l.s4 1983009808
      %v1249 = vunpack.c.0.s8 %v1248
      %v1250 = vlaneseq
      %v1251 = vshrl.u32 %v1250, 7
      %v1252 = vsub.s32 %v1249, %v1251
      %v1253 = vrot.slane %v1239, %v1252
      %v1254 = vcombine.low %v1246, %v1253
      %v1255 = vcombine.high %v1246, %v1253
      %v1290 = vunpack.c.l.b16 %v1206
      %v1291 = vunpack.c.l.b16 %v1207
      %v1292 = vunpack.c.l.b16 %v1208
      %v1293 = vunpack.c.l.b16 %v1209
      %v1294 = vunpack.c.l.b16 %v1210
      %v1295 = vunpack.c.l.b16 %v1211
      %v1296 = vunpack.c.l.b16 %v1212
      %v1297 = vunpack.c.l.b16 %v1213
      %v1298 = vunpack.c.l.b16 %v1214
      %v1299 = vunpack.c.l.b16 %v1215
      %v1300 = vunpack.c.l.b16 %v1216
      %v1301 = vunpack.c.l.b16 %v1217
      %v1302 = vunpack.c.l.b16 %v1218
      %v1303 = vunpack.c.l.b16 %v1219
      %v1304 = vunpack.c.l.b16 %v1220
      %v1305 = vunpack.c.l.b16 %v1221
      %v1306 = vunpack.c.l.b16 %v1222
      %v1307 = vunpack.c.l.b16 %v1223
      %v1308 = vunpack.c.l.b16 %v1224
      %v1309 = vunpack.c.l.b16 %v1225
      %v1310 = vunpack.c.l.b16 %v1226
      %v1311 = vunpack.c.l.b16 %v1227
      %v1312 = vunpack.c.l.b16 %v1228
      %v1313 = vunpack.c.l.b16 %v1229
      %v1314 = vunpack.c.l.b16 %v1230
      %v1315 = vunpack.c.l.b16 %v1231
      %v1316 = vunpack.c.l.b16 %v1232
      %v1317 = vunpack.c.l.b16 %v1233
      %v1318 = vunpack.c.l.b16 %v1234
      %v1319 = vunpack.c.l.b16 %v1235
      %v1320 = vunpack.c.l.b16 %v1236
      %v1321 = vunpack.c.l.b16 %v1237
      %v1322 = vpack.c.b16 %v1291, %v1290
      %v1323 = vpack.c.b16 %v1293, %v1292
      %v1324 = vpack.c.b16 %v1295, %v1294
      %v1325 = vpack.c.b16 %v1297, %v1296
      %v1326 = vpack.c.b16 %v1299, %v1298
      %v1327 = vpack.c.b16 %v1301, %v1300
      %v1328 = vpack.c.b16 %v1303, %v1302
      %v1329 = vpack.c.b16 %v1305, %v1304
      %v1330 = vpack.c.b16 %v1307, %v1306
      %v1331 = vpack.c.b16 %v1309, %v1308
      %v1332 = vpack.c.b16 %v1311, %v1310
      %v1333 = vpack.c.b16 %v1313, %v1312
      %v1334 = vpack.c.b16 %v1315, %v1314
      %v1335 = vpack.c.b16 %v1317, %v1316
      %v1336 = vpack.c.b16 %v1319, %v1318
      %v1337 = vpack.c.b16 %v1321, %v1320
      %1354 = vmatprep.subr.bf16.mxu0 0
      %1355 = vmatpush1.bf16.msra.mxu0 %v1322
      %1356 = vmatprep.subr.bf16.mxu0 0
      %1357 = vmatpush1.bf16.msra.mxu0 %v1323
      %1358 = vmatprep.subr.bf16.mxu0 0
      %1359 = vmatpush1.bf16.msra.mxu0 %v1324
      %1360 = vmatprep.subr.bf16.mxu0 0
      %1361 = vmatpush1.bf16.msra.mxu0 %v1325
      %1362 = vmatprep.subr.bf16.mxu0 0
      %1363 = vmatpush1.bf16.msra.mxu0 %v1326
      %1364 = vmatprep.subr.bf16.mxu0 0
      %1365 = vmatpush1.bf16.msra.mxu0 %v1327
      %1366 = vmatprep.subr.bf16.mxu0 0
      %1367 = vmatpush1.bf16.msra.mxu0 %v1328
      %1368 = vmatprep.subr.bf16.mxu0 0
      %1369 = vmatpush1.bf16.msra.mxu0 %v1329
      %1370 = vmatprep.subr.bf16.mxu0 0
      %1371 = vmatpush1.bf16.msra.mxu0 %v1330
      %1372 = vmatprep.subr.bf16.mxu0 0
      %1373 = vmatpush1.bf16.msra.mxu0 %v1331
      %1374 = vmatprep.subr.bf16.mxu0 0
      %1375 = vmatpush1.bf16.msra.mxu0 %v1332
      %1376 = vmatprep.subr.bf16.mxu0 0
      %1377 = vmatpush1.bf16.msra.mxu0 %v1333
      %1378 = vmatprep.subr.bf16.mxu0 0
      %1379 = vmatpush1.bf16.msra.mxu0 %v1334
      %1380 = vmatprep.subr.bf16.mxu0 0
      %1381 = vmatpush1.bf16.msra.mxu0 %v1335
      %1382 = vmatprep.subr.bf16.mxu0 0
      %1383 = vmatpush1.bf16.msra.mxu0 %v1336
      %1384 = vmatprep.subr.bf16.mxu0 0
      %1385 = vmatpush1.bf16.msra.mxu0 %v1337
      %1386 = vmatprep.mubr.bf16.mxu0 %v1255
      %1387 = vmatmul.mubr.bf16.gmra.mrb[0].mxu0 %v1254
      %v1388 = vpop.f32.mrb[0].mxu0
      %v1389 = vadd.f32 0.0, %v1388
      %v1390 = vpop.f32.mrb[0].mxu0
      %v1391 = vpop.f32.mrb[0].mxu0
      %v1392 = vadd.f32 0.0, %v1391
      %v1393 = vpop.f32.mrb[0].mxu0
      %1394 = vdwg.mxu0
      %v1395 = vadd.f32 %v1180, %v1389
      %v1396 = vadd.f32 %v1181, %v1392
      %s1397 = scalar_lea.vmem %s2, 640
      %v1398 = vld [vmem:[%s1397] sm:$0xf]
      %v1399 = vld [vmem:[%s1397 + $0x4] sm:$0xf]
      %v1400 = vld [vmem:[%s1397 + $0x8] sm:$0xf]
      %v1401 = vld [vmem:[%s1397 + $0xc] sm:$0xf]
      %v1402 = vld [vmem:[%s1397 + $0x10] sm:$0xf]
      %v1403 = vld [vmem:[%s1397 + $0x14] sm:$0xf]
      %v1404 = vld [vmem:[%s1397 + $0x18] sm:$0xf]
      %v1405 = vld [vmem:[%s1397 + $0x1c] sm:$0xf]
      %v1406 = vld [vmem:[%s1397 + $0x20] sm:$0xf]
      %v1407 = vld [vmem:[%s1397 + $0x24] sm:$0xf]
      %v1408 = vld [vmem:[%s1397 + $0x28] sm:$0xf]
      %v1409 = vld [vmem:[%s1397 + $0x2c] sm:$0xf]
      %v1410 = vld [vmem:[%s1397 + $0x30] sm:$0xf]
      %v1411 = vld [vmem:[%s1397 + $0x34] sm:$0xf]
      %v1412 = vld [vmem:[%s1397 + $0x38] sm:$0xf]
      %v1413 = vld [vmem:[%s1397 + $0x3c] sm:$0xf]
      %v1414 = vld [vmem:[%s1397 + $0x40] sm:$0xf]
      %v1415 = vld [vmem:[%s1397 + $0x44] sm:$0xf]
      %v1416 = vld [vmem:[%s1397 + $0x48] sm:$0xf]
      %v1417 = vld [vmem:[%s1397 + $0x4c] sm:$0xf]
      %v1418 = vld [vmem:[%s1397 + $0x50] sm:$0xf]
      %v1419 = vld [vmem:[%s1397 + $0x54] sm:$0xf]
      %v1420 = vld [vmem:[%s1397 + $0x58] sm:$0xf]
      %v1421 = vld [vmem:[%s1397 + $0x5c] sm:$0xf]
      %v1422 = vld [vmem:[%s1397 + $0x60] sm:$0xf]
      %v1423 = vld [vmem:[%s1397 + $0x64] sm:$0xf]
      %v1424 = vld [vmem:[%s1397 + $0x68] sm:$0xf]
      %v1425 = vld [vmem:[%s1397 + $0x6c] sm:$0xf]
      %v1426 = vld [vmem:[%s1397 + $0x70] sm:$0xf]
      %v1427 = vld [vmem:[%s1397 + $0x74] sm:$0xf]
      %v1428 = vld [vmem:[%s1397 + $0x78] sm:$0xf]
      %v1429 = vld [vmem:[%s1397 + $0x7c] sm:$0xf]
      %v1430 = vcombine.low %v298, %v312
      %v1431 = vcombine.low %v326, %v1204
      %v1433 = vunpack.c.l.s4 1983009808
      %v1434 = vunpack.c.0.s8 %v1433
      %v1435 = vlaneseq
      %v1436 = vshrl.u32 %v1435, 7
      %v1437 = vsub.s32 %v1434, %v1436
      %v1438 = vrot.slane %v1430, %v1437
      %v1440 = vunpack.c.l.s4 1983009808
      %v1441 = vunpack.c.0.s8 %v1440
      %v1442 = vlaneseq
      %v1443 = vshrl.u32 %v1442, 7
      %v1444 = vsub.s32 %v1441, %v1443
      %v1445 = vrot.slane %v1431, %v1444
      %v1446 = vcombine.low %v1438, %v1445
      %v1447 = vcombine.high %v1438, %v1445
      %v1482 = vunpack.c.l.b16 %v1398
      %v1483 = vunpack.c.l.b16 %v1399
      %v1484 = vunpack.c.l.b16 %v1400
      %v1485 = vunpack.c.l.b16 %v1401
      %v1486 = vunpack.c.l.b16 %v1402
      %v1487 = vunpack.c.l.b16 %v1403
      %v1488 = vunpack.c.l.b16 %v1404
      %v1489 = vunpack.c.l.b16 %v1405
      %v1490 = vunpack.c.l.b16 %v1406
      %v1491 = vunpack.c.l.b16 %v1407
      %v1492 = vunpack.c.l.b16 %v1408
      %v1493 = vunpack.c.l.b16 %v1409
      %v1494 = vunpack.c.l.b16 %v1410
      %v1495 = vunpack.c.l.b16 %v1411
      %v1496 = vunpack.c.l.b16 %v1412
      %v1497 = vunpack.c.l.b16 %v1413
      %v1498 = vunpack.c.l.b16 %v1414
      %v1499 = vunpack.c.l.b16 %v1415
      %v1500 = vunpack.c.l.b16 %v1416
      %v1501 = vunpack.c.l.b16 %v1417
      %v1502 = vunpack.c.l.b16 %v1418
      %v1503 = vunpack.c.l.b16 %v1419
      %v1504 = vunpack.c.l.b16 %v1420
      %v1505 = vunpack.c.l.b16 %v1421
      %v1506 = vunpack.c.l.b16 %v1422
      %v1507 = vunpack.c.l.b16 %v1423
      %v1508 = vunpack.c.l.b16 %v1424
      %v1509 = vunpack.c.l.b16 %v1425
      %v1510 = vunpack.c.l.b16 %v1426
      %v1511 = vunpack.c.l.b16 %v1427
      %v1512 = vunpack.c.l.b16 %v1428
      %v1513 = vunpack.c.l.b16 %v1429
      %v1514 = vpack.c.b16 %v1483, %v1482
      %v1515 = vpack.c.b16 %v1485, %v1484
      %v1516 = vpack.c.b16 %v1487, %v1486
      %v1517 = vpack.c.b16 %v1489, %v1488
      %v1518 = vpack.c.b16 %v1491, %v1490
      %v1519 = vpack.c.b16 %v1493, %v1492
      %v1520 = vpack.c.b16 %v1495, %v1494
      %v1521 = vpack.c.b16 %v1497, %v1496
      %v1522 = vpack.c.b16 %v1499, %v1498
      %v1523 = vpack.c.b16 %v1501, %v1500
      %v1524 = vpack.c.b16 %v1503, %v1502
      %v1525 = vpack.c.b16 %v1505, %v1504
      %v1526 = vpack.c.b16 %v1507, %v1506
      %v1527 = vpack.c.b16 %v1509, %v1508
      %v1528 = vpack.c.b16 %v1511, %v1510
      %v1529 = vpack.c.b16 %v1513, %v1512
      %1546 = vmatprep.subr.bf16.mxu0 0
      %1547 = vmatpush1.bf16.msra.mxu0 %v1514
      %1548 = vmatprep.subr.bf16.mxu0 0
      %1549 = vmatpush1.bf16.msra.mxu0 %v1515
      %1550 = vmatprep.subr.bf16.mxu0 0
      %1551 = vmatpush1.bf16.msra.mxu0 %v1516
      %1552 = vmatprep.subr.bf16.mxu0 0
      %1553 = vmatpush1.bf16.msra.mxu0 %v1517
      %1554 = vmatprep.subr.bf16.mxu0 0
      %1555 = vmatpush1.bf16.msra.mxu0 %v1518
      %1556 = vmatprep.subr.bf16.mxu0 0
      %1557 = vmatpush1.bf16.msra.mxu0 %v1519
      %1558 = vmatprep.subr.bf16.mxu0 0
      %1559 = vmatpush1.bf16.msra.mxu0 %v1520
      %1560 = vmatprep.subr.bf16.mxu0 0
      %1561 = vmatpush1.bf16.msra.mxu0 %v1521
      %1562 = vmatprep.subr.bf16.mxu0 0
      %1563 = vmatpush1.bf16.msra.mxu0 %v1522
      %1564 = vmatprep.subr.bf16.mxu0 0
      %1565 = vmatpush1.bf16.msra.mxu0 %v1523
      %1566 = vmatprep.subr.bf16.mxu0 0
      %1567 = vmatpush1.bf16.msra.mxu0 %v1524
      %1568 = vmatprep.subr.bf16.mxu0 0
      %1569 = vmatpush1.bf16.msra.mxu0 %v1525
      %1570 = vmatprep.subr.bf16.mxu0 0
      %1571 = vmatpush1.bf16.msra.mxu0 %v1526
      %1572 = vmatprep.subr.bf16.mxu0 0
      %1573 = vmatpush1.bf16.msra.mxu0 %v1527
      %1574 = vmatprep.subr.bf16.mxu0 0
      %1575 = vmatpush1.bf16.msra.mxu0 %v1528
      %1576 = vmatprep.subr.bf16.mxu0 0
      %1577 = vmatpush1.bf16.msra.mxu0 %v1529
      %1578 = vmatprep.mubr.bf16.mxu0 %v1447
      %1579 = vmatmul.mubr.bf16.gmra.mrb[0].mxu0 %v1446
      %v1580 = vpop.f32.mrb[0].mxu0
      %v1581 = vadd.f32 0.0, %v1580
      %v1582 = vpop.f32.mrb[0].mxu0
      %v1583 = vpop.f32.mrb[0].mxu0
      %v1584 = vadd.f32 0.0, %v1583
      %v1585 = vpop.f32.mrb[0].mxu0
      %1586 = vdwg.mxu0
      %v1587 = vadd.f32 %v1395, %v1581
      %v1588 = vadd.f32 %v1396, %v1584
      %v1589 = vld [vmem:[%s3] sm:$0x1]
      %v1591 = vlaneseq
      %v1592 = vshrl.u32 %v1591, 7
      %v1593 = vsub.s32 0, %v1592
      %v1594 = vrot.slane %v1589, %v1593
      %v1596 = vadd.f32 %v1587, %v1594
      %v1597 = vadd.f32 %v1588, %v1594
      %v1598 = vmul.f32 %v1596, 0.1
      %v1599 = vmul.f32 %v1597, 0.1
      %v1600 = vmax.f32 %v1596, %v1598
      %v1601 = vmax.f32 %v1597, %v1599
      %v1602 = vpack.c.bf16 %v1601, %v1600
      %v1604 = vunpack.c.l.b16 %v1602
      %v1605 = vunpack.c.h.b16 %v1602
      %v1606 = vpack.c.b16 %v1604, %v1604
      %v1607 = vpack.c.b16 %v1605, %v1605
      %1610 = vst [vmem:[%s217] sm:$0xf] %v1606
      %1611 = vst [vmem:[%s217 + $0x4] sm:$0xf] %v1607
      %p1612 = scmp.lt.s32.totalorder %s15, 1
      %s1613 = scalar_select %p1612, %s15, 1
      %s1614 = smul.addr %s1613, 2
      %s1615 = smul.addr %s1614, 4
      %s1616 = scalar_lea.vmem %s4, %s1615
      // Predicated region
      $region37: #{shared_conv_base_forward.4} parent=35 // pred_check
        %p1617 = pneg %p127
      $region38: #{shared_conv_base_forward.4} parent=35 // pred_check_branch
        %1619 = sbr.rel (%p1617) target = $region40
      $region39: #{shared_conv_base_forward.4} parent=35 // pred_region
        _
      $region40: #{shared_conv_base_forward.4} parent=35 // pred_fallthru
        _
    $region36: #{shared_conv_base_forward.4} parent=5 // pred_fallthru
      _
    %p1620 = scmp.le.s32.totalorder 2, %s10
    // Predicated region
    $region41: #{shared_conv_base_forward.4} parent=5 // pred_check
      %p1621 = pneg %p1620
    $region42: #{shared_conv_base_forward.4} parent=5 // pred_check_branch
      %1623 = sbr.rel (%p1621) target = $region44
    $region43: #{shared_conv_base_forward.4} parent=5 // pred_region
      %s1624 = ssub.s32 %s10, 2
      // Predicated region
      $region45: #{shared_conv_base_forward.4} parent=43 // pred_check
        %p1625 = pneg %p133
      $region46: #{shared_conv_base_forward.4} parent=43 // pred_check_branch
        %1627 = sbr.rel (%p1625) target = $region48
      $region47: #{shared_conv_base_forward.4} parent=43 // pred_region
        %p1628 = scmp.lt.s32.totalorder %s16, 1
        %s1629 = scalar_select %p1628, %s16, 1
        %s1630 = smul.addr %s1629, 2
        %s1631 = smul.addr %s1630, 4
        %s1632 = scalar_lea.vmem %s4, %s1631
      $region48: #{shared_conv_base_forward.4} parent=43 // pred_fallthru
        _
    $region44: #{shared_conv_base_forward.4} parent=5 // pred_fallthru
      _
  $region6: #{shared_conv_base_forward.4} parent=0 // loop_footer
    %s14 = sadd.s32 1, %s10
  $region7: #{shared_conv_base_forward.4} parent=0 // loop_footer_branch
    %9 = sbr.rel target = $region3
  $region8: #{shared_conv_base_forward.4} parent=0 // loop_exit
    _

// kernel: shared_conv_base_forward.5
$region0: #{shared_conv_base_forward.5}
  #allocation0 [shape = 'u32[]', space=smem, size = 0x4, offset = 0x4, fixed_abs, tag = 'smem constant byte address 0x4 - core index']
  #allocation1 [shape = 'u32[144,128]{1,0:T(1,128)}', space=vmem, size = 0x12000, scoped, tag = 'internal scratch']
  %s0 = inlined_call_operand.vmem [shape: bf16[2,3,3,256], index: 0, kind: input, shape index: {}]
  %s1 = inlined_call_operand.vmem [shape: bf16[2,2,3,256], index: 1, kind: input, shape index: {}]
  %s2 = inlined_call_operand.vmem [shape: bf16[6,256,256], index: 2, kind: input, shape index: {}]
  %s3 = inlined_call_operand.vmem [shape: f32[1,256], index: 3, kind: input, shape index: {}]
  %s4 = inlined_call_operand.vmem [shape: f32[2,4,256], index: 4, kind: output, shape index: {}]
  %s5 = sld [smem:[#allocation0]]
  $region49: #{shared_conv_base_forward.5} parent=0
    _
  %s7 = ssub.s32 1, %s5
  %s8 = scalar_select 0, %s7, %s5
  loop: start=0, step=1, limit=4
  $region2: #{shared_conv_base_forward.5} parent=0 // loop_pre_header
    _
  $region3: #{shared_conv_base_forward.5} parent=0 // loop_header
    %s10 = sphi 0, %s14
    %p11 = scmp.ge.s32.totalorder %s10, 4
    %s20 = sphi 0, %s22
    %s23 = sphi 0, %s20
    %s24 = sphi 0, %s23
    %s40 = sphi 0, %s24
    %s46 = sphi 0, %s48
    %s49 = sphi 0, %s46
    %s50 = sphi 0, %s49
    %s66 = sphi 0, %s50
    %s70 = sphi 0, %s70
    %s72 = sphi 0, %s70
    %s73 = sphi 0, %s72
    %s87 = sphi 0, %s73
    %s91 = sphi 0, %s91
    %s93 = sphi 0, %s91
    %s94 = sphi 0, %s93
    %s108 = sphi 0, %s94
    %s114 = sphi 0, %s116
    %s117 = sphi 0, %s114
    %s118 = sphi 0, %s117
    %s134 = sphi 0, %s118
  $region4: #{shared_conv_base_forward.5} parent=0 // loop_header_branch
    %13 = sbr.rel (%p11) target = $region8
  $region5: #{shared_conv_base_forward.5} parent=0 // loop_body
    %s15 = ssub.s32 %s10, 1
    %s16 = ssub.s32 %s10, 2
    %s17 = sadd.s32 %s10, 1
    %s18 = ssub.s32 %s10, %s17
    %p19 = scmp.eq.s32.totalorder %s18, 0
    %s21 = sadd.s32 %s20, 1
    %s22 = scalar_select %p19, %s20, %s21
    %p25 = pneg %p19
    %p26 = scmp.eq.s32.totalorder %s10, 1
    %p27 = por %p25, %p26
    %p28 = scmp.ne.s32.totalorder %s20, %s23
    %p29 = scmp.eq.s32.totalorder %s10, 0
    %p30 = por %p28, %p29
    %p31 = scmp.ne.s32.totalorder %s20, %s23
    %p32 = scmp.eq.s32.totalorder %s15, 1
    %p33 = por %p31, %p32
    %p34 = scmp.ne.s32.totalorder %s23, %s24
    %p35 = scmp.eq.s32.totalorder %s15, 0
    %p36 = por %p34, %p35
    %p37 = scmp.ne.s32.totalorder %s23, %s24
    %p38 = scmp.eq.s32.totalorder %s16, 1
    %p39 = por %p37, %p38
    %p41 = scmp.ne.s32.totalorder %s24, %s40
    %p42 = scmp.eq.s32.totalorder %s16, 0
    %p43 = por %p41, %p42
    %s44 = ssub.s32 %s10, %s17
    %p45 = scmp.eq.s32.totalorder %s44, 0
    %s47 = sadd.s32 %s46, 1
    %s48 = scalar_select %p45, %s46, %s47
    %p51 = pneg %p45
    %p52 = scmp.eq.s32.totalorder %s10, 1
    %p53 = por %p51, %p52
    %p54 = scmp.ne.s32.totalorder %s46, %s49
    %p55 = scmp.eq.s32.totalorder %s10, 0
    %p56 = por %p54, %p55
    %p57 = scmp.ne.s32.totalorder %s46, %s49
    %p58 = scmp.eq.s32.totalorder %s15, 1
    %p59 = por %p57, %p58
    %p60 = scmp.ne.s32.totalorder %s49, %s50
    %p61 = scmp.eq.s32.totalorder %s15, 0
    %p62 = por %p60, %p61
    %p63 = scmp.ne.s32.totalorder %s49, %s50
    %p64 = scmp.eq.s32.totalorder %s16, 1
    %p65 = por %p63, %p64
    %p67 = scmp.ne.s32.totalorder %s50, %s66
    %p68 = scmp.eq.s32.totalorder %s16, 0
    %p69 = por %p67, %p68
    %s71 = sadd.s32 %s70, 1
    %p74 = scmp.eq.s32.totalorder %s10, 1
    %p75 = scmp.ne.s32.totalorder %s70, %s72
    %p76 = scmp.eq.s32.totalorder %s10, 0
    %p77 = por %p75, %p76
    %p78 = scmp.ne.s32.totalorder %s70, %s72
    %p79 = scmp.eq.s32.totalorder %s15, 1
    %p80 = por %p78, %p79
    %p81 = scmp.ne.s32.totalorder %s72, %s73
    %p82 = scmp.eq.s32.totalorder %s15, 0
    %p83 = por %p81, %p82
    %p84 = scmp.ne.s32.totalorder %s72, %s73
    %p85 = scmp.eq.s32.totalorder %s16, 1
    %p86 = por %p84, %p85
    %p88 = scmp.ne.s32.totalorder %s73, %s87
    %p89 = scmp.eq.s32.totalorder %s16, 0
    %p90 = por %p88, %p89
    %s92 = sadd.s32 %s91, 1
    %p95 = scmp.eq.s32.totalorder %s10, 1
    %p96 = scmp.ne.s32.totalorder %s91, %s93
    %p97 = scmp.eq.s32.totalorder %s10, 0
    %p98 = por %p96, %p97
    %p99 = scmp.ne.s32.totalorder %s91, %s93
    %p100 = scmp.eq.s32.totalorder %s15, 1
    %p101 = por %p99, %p100
    %p102 = scmp.ne.s32.totalorder %s93, %s94
    %p103 = scmp.eq.s32.totalorder %s15, 0
    %p104 = por %p102, %p103
    %p105 = scmp.ne.s32.totalorder %s93, %s94
    %p106 = scmp.eq.s32.totalorder %s16, 1
    %p107 = por %p105, %p106
    %p109 = scmp.ne.s32.totalorder %s94, %s108
    %p110 = scmp.eq.s32.totalorder %s16, 0
    %p111 = por %p109, %p110
    %s112 = ssub.s32 %s10, %s17
    %p113 = scmp.eq.s32.totalorder %s112, 0
    %s115 = sadd.s32 %s114, 1
    %s116 = scalar_select %p113, %s114, %s115
    %p119 = pneg %p113
    %p120 = scmp.eq.s32.totalorder %s10, 1
    %p121 = por %p119, %p120
    %p122 = scmp.ne.s32.totalorder %s114, %s117
    %p123 = scmp.eq.s32.totalorder %s10, 0
    %p124 = por %p122, %p123
    %p125 = scmp.ne.s32.totalorder %s114, %s117
    %p126 = scmp.eq.s32.totalorder %s15, 1
    %p127 = por %p125, %p126
    %p128 = scmp.ne.s32.totalorder %s117, %s118
    %p129 = scmp.eq.s32.totalorder %s15, 0
    %p130 = por %p128, %p129
    %p131 = scmp.ne.s32.totalorder %s117, %s118
    %p132 = scmp.eq.s32.totalorder %s16, 1
    %p133 = por %p131, %p132
    %p135 = scmp.ne.s32.totalorder %s118, %s134
    %p136 = scmp.eq.s32.totalorder %s16, 0
    %p137 = por %p135, %p136
    %p138 = scmp.le.s32.totalorder 1, %s10
    %p139 = scmp.lt.s32.totalorder %s10, 3
    %p140 = pnand %p138, %p139
    %p141 = pneg %p140
    // Predicated region
    $region9: #{shared_conv_base_forward.5} parent=5 // pred_check
      _
    $region10: #{shared_conv_base_forward.5} parent=5 // pred_check_branch
      %143 = sbr.rel (%p140) target = $region12
    $region11: #{shared_conv_base_forward.5} parent=5 // pred_region
      %s144 = ssub.s32 %s10, 1
      // Predicated region
      $region13: #{shared_conv_base_forward.5} parent=11 // pred_check
        %p145 = pneg %p83
      $region14: #{shared_conv_base_forward.5} parent=11 // pred_check_branch
        %147 = sbr.rel (%p145) target = $region16
      $region15: #{shared_conv_base_forward.5} parent=11 // pred_region
        _
      $region16: #{shared_conv_base_forward.5} parent=11 // pred_fallthru
        _
      // Predicated region
      $region17: #{shared_conv_base_forward.5} parent=11 // pred_check
        %p148 = pneg %p104
      $region18: #{shared_conv_base_forward.5} parent=11 // pred_check_branch
        %150 = sbr.rel (%p148) target = $region20
      $region19: #{shared_conv_base_forward.5} parent=11 // pred_region
        _
      $region20: #{shared_conv_base_forward.5} parent=11 // pred_fallthru
        _
    $region12: #{shared_conv_base_forward.5} parent=5 // pred_fallthru
      _
    %p151 = scmp.lt.s32.totalorder %s10, 2
    // Predicated region
    $region21: #{shared_conv_base_forward.5} parent=5 // pred_check
      %p152 = pneg %p151
    $region22: #{shared_conv_base_forward.5} parent=5 // pred_check_branch
      %154 = sbr.rel (%p152) target = $region24
    $region23: #{shared_conv_base_forward.5} parent=5 // pred_region
      // Predicated region
      $region25: #{shared_conv_base_forward.5} parent=23 // pred_check
        %p155 = pneg %p30
      $region26: #{shared_conv_base_forward.5} parent=23 // pred_check_branch
        %157 = sbr.rel (%p155) target = $region28
      $region27: #{shared_conv_base_forward.5} parent=23 // pred_region
        %p158 = scmp.lt.s32.totalorder %s10, 1
        %s159 = scalar_select %p158, %s10, 1
        %s160 = smul.addr %s159, 6
        %s161 = smul.addr %s160, 2
        %s162 = scalar_lea.vmem %s0, %s161
      $region28: #{shared_conv_base_forward.5} parent=23 // pred_fallthru
        _
      // Predicated region
      $region29: #{shared_conv_base_forward.5} parent=23 // pred_check
        %p163 = pneg %p56
      $region30: #{shared_conv_base_forward.5} parent=23 // pred_check_branch
        %165 = sbr.rel (%p163) target = $region32
      $region31: #{shared_conv_base_forward.5} parent=23 // pred_region
        %p166 = scmp.lt.s32.totalorder %s10, 1
        %s167 = scalar_select %p166, %s10, 1
        %s168 = smul.addr %s167, 4
        %s169 = smul.addr %s168, 2
        %s170 = scalar_lea.vmem %s1, %s169
      $region32: #{shared_conv_base_forward.5} parent=23 // pred_fallthru
        _
    $region24: #{shared_conv_base_forward.5} parent=5 // pred_fallthru
      _
    %p171 = scmp.le.s32.totalorder 1, %s10
    %p172 = scmp.lt.s32.totalorder %s10, 3
    %p173 = pnand %p171, %p172
    %p174 = pneg %p173
    // Predicated region
    $region33: #{shared_conv_base_forward.5} parent=5 // pred_check
      _
    $region34: #{shared_conv_base_forward.5} parent=5 // pred_check_branch
      %176 = sbr.rel (%p173) target = $region36
    $region35: #{shared_conv_base_forward.5} parent=5 // pred_region
      %s177 = ssub.s32 %s10, 1
      %p178 = scmp.lt.s32.totalorder %s15, 1
      %s179 = scalar_select %p178, %s15, 1
      %s180 = smul.addr %s179, 6
      %s181 = smul.addr %s180, 2
      %s182 = scalar_lea.vmem %s0, %s181
      %p183 = pneg %p36
      %p184 = pneg %p33
      %p185 = scmp.lt.s32.totalorder %s15, 1
      %s186 = scalar_select %p185, %s15, 1
      %s187 = smul.addr %s186, 4
      %s188 = smul.addr %s187, 2
      %s189 = scalar_lea.vmem %s1, %s188
      %p190 = pneg %p62
      %p191 = pneg %p59
      %p192 = pneg %p83
      %p193 = pneg %p80
      %p194 = pneg %p104
      %p195 = pneg %p101
      %p196 = pneg %p130
      %p197 = pneg %p127
      %p198 = scmp.lt.s32.totalorder %s15, 1
      %s199 = scalar_select %p198, %s15, 1
      %s200 = smul.addr %s199, 2
      %s201 = smul.addr %s200, 4
      %s202 = scalar_lea.vmem %s4, %s201
      %p203 = scmp.lt.s32.totalorder %s15, 1
      %s204 = scalar_select %p203, %s15, 1
      %s205 = smul.addr %s204, 6
      %s206 = smul.addr %s205, 2
      %s207 = scalar_lea.vmem %s0, %s206
      %p208 = scmp.lt.s32.totalorder %s15, 1
      %s209 = scalar_select %p208, %s15, 1
      %s210 = smul.addr %s209, 4
      %s211 = smul.addr %s210, 2
      %s212 = scalar_lea.vmem %s1, %s211
      %p213 = scmp.lt.s32.totalorder %s15, 1
      %s214 = scalar_select %p213, %s15, 1
      %s215 = smul.addr %s214, 2
      %s216 = smul.addr %s215, 4
      %s217 = scalar_lea.vmem %s4, %s216
      %v218 = vld [vmem:[%s207] sm:$0xf]
      %v219 = vld [vmem:[%s207 + $0x4] sm:$0xf]
      %v220 = vld [vmem:[%s207 + $0x8] sm:$0xf]
      %v221 = vld [vmem:[%s212] sm:$0xf]
      %v222 = vld [vmem:[%s212 + $0x4] sm:$0xf]
      %v226 = vunpack.c.l.s4 1966171168
      %v227 = vunpack.c.0.s8 %v226
      %v228 = vlaneseq
      %v229 = vshrl.u32 %v228, 7
      %v230 = vsub.s32 %v227, %v229
      %v231 = vrot.slane %v218, %v230
      %v233 = vunpack.c.l.s4 1966171168
      %v234 = vunpack.c.0.s8 %v233
      %v235 = vlaneseq
      %v236 = vshrl.u32 %v235, 7
      %v237 = vsub.s32 %v234, %v236
      %v238 = vrot.slane %v219, %v237
      %v239 = vcombine.high %v231, %v231
      %v240 = vcombine.high %v238, %v238
      %vm241 = vsmask.f32 256
      %vm242 = vsmask.f32 1284
      %vm243 = vmor %vm241, %vm242
      %vm244 = vsmask.f32 2312
      %vm245 = vmor %vm243, %vm244
      %vm246 = vsmask.f32 3340
      %vm247 = vmor %vm245, %vm246
      %vm248 = vsmask.f32 4368
      %vm249 = vmor %vm247, %vm248
      %vm250 = vsmask.f32 5396
      %vm251 = vmor %vm249, %vm250
      %vm252 = vsmask.f32 6424
      %vm253 = vmor %vm251, %vm252
      %vm254 = vsmask.f32 7452
      %vm255 = vmor %vm253, %vm254
      %v257 = vshrl.u32 %v231, 16
      %v259 = vrot.slane %v257, 7
      %v260 = vrot.slane %v259, 1
      %v262 = vshll.u32 %v239, 16
      %v264 = vsel %vm255, %v260, %v262
      %v266 = vshrl.u32 %v238, 16
      %v268 = vrot.slane %v266, 7
      %v269 = vrot.slane %v268, 1
      %v271 = vshll.u32 %v240, 16
      %v273 = vsel %vm255, %v269, %v271
      %v274 = vld [vmem:[%s2] sm:$0xff]
      %v275 = vld [vmem:[%s2 + $0x8] sm:$0xff]
      %v276 = vld [vmem:[%s2 + $0x10] sm:$0xff]
      %v277 = vld [vmem:[%s2 + $0x18] sm:$0xff]
      %v278 = vld [vmem:[%s2 + $0x20] sm:$0xff]
      %v279 = vld [vmem:[%s2 + $0x28] sm:$0xff]
      %v280 = vld [vmem:[%s2 + $0x30] sm:$0xff]
      %v281 = vld [vmem:[%s2 + $0x38] sm:$0xff]
      %v282 = vld [vmem:[%s2 + $0x40] sm:$0xff]
      %v283 = vld [vmem:[%s2 + $0x48] sm:$0xff]
      %v284 = vld [vmem:[%s2 + $0x50] sm:$0xff]
      %v285 = vld [vmem:[%s2 + $0x58] sm:$0xff]
      %v286 = vld [vmem:[%s2 + $0x60] sm:$0xff]
      %v287 = vld [vmem:[%s2 + $0x68] sm:$0xff]
      %v288 = vld [vmem:[%s2 + $0x70] sm:$0xff]
      %v289 = vld [vmem:[%s2 + $0x78] sm:$0xff]
      %v290 = vld [vmem:[%s2 + $0x80] sm:$0xff]
      %v291 = vld [vmem:[%s2 + $0x88] sm:$0xff]
      %v292 = vld [vmem:[%s2 + $0x90] sm:$0xff]
      %v293 = vld [vmem:[%s2 + $0x98] sm:$0xff]
      %v294 = vld [vmem:[%s2 + $0xa0] sm:$0xff]
      %v295 = vld [vmem:[%s2 + $0xa8] sm:$0xff]
      %v296 = vld [vmem:[%s2 + $0xb0] sm:$0xff]
      %v297 = vld [vmem:[%s2 + $0xb8] sm:$0xff]
      %v298 = vld [vmem:[%s2 + $0xc0] sm:$0xff]
      %v299 = vld [vmem:[%s2 + $0xc8] sm:$0xff]
      %v300 = vld [vmem:[%s2 + $0xd0] sm:$0xff]
      %v301 = vld [vmem:[%s2 + $0xd8] sm:$0xff]
      %v302 = vld [vmem:[%s2 + $0xe0] sm:$0xff]
      %v303 = vld [vmem:[%s2 + $0xe8] sm:$0xff]
      %v304 = vld [vmem:[%s2 + $0xf0] sm:$0xff]
      %v305 = vld [vmem:[%s2 + $0xf8] sm:$0xff]
      %s306 = scalar_lea.vmem %s2, 256
      %v307 = vld [vmem:[%s306] sm:$0xff]
      %v308 = vld [vmem:[%s306 + $0x8] sm:$0xff]
      %v309 = vld [vmem:[%s306 + $0x10] sm:$0xff]
      %v310 = vld [vmem:[%s306 + $0x18] sm:$0xff]
      %v311 = vld [vmem:[%s306 + $0x20] sm:$0xff]
      %v312 = vld [vmem:[%s306 + $0x28] sm:$0xff]
      %v313 = vld [vmem:[%s306 + $0x30] sm:$0xff]
      %v314 = vld [vmem:[%s306 + $0x38] sm:$0xff]
      %v315 = vld [vmem:[%s306 + $0x40] sm:$0xff]
      %v316 = vld [vmem:[%s306 + $0x48] sm:$0xff]
      %v317 = vld [vmem:[%s306 + $0x50] sm:$0xff]
      %v318 = vld [vmem:[%s306 + $0x58] sm:$0xff]
      %v319 = vld [vmem:[%s306 + $0x60] sm:$0xff]
      %v320 = vld [vmem:[%s306 + $0x68] sm:$0xff]
      %v321 = vld [vmem:[%s306 + $0x70] sm:$0xff]
      %v322 = vld [vmem:[%s306 + $0x78] sm:$0xff]
      %v323 = vld [vmem:[%s306 + $0x80] sm:$0xff]
      %v324 = vld [vmem:[%s306 + $0x88] sm:$0xff]
      %v325 = vld [vmem:[%s306 + $0x90] sm:$0xff]
      %v326 = vld [vmem:[%s306 + $0x98] sm:$0xff]
      %v327 = vld [vmem:[%s306 + $0xa0] sm:$0xff]
      %v328 = vld [vmem:[%s306 + $0xa8] sm:$0xff]
      %v329 = vld [vmem:[%s306 + $0xb0] sm:$0xff]
      %v330 = vld [vmem:[%s306 + $0xb8] sm:$0xff]
      %v331 = vld [vmem:[%s306 + $0xc0] sm:$0xff]
      %v332 = vld [vmem:[%s306 + $0xc8] sm:$0xff]
      %v333 = vld [vmem:[%s306 + $0xd0] sm:$0xff]
      %v334 = vld [vmem:[%s306 + $0xd8] sm:$0xff]
      %v335 = vld [vmem:[%s306 + $0xe0] sm:$0xff]
      %v336 = vld [vmem:[%s306 + $0xe8] sm:$0xff]
      %v337 = vld [vmem:[%s306 + $0xf0] sm:$0xff]
      %v338 = vld [vmem:[%s306 + $0xf8] sm:$0xff]
      %v339 = vcombine.low %v264, %v273
      %v341 = vunpack.c.l.s4 1966171168
      %v342 = vunpack.c.0.s8 %v341
      %v343 = vlaneseq
      %v344 = vshrl.u32 %v343, 7
      %v345 = vsub.s32 %v342, %v344
      %v346 = vrot.slane %v339, %v345
      %v347 = vcombine.high %v346, %v346
      %v349 = vunpack.c.l.s4 1966171168
      %v350 = vunpack.c.0.s8 %v349
      %v351 = vlaneseq
      %v352 = vshrl.u32 %v351, 7
      %v353 = vsub.s32 %v350, %v352
      %v354 = vrot.slane %v346, %v353
      %v356 = vunpack.c.l.s4 1966171168
      %v357 = vunpack.c.0.s8 %v356
      %v358 = vlaneseq
      %v359 = vshrl.u32 %v358, 7
      %v360 = vsub.s32 %v357, %v359
      %v361 = vrot.slane %v347, %v360
      %v396 = vunpack.c.l.b16 %v307
      %v397 = vunpack.c.h.b16 %v307
      %v398 = vunpack.c.l.b16 %v308
      %v399 = vunpack.c.h.b16 %v308
      %v400 = vunpack.c.l.b16 %v309
      %v401 = vunpack.c.h.b16 %v309
      %v402 = vunpack.c.l.b16 %v310
      %v403 = vunpack.c.h.b16 %v310
      %v404 = vunpack.c.l.b16 %v311
      %v405 = vunpack.c.h.b16 %v311
      %v406 = vunpack.c.l.b16 %v312
      %v407 = vunpack.c.h.b16 %v312
      %v408 = vunpack.c.l.b16 %v313
      %v409 = vunpack.c.h.b16 %v313
      %v410 = vunpack.c.l.b16 %v314
      %v411 = vunpack.c.h.b16 %v314
      %v412 = vunpack.c.l.b16 %v315
      %v413 = vunpack.c.h.b16 %v315
      %v414 = vunpack.c.l.b16 %v316
      %v415 = vunpack.c.h.b16 %v316
      %v416 = vunpack.c.l.b16 %v317
      %v417 = vunpack.c.h.b16 %v317
      %v418 = vunpack.c.l.b16 %v318
      %v419 = vunpack.c.h.b16 %v318
      %v420 = vunpack.c.l.b16 %v319
      %v421 = vunpack.c.h.b16 %v319
      %v422 = vunpack.c.l.b16 %v320
      %v423 = vunpack.c.h.b16 %v320
      %v424 = vunpack.c.l.b16 %v321
      %v425 = vunpack.c.h.b16 %v321
      %v426 = vunpack.c.l.b16 %v322
      %v427 = vunpack.c.h.b16 %v322
      %v428 = vunpack.c.l.b16 %v323
      %v429 = vunpack.c.h.b16 %v323
      %v430 = vunpack.c.l.b16 %v324
      %v431 = vunpack.c.h.b16 %v324
      %v432 = vunpack.c.l.b16 %v325
      %v433 = vunpack.c.h.b16 %v325
      %v434 = vunpack.c.l.b16 %v326
      %v435 = vunpack.c.h.b16 %v326
      %v436 = vunpack.c.l.b16 %v327
      %v437 = vunpack.c.h.b16 %v327
      %v438 = vunpack.c.l.b16 %v328
      %v439 = vunpack.c.h.b16 %v328
      %v440 = vunpack.c.l.b16 %v329
      %v441 = vunpack.c.h.b16 %v329
      %v442 = vunpack.c.l.b16 %v330
      %v443 = vunpack.c.h.b16 %v330
      %v444 = vunpack.c.l.b16 %v331
      %v445 = vunpack.c.h.b16 %v331
      %v446 = vunpack.c.l.b16 %v332
      %v447 = vunpack.c.h.b16 %v332
      %v448 = vunpack.c.l.b16 %v333
      %v449 = vunpack.c.h.b16 %v333
      %v450 = vunpack.c.l.b16 %v334
      %v451 = vunpack.c.h.b16 %v334
      %v452 = vunpack.c.l.b16 %v335
      %v453 = vunpack.c.h.b16 %v335
      %v454 = vunpack.c.l.b16 %v336
      %v455 = vunpack.c.h.b16 %v336
      %v456 = vunpack.c.l.b16 %v337
      %v457 = vunpack.c.h.b16 %v337
      %v458 = vunpack.c.l.b16 %v338
      %v459 = vunpack.c.h.b16 %v338
      %v460 = vpack.c.b16 %v398, %v396
      %v461 = vpack.c.b16 %v399, %v397
      %v462 = vpack.c.b16 %v402, %v400
      %v463 = vpack.c.b16 %v403, %v401
      %v464 = vpack.c.b16 %v406, %v404
      %v465 = vpack.c.b16 %v407, %v405
      %v466 = vpack.c.b16 %v410, %v408
      %v467 = vpack.c.b16 %v411, %v409
      %v468 = vpack.c.b16 %v414, %v412
      %v469 = vpack.c.b16 %v415, %v413
      %v470 = vpack.c.b16 %v418, %v416
      %v471 = vpack.c.b16 %v419, %v417
      %v472 = vpack.c.b16 %v422, %v420
      %v473 = vpack.c.b16 %v423, %v421
      %v474 = vpack.c.b16 %v426, %v424
      %v475 = vpack.c.b16 %v427, %v425
      %v476 = vpack.c.b16 %v430, %v428
      %v477 = vpack.c.b16 %v431, %v429
      %v478 = vpack.c.b16 %v434, %v432
      %v479 = vpack.c.b16 %v435, %v433
      %v480 = vpack.c.b16 %v438, %v436
      %v481 = vpack.c.b16 %v439, %v437
      %v482 = vpack.c.b16 %v442, %v440
      %v483 = vpack.c.b16 %v443, %v441
      %v484 = vpack.c.b16 %v446, %v444
      %v485 = vpack.c.b16 %v447, %v445
      %v486 = vpack.c.b16 %v450, %v448
      %v487 = vpack.c.b16 %v451, %v449
      %v488 = vpack.c.b16 %v454, %v452
      %v489 = vpack.c.b16 %v455, %v453
      %v490 = vpack.c.b16 %v458, %v456
      %v491 = vpack.c.b16 %v459, %v457
      %524 = vmatprep.subr.bf16.mxu0 %v461
      %525 = vmatpush1.bf16.msra.mxu0 %v460
      %526 = vmatprep.subr.bf16.mxu0 %v463
      %527 = vmatpush1.bf16.msra.mxu0 %v462
      %528 = vmatprep.subr.bf16.mxu0 %v465
      %529 = vmatpush1.bf16.msra.mxu0 %v464
      %530 = vmatprep.subr.bf16.mxu0 %v467
      %531 = vmatpush1.bf16.msra.mxu0 %v466
      %532 = vmatprep.subr.bf16.mxu0 %v469
      %533 = vmatpush1.bf16.msra.mxu0 %v468
      %534 = vmatprep.subr.bf16.mxu0 %v471
      %535 = vmatpush1.bf16.msra.mxu0 %v470
      %536 = vmatprep.subr.bf16.mxu0 %v473
      %537 = vmatpush1.bf16.msra.mxu0 %v472
      %538 = vmatprep.subr.bf16.mxu0 %v475
      %539 = vmatpush1.bf16.msra.mxu0 %v474
      %540 = vmatprep.subr.bf16.mxu0 %v477
      %541 = vmatpush1.bf16.msra.mxu0 %v476
      %542 = vmatprep.subr.bf16.mxu0 %v479
      %543 = vmatpush1.bf16.msra.mxu0 %v478
      %544 = vmatprep.subr.bf16.mxu0 %v481
      %545 = vmatpush1.bf16.msra.mxu0 %v480
      %546 = vmatprep.subr.bf16.mxu0 %v483
      %547 = vmatpush1.bf16.msra.mxu0 %v482
      %548 = vmatprep.subr.bf16.mxu0 %v485
      %549 = vmatpush1.bf16.msra.mxu0 %v484
      %550 = vmatprep.subr.bf16.mxu0 %v487
      %551 = vmatpush1.bf16.msra.mxu0 %v486
      %552 = vmatprep.subr.bf16.mxu0 %v489
      %553 = vmatpush1.bf16.msra.mxu0 %v488
      %554 = vmatprep.subr.bf16.mxu0 %v491
      %555 = vmatpush1.bf16.msra.mxu0 %v490
      %556 = vmatprep.mubr.bf16.mxu0 %v361
      %557 = vmatmul.mubr.bf16.gmra.mrb[0].mxu0 %v354
      %v558 = vpop.f32.mrb[0].mxu0
      %v559 = vadd.f32 0.0, %v558
      %v560 = vpop.f32.mrb[0].mxu0
      %v561 = vadd.f32 0.0, %v560
      %v562 = vpop.f32.mrb[0].mxu0
      %v563 = vpop.f32.mrb[0].mxu0
      %564 = vdwg.mxu0
      %v565 = vcombine.low %v231, %v238
      %v567 = vunpack.c.l.s4 1966171168
      %v568 = vunpack.c.0.s8 %v567
      %v569 = vlaneseq
      %v570 = vshrl.u32 %v569, 7
      %v571 = vsub.s32 %v568, %v570
      %v572 = vrot.slane %v565, %v571
      %v573 = vcombine.high %v572, %v572
      %v575 = vunpack.c.l.s4 1966171168
      %v576 = vunpack.c.0.s8 %v575
      %v577 = vlaneseq
      %v578 = vshrl.u32 %v577, 7
      %v579 = vsub.s32 %v576, %v578
      %v580 = vrot.slane %v572, %v579
      %v582 = vunpack.c.l.s4 1966171168
      %v583 = vunpack.c.0.s8 %v582
      %v584 = vlaneseq
      %v585 = vshrl.u32 %v584, 7
      %v586 = vsub.s32 %v583, %v585
      %v587 = vrot.slane %v573, %v586
      %v622 = vunpack.c.l.b16 %v274
      %v623 = vunpack.c.h.b16 %v274
      %v624 = vunpack.c.l.b16 %v275
      %v625 = vunpack.c.h.b16 %v275
      %v626 = vunpack.c.l.b16 %v276
      %v627 = vunpack.c.h.b16 %v276
      %v628 = vunpack.c.l.b16 %v277
      %v629 = vunpack.c.h.b16 %v277
      %v630 = vunpack.c.l.b16 %v278
      %v631 = vunpack.c.h.b16 %v278
      %v632 = vunpack.c.l.b16 %v279
      %v633 = vunpack.c.h.b16 %v279
      %v634 = vunpack.c.l.b16 %v280
      %v635 = vunpack.c.h.b16 %v280
      %v636 = vunpack.c.l.b16 %v281
      %v637 = vunpack.c.h.b16 %v281
      %v638 = vunpack.c.l.b16 %v282
      %v639 = vunpack.c.h.b16 %v282
      %v640 = vunpack.c.l.b16 %v283
      %v641 = vunpack.c.h.b16 %v283
      %v642 = vunpack.c.l.b16 %v284
      %v643 = vunpack.c.h.b16 %v284
      %v644 = vunpack.c.l.b16 %v285
      %v645 = vunpack.c.h.b16 %v285
      %v646 = vunpack.c.l.b16 %v286
      %v647 = vunpack.c.h.b16 %v286
      %v648 = vunpack.c.l.b16 %v287
      %v649 = vunpack.c.h.b16 %v287
      %v650 = vunpack.c.l.b16 %v288
      %v651 = vunpack.c.h.b16 %v288
      %v652 = vunpack.c.l.b16 %v289
      %v653 = vunpack.c.h.b16 %v289
      %v654 = vunpack.c.l.b16 %v290
      %v655 = vunpack.c.h.b16 %v290
      %v656 = vunpack.c.l.b16 %v291
      %v657 = vunpack.c.h.b16 %v291
      %v658 = vunpack.c.l.b16 %v292
      %v659 = vunpack.c.h.b16 %v292
      %v660 = vunpack.c.l.b16 %v293
      %v661 = vunpack.c.h.b16 %v293
      %v662 = vunpack.c.l.b16 %v294
      %v663 = vunpack.c.h.b16 %v294
      %v664 = vunpack.c.l.b16 %v295
      %v665 = vunpack.c.h.b16 %v295
      %v666 = vunpack.c.l.b16 %v296
      %v667 = vunpack.c.h.b16 %v296
      %v668 = vunpack.c.l.b16 %v297
      %v669 = vunpack.c.h.b16 %v297
      %v670 = vunpack.c.l.b16 %v298
      %v671 = vunpack.c.h.b16 %v298
      %v672 = vunpack.c.l.b16 %v299
      %v673 = vunpack.c.h.b16 %v299
      %v674 = vunpack.c.l.b16 %v300
      %v675 = vunpack.c.h.b16 %v300
      %v676 = vunpack.c.l.b16 %v301
      %v677 = vunpack.c.h.b16 %v301
      %v678 = vunpack.c.l.b16 %v302
      %v679 = vunpack.c.h.b16 %v302
      %v680 = vunpack.c.l.b16 %v303
      %v681 = vunpack.c.h.b16 %v303
      %v682 = vunpack.c.l.b16 %v304
      %v683 = vunpack.c.h.b16 %v304
      %v684 = vunpack.c.l.b16 %v305
      %v685 = vunpack.c.h.b16 %v305
      %v686 = vpack.c.b16 %v624, %v622
      %v687 = vpack.c.b16 %v625, %v623
      %v688 = vpack.c.b16 %v628, %v626
      %v689 = vpack.c.b16 %v629, %v627
      %v690 = vpack.c.b16 %v632, %v630
      %v691 = vpack.c.b16 %v633, %v631
      %v692 = vpack.c.b16 %v636, %v634
      %v693 = vpack.c.b16 %v637, %v635
      %v694 = vpack.c.b16 %v640, %v638
      %v695 = vpack.c.b16 %v641, %v639
      %v696 = vpack.c.b16 %v644, %v642
      %v697 = vpack.c.b16 %v645, %v643
      %v698 = vpack.c.b16 %v648, %v646
      %v699 = vpack.c.b16 %v649, %v647
      %v700 = vpack.c.b16 %v652, %v650
      %v701 = vpack.c.b16 %v653, %v651
      %v702 = vpack.c.b16 %v656, %v654
      %v703 = vpack.c.b16 %v657, %v655
      %v704 = vpack.c.b16 %v660, %v658
      %v705 = vpack.c.b16 %v661, %v659
      %v706 = vpack.c.b16 %v664, %v662
      %v707 = vpack.c.b16 %v665, %v663
      %v708 = vpack.c.b16 %v668, %v666
      %v709 = vpack.c.b16 %v669, %v667
      %v710 = vpack.c.b16 %v672, %v670
      %v711 = vpack.c.b16 %v673, %v671
      %v712 = vpack.c.b16 %v676, %v674
      %v713 = vpack.c.b16 %v677, %v675
      %v714 = vpack.c.b16 %v680, %v678
      %v715 = vpack.c.b16 %v681, %v679
      %v716 = vpack.c.b16 %v684, %v682
      %v717 = vpack.c.b16 %v685, %v683
      %750 = vmatprep.subr.bf16.mxu0 %v687
      %751 = vmatpush1.bf16.msra.mxu0 %v686
      %752 = vmatprep.subr.bf16.mxu0 %v689
      %753 = vmatpush1.bf16.msra.mxu0 %v688
      %754 = vmatprep.subr.bf16.mxu0 %v691
      %755 = vmatpush1.bf16.msra.mxu0 %v690
      %756 = vmatprep.subr.bf16.mxu0 %v693
      %757 = vmatpush1.bf16.msra.mxu0 %v692
      %758 = vmatprep.subr.bf16.mxu0 %v695
      %759 = vmatpush1.bf16.msra.mxu0 %v694
      %760 = vmatprep.subr.bf16.mxu0 %v697
      %761 = vmatpush1.bf16.msra.mxu0 %v696
      %762 = vmatprep.subr.bf16.mxu0 %v699
      %763 = vmatpush1.bf16.msra.mxu0 %v698
      %764 = vmatprep.subr.bf16.mxu0 %v701
      %765 = vmatpush1.bf16.msra.mxu0 %v700
      %766 = vmatprep.subr.bf16.mxu0 %v703
      %767 = vmatpush1.bf16.msra.mxu0 %v702
      %768 = vmatprep.subr.bf16.mxu0 %v705
      %769 = vmatpush1.bf16.msra.mxu0 %v704
      %770 = vmatprep.subr.bf16.mxu0 %v707
      %771 = vmatpush1.bf16.msra.mxu0 %v706
      %772 = vmatprep.subr.bf16.mxu0 %v709
      %773 = vmatpush1.bf16.msra.mxu0 %v708
      %774 = vmatprep.subr.bf16.mxu0 %v711
      %775 = vmatpush1.bf16.msra.mxu0 %v710
      %776 = vmatprep.subr.bf16.mxu0 %v713
      %777 = vmatpush1.bf16.msra.mxu0 %v712
      %778 = vmatprep.subr.bf16.mxu0 %v715
      %779 = vmatpush1.bf16.msra.mxu0 %v714
      %780 = vmatprep.subr.bf16.mxu0 %v717
      %781 = vmatpush1.bf16.msra.mxu0 %v716
      %782 = vmatprep.mubr.bf16.mxu0 %v587
      %783 = vmatmul.mubr.bf16.gmra.mrb[0].mxu0 %v580
      %v784 = vpop.f32.mrb[0].mxu0
      %v785 = vadd.f32 %v559, %v784
      %v786 = vpop.f32.mrb[0].mxu0
      %v787 = vadd.f32 %v561, %v786
      %v788 = vpop.f32.mrb[0].mxu0
      %v789 = vpop.f32.mrb[0].mxu0
      %790 = vdwg.mxu0
      %v794 = vunpack.c.l.s4 1966171168
      %v795 = vunpack.c.0.s8 %v794
      %v796 = vlaneseq
      %v797 = vshrl.u32 %v796, 7
      %v798 = vsub.s32 %v795, %v797
      %v799 = vrot.slane %v221, %v798
      %v801 = vunpack.c.l.s4 1966171168
      %v802 = vunpack.c.0.s8 %v801
      %v803 = vlaneseq
      %v804 = vshrl.u32 %v803, 7
      %v805 = vsub.s32 %v802, %v804
      %v806 = vrot.slane %v222, %v805
      %v807 = vcombine.high %v799, %v799
      %v808 = vcombine.high %v806, %v806
      %v810 = vshrl.u32 %v799, 16
      %v812 = vrot.slane %v810, 7
      %v813 = vrot.slane %v812, 1
      %v815 = vshll.u32 %v807, 16
      %v817 = vsel %vm255, %v813, %v815
      %v819 = vshrl.u32 %v806, 16
      %v821 = vrot.slane %v819, 7
      %v822 = vrot.slane %v821, 1
      %v824 = vshll.u32 %v808, 16
      %v826 = vsel %vm255, %v822, %v824
      %s827 = scalar_lea.vmem %s2, 512
      %v828 = vld [vmem:[%s827] sm:$0xff]
      %v829 = vld [vmem:[%s827 + $0x8] sm:$0xff]
      %v830 = vld [vmem:[%s827 + $0x10] sm:$0xff]
      %v831 = vld [vmem:[%s827 + $0x18] sm:$0xff]
      %v832 = vld [vmem:[%s827 + $0x20] sm:$0xff]
      %v833 = vld [vmem:[%s827 + $0x28] sm:$0xff]
      %v834 = vld [vmem:[%s827 + $0x30] sm:$0xff]
      %v835 = vld [vmem:[%s827 + $0x38] sm:$0xff]
      %v836 = vld [vmem:[%s827 + $0x40] sm:$0xff]
      %v837 = vld [vmem:[%s827 + $0x48] sm:$0xff]
      %v838 = vld [vmem:[%s827 + $0x50] sm:$0xff]
      %v839 = vld [vmem:[%s827 + $0x58] sm:$0xff]
      %v840 = vld [vmem:[%s827 + $0x60] sm:$0xff]
      %v841 = vld [vmem:[%s827 + $0x68] sm:$0xff]
      %v842 = vld [vmem:[%s827 + $0x70] sm:$0xff]
      %v843 = vld [vmem:[%s827 + $0x78] sm:$0xff]
      %v844 = vld [vmem:[%s827 + $0x80] sm:$0xff]
      %v845 = vld [vmem:[%s827 + $0x88] sm:$0xff]
      %v846 = vld [vmem:[%s827 + $0x90] sm:$0xff]
      %v847 = vld [vmem:[%s827 + $0x98] sm:$0xff]
      %v848 = vld [vmem:[%s827 + $0xa0] sm:$0xff]
      %v849 = vld [vmem:[%s827 + $0xa8] sm:$0xff]
      %v850 = vld [vmem:[%s827 + $0xb0] sm:$0xff]
      %v851 = vld [vmem:[%s827 + $0xb8] sm:$0xff]
      %v852 = vld [vmem:[%s827 + $0xc0] sm:$0xff]
      %v853 = vld [vmem:[%s827 + $0xc8] sm:$0xff]
      %v854 = vld [vmem:[%s827 + $0xd0] sm:$0xff]
      %v855 = vld [vmem:[%s827 + $0xd8] sm:$0xff]
      %v856 = vld [vmem:[%s827 + $0xe0] sm:$0xff]
      %v857 = vld [vmem:[%s827 + $0xe8] sm:$0xff]
      %v858 = vld [vmem:[%s827 + $0xf0] sm:$0xff]
      %v859 = vld [vmem:[%s827 + $0xf8] sm:$0xff]
      %v860 = vcombine.low %v799, %v806
      %v862 = vunpack.c.l.s4 1966171168
      %v863 = vunpack.c.0.s8 %v862
      %v864 = vlaneseq
      %v865 = vshrl.u32 %v864, 7
      %v866 = vsub.s32 %v863, %v865
      %v867 = vrot.slane %v860, %v866
      %v868 = vcombine.high %v867, %v867
      %v870 = vunpack.c.l.s4 1966171168
      %v871 = vunpack.c.0.s8 %v870
      %v872 = vlaneseq
      %v873 = vshrl.u32 %v872, 7
      %v874 = vsub.s32 %v871, %v873
      %v875 = vrot.slane %v867, %v874
      %v877 = vunpack.c.l.s4 1966171168
      %v878 = vunpack.c.0.s8 %v877
      %v879 = vlaneseq
      %v880 = vshrl.u32 %v879, 7
      %v881 = vsub.s32 %v878, %v880
      %v882 = vrot.slane %v868, %v881
      %v917 = vunpack.c.l.b16 %v828
      %v918 = vunpack.c.h.b16 %v828
      %v919 = vunpack.c.l.b16 %v829
      %v920 = vunpack.c.h.b16 %v829
      %v921 = vunpack.c.l.b16 %v830
      %v922 = vunpack.c.h.b16 %v830
      %v923 = vunpack.c.l.b16 %v831
      %v924 = vunpack.c.h.b16 %v831
      %v925 = vunpack.c.l.b16 %v832
      %v926 = vunpack.c.h.b16 %v832
      %v927 = vunpack.c.l.b16 %v833
      %v928 = vunpack.c.h.b16 %v833
      %v929 = vunpack.c.l.b16 %v834
      %v930 = vunpack.c.h.b16 %v834
      %v931 = vunpack.c.l.b16 %v835
      %v932 = vunpack.c.h.b16 %v835
      %v933 = vunpack.c.l.b16 %v836
      %v934 = vunpack.c.h.b16 %v836
      %v935 = vunpack.c.l.b16 %v837
      %v936 = vunpack.c.h.b16 %v837
      %v937 = vunpack.c.l.b16 %v838
      %v938 = vunpack.c.h.b16 %v838
      %v939 = vunpack.c.l.b16 %v839
      %v940 = vunpack.c.h.b16 %v839
      %v941 = vunpack.c.l.b16 %v840
      %v942 = vunpack.c.h.b16 %v840
      %v943 = vunpack.c.l.b16 %v841
      %v944 = vunpack.c.h.b16 %v841
      %v945 = vunpack.c.l.b16 %v842
      %v946 = vunpack.c.h.b16 %v842
      %v947 = vunpack.c.l.b16 %v843
      %v948 = vunpack.c.h.b16 %v843
      %v949 = vunpack.c.l.b16 %v844
      %v950 = vunpack.c.h.b16 %v844
      %v951 = vunpack.c.l.b16 %v845
      %v952 = vunpack.c.h.b16 %v845
      %v953 = vunpack.c.l.b16 %v846
      %v954 = vunpack.c.h.b16 %v846
      %v955 = vunpack.c.l.b16 %v847
      %v956 = vunpack.c.h.b16 %v847
      %v957 = vunpack.c.l.b16 %v848
      %v958 = vunpack.c.h.b16 %v848
      %v959 = vunpack.c.l.b16 %v849
      %v960 = vunpack.c.h.b16 %v849
      %v961 = vunpack.c.l.b16 %v850
      %v962 = vunpack.c.h.b16 %v850
      %v963 = vunpack.c.l.b16 %v851
      %v964 = vunpack.c.h.b16 %v851
      %v965 = vunpack.c.l.b16 %v852
      %v966 = vunpack.c.h.b16 %v852
      %v967 = vunpack.c.l.b16 %v853
      %v968 = vunpack.c.h.b16 %v853
      %v969 = vunpack.c.l.b16 %v854
      %v970 = vunpack.c.h.b16 %v854
      %v971 = vunpack.c.l.b16 %v855
      %v972 = vunpack.c.h.b16 %v855
      %v973 = vunpack.c.l.b16 %v856
      %v974 = vunpack.c.h.b16 %v856
      %v975 = vunpack.c.l.b16 %v857
      %v976 = vunpack.c.h.b16 %v857
      %v977 = vunpack.c.l.b16 %v858
      %v978 = vunpack.c.h.b16 %v858
      %v979 = vunpack.c.l.b16 %v859
      %v980 = vunpack.c.h.b16 %v859
      %v981 = vpack.c.b16 %v919, %v917
      %v982 = vpack.c.b16 %v920, %v918
      %v983 = vpack.c.b16 %v923, %v921
      %v984 = vpack.c.b16 %v924, %v922
      %v985 = vpack.c.b16 %v927, %v925
      %v986 = vpack.c.b16 %v928, %v926
      %v987 = vpack.c.b16 %v931, %v929
      %v988 = vpack.c.b16 %v932, %v930
      %v989 = vpack.c.b16 %v935, %v933
      %v990 = vpack.c.b16 %v936, %v934
      %v991 = vpack.c.b16 %v939, %v937
      %v992 = vpack.c.b16 %v940, %v938
      %v993 = vpack.c.b16 %v943, %v941
      %v994 = vpack.c.b16 %v944, %v942
      %v995 = vpack.c.b16 %v947, %v945
      %v996 = vpack.c.b16 %v948, %v946
      %v997 = vpack.c.b16 %v951, %v949
      %v998 = vpack.c.b16 %v952, %v950
      %v999 = vpack.c.b16 %v955, %v953
      %v1000 = vpack.c.b16 %v956, %v954
      %v1001 = vpack.c.b16 %v959, %v957
      %v1002 = vpack.c.b16 %v960, %v958
      %v1003 = vpack.c.b16 %v963, %v961
      %v1004 = vpack.c.b16 %v964, %v962
      %v1005 = vpack.c.b16 %v967, %v965
      %v1006 = vpack.c.b16 %v968, %v966
      %v1007 = vpack.c.b16 %v971, %v969
      %v1008 = vpack.c.b16 %v972, %v970
      %v1009 = vpack.c.b16 %v975, %v973
      %v1010 = vpack.c.b16 %v976, %v974
      %v1011 = vpack.c.b16 %v979, %v977
      %v1012 = vpack.c.b16 %v980, %v978
      %1045 = vmatprep.subr.bf16.mxu0 %v982
      %1046 = vmatpush1.bf16.msra.mxu0 %v981
      %1047 = vmatprep.subr.bf16.mxu0 %v984
      %1048 = vmatpush1.bf16.msra.mxu0 %v983
      %1049 = vmatprep.subr.bf16.mxu0 %v986
      %1050 = vmatpush1.bf16.msra.mxu0 %v985
      %1051 = vmatprep.subr.bf16.mxu0 %v988
      %1052 = vmatpush1.bf16.msra.mxu0 %v987
      %1053 = vmatprep.subr.bf16.mxu0 %v990
      %1054 = vmatpush1.bf16.msra.mxu0 %v989
      %1055 = vmatprep.subr.bf16.mxu0 %v992
      %1056 = vmatpush1.bf16.msra.mxu0 %v991
      %1057 = vmatprep.subr.bf16.mxu0 %v994
      %1058 = vmatpush1.bf16.msra.mxu0 %v993
      %1059 = vmatprep.subr.bf16.mxu0 %v996
      %1060 = vmatpush1.bf16.msra.mxu0 %v995
      %1061 = vmatprep.subr.bf16.mxu0 %v998
      %1062 = vmatpush1.bf16.msra.mxu0 %v997
      %1063 = vmatprep.subr.bf16.mxu0 %v1000
      %1064 = vmatpush1.bf16.msra.mxu0 %v999
      %1065 = vmatprep.subr.bf16.mxu0 %v1002
      %1066 = vmatpush1.bf16.msra.mxu0 %v1001
      %1067 = vmatprep.subr.bf16.mxu0 %v1004
      %1068 = vmatpush1.bf16.msra.mxu0 %v1003
      %1069 = vmatprep.subr.bf16.mxu0 %v1006
      %1070 = vmatpush1.bf16.msra.mxu0 %v1005
      %1071 = vmatprep.subr.bf16.mxu0 %v1008
      %1072 = vmatpush1.bf16.msra.mxu0 %v1007
      %1073 = vmatprep.subr.bf16.mxu0 %v1010
      %1074 = vmatpush1.bf16.msra.mxu0 %v1009
      %1075 = vmatprep.subr.bf16.mxu0 %v1012
      %1076 = vmatpush1.bf16.msra.mxu0 %v1011
      %1077 = vmatprep.mubr.bf16.mxu0 %v882
      %1078 = vmatmul.mubr.bf16.gmra.mrb[0].mxu0 %v875
      %v1079 = vpop.f32.mrb[0].mxu0
      %v1080 = vadd.f32 0.0, %v1079
      %v1081 = vpop.f32.mrb[0].mxu0
      %v1082 = vadd.f32 0.0, %v1081
      %v1083 = vpop.f32.mrb[0].mxu0
      %v1084 = vpop.f32.mrb[0].mxu0
      %1085 = vdwg.mxu0
      %v1086 = vadd.f32 %v785, %v1080
      %v1087 = vadd.f32 %v787, %v1082
      %s1088 = scalar_lea.vmem %s2, 768
      %v1089 = vld [vmem:[%s1088] sm:$0xff]
      %v1090 = vld [vmem:[%s1088 + $0x8] sm:$0xff]
      %v1091 = vld [vmem:[%s1088 + $0x10] sm:$0xff]
      %v1092 = vld [vmem:[%s1088 + $0x18] sm:$0xff]
      %v1093 = vld [vmem:[%s1088 + $0x20] sm:$0xff]
      %v1094 = vld [vmem:[%s1088 + $0x28] sm:$0xff]
      %v1095 = vld [vmem:[%s1088 + $0x30] sm:$0xff]
      %v1096 = vld [vmem:[%s1088 + $0x38] sm:$0xff]
      %v1097 = vld [vmem:[%s1088 + $0x40] sm:$0xff]
      %v1098 = vld [vmem:[%s1088 + $0x48] sm:$0xff]
      %v1099 = vld [vmem:[%s1088 + $0x50] sm:$0xff]
      %v1100 = vld [vmem:[%s1088 + $0x58] sm:$0xff]
      %v1101 = vld [vmem:[%s1088 + $0x60] sm:$0xff]
      %v1102 = vld [vmem:[%s1088 + $0x68] sm:$0xff]
      %v1103 = vld [vmem:[%s1088 + $0x70] sm:$0xff]
      %v1104 = vld [vmem:[%s1088 + $0x78] sm:$0xff]
      %v1105 = vld [vmem:[%s1088 + $0x80] sm:$0xff]
      %v1106 = vld [vmem:[%s1088 + $0x88] sm:$0xff]
      %v1107 = vld [vmem:[%s1088 + $0x90] sm:$0xff]
      %v1108 = vld [vmem:[%s1088 + $0x98] sm:$0xff]
      %v1109 = vld [vmem:[%s1088 + $0xa0] sm:$0xff]
      %v1110 = vld [vmem:[%s1088 + $0xa8] sm:$0xff]
      %v1111 = vld [vmem:[%s1088 + $0xb0] sm:$0xff]
      %v1112 = vld [vmem:[%s1088 + $0xb8] sm:$0xff]
      %v1113 = vld [vmem:[%s1088 + $0xc0] sm:$0xff]
      %v1114 = vld [vmem:[%s1088 + $0xc8] sm:$0xff]
      %v1115 = vld [vmem:[%s1088 + $0xd0] sm:$0xff]
      %v1116 = vld [vmem:[%s1088 + $0xd8] sm:$0xff]
      %v1117 = vld [vmem:[%s1088 + $0xe0] sm:$0xff]
      %v1118 = vld [vmem:[%s1088 + $0xe8] sm:$0xff]
      %v1119 = vld [vmem:[%s1088 + $0xf0] sm:$0xff]
      %v1120 = vld [vmem:[%s1088 + $0xf8] sm:$0xff]
      %v1121 = vcombine.low %v817, %v826
      %v1123 = vunpack.c.l.s4 1966171168
      %v1124 = vunpack.c.0.s8 %v1123
      %v1125 = vlaneseq
      %v1126 = vshrl.u32 %v1125, 7
      %v1127 = vsub.s32 %v1124, %v1126
      %v1128 = vrot.slane %v1121, %v1127
      %v1129 = vcombine.high %v1128, %v1128
      %v1131 = vunpack.c.l.s4 1966171168
      %v1132 = vunpack.c.0.s8 %v1131
      %v1133 = vlaneseq
      %v1134 = vshrl.u32 %v1133, 7
      %v1135 = vsub.s32 %v1132, %v1134
      %v1136 = vrot.slane %v1128, %v1135
      %v1138 = vunpack.c.l.s4 1966171168
      %v1139 = vunpack.c.0.s8 %v1138
      %v1140 = vlaneseq
      %v1141 = vshrl.u32 %v1140, 7
      %v1142 = vsub.s32 %v1139, %v1141
      %v1143 = vrot.slane %v1129, %v1142
      %v1178 = vunpack.c.l.b16 %v1089
      %v1179 = vunpack.c.h.b16 %v1089
      %v1180 = vunpack.c.l.b16 %v1090
      %v1181 = vunpack.c.h.b16 %v1090
      %v1182 = vunpack.c.l.b16 %v1091
      %v1183 = vunpack.c.h.b16 %v1091
      %v1184 = vunpack.c.l.b16 %v1092
      %v1185 = vunpack.c.h.b16 %v1092
      %v1186 = vunpack.c.l.b16 %v1093
      %v1187 = vunpack.c.h.b16 %v1093
      %v1188 = vunpack.c.l.b16 %v1094
      %v1189 = vunpack.c.h.b16 %v1094
      %v1190 = vunpack.c.l.b16 %v1095
      %v1191 = vunpack.c.h.b16 %v1095
      %v1192 = vunpack.c.l.b16 %v1096
      %v1193 = vunpack.c.h.b16 %v1096
      %v1194 = vunpack.c.l.b16 %v1097
      %v1195 = vunpack.c.h.b16 %v1097
      %v1196 = vunpack.c.l.b16 %v1098
      %v1197 = vunpack.c.h.b16 %v1098
      %v1198 = vunpack.c.l.b16 %v1099
      %v1199 = vunpack.c.h.b16 %v1099
      %v1200 = vunpack.c.l.b16 %v1100
      %v1201 = vunpack.c.h.b16 %v1100
      %v1202 = vunpack.c.l.b16 %v1101
      %v1203 = vunpack.c.h.b16 %v1101
      %v1204 = vunpack.c.l.b16 %v1102
      %v1205 = vunpack.c.h.b16 %v1102
      %v1206 = vunpack.c.l.b16 %v1103
      %v1207 = vunpack.c.h.b16 %v1103
      %v1208 = vunpack.c.l.b16 %v1104
      %v1209 = vunpack.c.h.b16 %v1104
      %v1210 = vunpack.c.l.b16 %v1105
      %v1211 = vunpack.c.h.b16 %v1105
      %v1212 = vunpack.c.l.b16 %v1106
      %v1213 = vunpack.c.h.b16 %v1106
      %v1214 = vunpack.c.l.b16 %v1107
      %v1215 = vunpack.c.h.b16 %v1107
      %v1216 = vunpack.c.l.b16 %v1108
      %v1217 = vunpack.c.h.b16 %v1108
      %v1218 = vunpack.c.l.b16 %v1109
      %v1219 = vunpack.c.h.b16 %v1109
      %v1220 = vunpack.c.l.b16 %v1110
      %v1221 = vunpack.c.h.b16 %v1110
      %v1222 = vunpack.c.l.b16 %v1111
      %v1223 = vunpack.c.h.b16 %v1111
      %v1224 = vunpack.c.l.b16 %v1112
      %v1225 = vunpack.c.h.b16 %v1112
      %v1226 = vunpack.c.l.b16 %v1113
      %v1227 = vunpack.c.h.b16 %v1113
      %v1228 = vunpack.c.l.b16 %v1114
      %v1229 = vunpack.c.h.b16 %v1114
      %v1230 = vunpack.c.l.b16 %v1115
      %v1231 = vunpack.c.h.b16 %v1115
      %v1232 = vunpack.c.l.b16 %v1116
      %v1233 = vunpack.c.h.b16 %v1116
      %v1234 = vunpack.c.l.b16 %v1117
      %v1235 = vunpack.c.h.b16 %v1117
      %v1236 = vunpack.c.l.b16 %v1118
      %v1237 = vunpack.c.h.b16 %v1118
      %v1238 = vunpack.c.l.b16 %v1119
      %v1239 = vunpack.c.h.b16 %v1119
      %v1240 = vunpack.c.l.b16 %v1120
      %v1241 = vunpack.c.h.b16 %v1120
      %v1242 = vpack.c.b16 %v1180, %v1178
      %v1243 = vpack.c.b16 %v1181, %v1179
      %v1244 = vpack.c.b16 %v1184, %v1182
      %v1245 = vpack.c.b16 %v1185, %v1183
      %v1246 = vpack.c.b16 %v1188, %v1186
      %v1247 = vpack.c.b16 %v1189, %v1187
      %v1248 = vpack.c.b16 %v1192, %v1190
      %v1249 = vpack.c.b16 %v1193, %v1191
      %v1250 = vpack.c.b16 %v1196, %v1194
      %v1251 = vpack.c.b16 %v1197, %v1195
      %v1252 = vpack.c.b16 %v1200, %v1198
      %v1253 = vpack.c.b16 %v1201, %v1199
      %v1254 = vpack.c.b16 %v1204, %v1202
      %v1255 = vpack.c.b16 %v1205, %v1203
      %v1256 = vpack.c.b16 %v1208, %v1206
      %v1257 = vpack.c.b16 %v1209, %v1207
      %v1258 = vpack.c.b16 %v1212, %v1210
      %v1259 = vpack.c.b16 %v1213, %v1211
      %v1260 = vpack.c.b16 %v1216, %v1214
      %v1261 = vpack.c.b16 %v1217, %v1215
      %v1262 = vpack.c.b16 %v1220, %v1218
      %v1263 = vpack.c.b16 %v1221, %v1219
      %v1264 = vpack.c.b16 %v1224, %v1222
      %v1265 = vpack.c.b16 %v1225, %v1223
      %v1266 = vpack.c.b16 %v1228, %v1226
      %v1267 = vpack.c.b16 %v1229, %v1227
      %v1268 = vpack.c.b16 %v1232, %v1230
      %v1269 = vpack.c.b16 %v1233, %v1231
      %v1270 = vpack.c.b16 %v1236, %v1234
      %v1271 = vpack.c.b16 %v1237, %v1235
      %v1272 = vpack.c.b16 %v1240, %v1238
      %v1273 = vpack.c.b16 %v1241, %v1239
      %1306 = vmatprep.subr.bf16.mxu0 %v1243
      %1307 = vmatpush1.bf16.msra.mxu0 %v1242
      %1308 = vmatprep.subr.bf16.mxu0 %v1245
      %1309 = vmatpush1.bf16.msra.mxu0 %v1244
      %1310 = vmatprep.subr.bf16.mxu0 %v1247
      %1311 = vmatpush1.bf16.msra.mxu0 %v1246
      %1312 = vmatprep.subr.bf16.mxu0 %v1249
      %1313 = vmatpush1.bf16.msra.mxu0 %v1248
      %1314 = vmatprep.subr.bf16.mxu0 %v1251
      %1315 = vmatpush1.bf16.msra.mxu0 %v1250
      %1316 = vmatprep.subr.bf16.mxu0 %v1253
      %1317 = vmatpush1.bf16.msra.mxu0 %v1252
      %1318 = vmatprep.subr.bf16.mxu0 %v1255
      %1319 = vmatpush1.bf16.msra.mxu0 %v1254
      %1320 = vmatprep.subr.bf16.mxu0 %v1257
      %1321 = vmatpush1.bf16.msra.mxu0 %v1256
      %1322 = vmatprep.subr.bf16.mxu0 %v1259
      %1323 = vmatpush1.bf16.msra.mxu0 %v1258
      %1324 = vmatprep.subr.bf16.mxu0 %v1261
      %1325 = vmatpush1.bf16.msra.mxu0 %v1260
      %1326 = vmatprep.subr.bf16.mxu0 %v1263
      %1327 = vmatpush1.bf16.msra.mxu0 %v1262
      %1328 = vmatprep.subr.bf16.mxu0 %v1265
      %1329 = vmatpush1.bf16.msra.mxu0 %v1264
      %1330 = vmatprep.subr.bf16.mxu0 %v1267
      %1331 = vmatpush1.bf16.msra.mxu0 %v1266
      %1332 = vmatprep.subr.bf16.mxu0 %v1269
      %1333 = vmatpush1.bf16.msra.mxu0 %v1268
      %1334 = vmatprep.subr.bf16.mxu0 %v1271
      %1335 = vmatpush1.bf16.msra.mxu0 %v1270
      %1336 = vmatprep.subr.bf16.mxu0 %v1273
      %1337 = vmatpush1.bf16.msra.mxu0 %v1272
      %1338 = vmatprep.mubr.bf16.mxu0 %v1143
      %1339 = vmatmul.mubr.bf16.gmra.mrb[0].mxu0 %v1136
      %v1340 = vpop.f32.mrb[0].mxu0
      %v1341 = vadd.f32 0.0, %v1340
      %v1342 = vpop.f32.mrb[0].mxu0
      %v1343 = vadd.f32 0.0, %v1342
      %v1344 = vpop.f32.mrb[0].mxu0
      %v1345 = vpop.f32.mrb[0].mxu0
      %1346 = vdwg.mxu0
      %v1347 = vadd.f32 %v1086, %v1341
      %v1348 = vadd.f32 %v1087, %v1343
      %v1351 = vunpack.c.l.s4 1966171168
      %v1352 = vunpack.c.0.s8 %v1351
      %v1353 = vlaneseq
      %v1354 = vshrl.u32 %v1353, 7
      %v1355 = vsub.s32 %v1352, %v1354
      %v1356 = vrot.slane %v220, %v1355
      %v1357 = vcombine.high %v1356, %v1356
      %v1359 = vshrl.u32 %v1356, 16
      %v1361 = vrot.slane %v1359, 7
      %v1362 = vrot.slane %v1361, 1
      %v1364 = vshll.u32 %v1357, 16
      %v1366 = vsel %vm255, %v1362, %v1364
      %s1367 = scalar_lea.vmem %s2, 1024
      %v1368 = vld [vmem:[%s1367] sm:$0xff]
      %v1369 = vld [vmem:[%s1367 + $0x8] sm:$0xff]
      %v1370 = vld [vmem:[%s1367 + $0x10] sm:$0xff]
      %v1371 = vld [vmem:[%s1367 + $0x18] sm:$0xff]
      %v1372 = vld [vmem:[%s1367 + $0x20] sm:$0xff]
      %v1373 = vld [vmem:[%s1367 + $0x28] sm:$0xff]
      %v1374 = vld [vmem:[%s1367 + $0x30] sm:$0xff]
      %v1375 = vld [vmem:[%s1367 + $0x38] sm:$0xff]
      %v1376 = vld [vmem:[%s1367 + $0x40] sm:$0xff]
      %v1377 = vld [vmem:[%s1367 + $0x48] sm:$0xff]
      %v1378 = vld [vmem:[%s1367 + $0x50] sm:$0xff]
      %v1379 = vld [vmem:[%s1367 + $0x58] sm:$0xff]
      %v1380 = vld [vmem:[%s1367 + $0x60] sm:$0xff]
      %v1381 = vld [vmem:[%s1367 + $0x68] sm:$0xff]
      %v1382 = vld [vmem:[%s1367 + $0x70] sm:$0xff]
      %v1383 = vld [vmem:[%s1367 + $0x78] sm:$0xff]
      %v1384 = vld [vmem:[%s1367 + $0x80] sm:$0xff]
      %v1385 = vld [vmem:[%s1367 + $0x88] sm:$0xff]
      %v1386 = vld [vmem:[%s1367 + $0x90] sm:$0xff]
      %v1387 = vld [vmem:[%s1367 + $0x98] sm:$0xff]
      %v1388 = vld [vmem:[%s1367 + $0xa0] sm:$0xff]
      %v1389 = vld [vmem:[%s1367 + $0xa8] sm:$0xff]
      %v1390 = vld [vmem:[%s1367 + $0xb0] sm:$0xff]
      %v1391 = vld [vmem:[%s1367 + $0xb8] sm:$0xff]
      %v1392 = vld [vmem:[%s1367 + $0xc0] sm:$0xff]
      %v1393 = vld [vmem:[%s1367 + $0xc8] sm:$0xff]
      %v1394 = vld [vmem:[%s1367 + $0xd0] sm:$0xff]
      %v1395 = vld [vmem:[%s1367 + $0xd8] sm:$0xff]
      %v1396 = vld [vmem:[%s1367 + $0xe0] sm:$0xff]
      %v1397 = vld [vmem:[%s1367 + $0xe8] sm:$0xff]
      %v1398 = vld [vmem:[%s1367 + $0xf0] sm:$0xff]
      %v1399 = vld [vmem:[%s1367 + $0xf8] sm:$0xff]
      %v1400 = vcombine.low %v238, %v1356
      %v1402 = vunpack.c.l.s4 1966171168
      %v1403 = vunpack.c.0.s8 %v1402
      %v1404 = vlaneseq
      %v1405 = vshrl.u32 %v1404, 7
      %v1406 = vsub.s32 %v1403, %v1405
      %v1407 = vrot.slane %v1400, %v1406
      %v1408 = vcombine.high %v1407, %v1407
      %v1410 = vunpack.c.l.s4 1966171168
      %v1411 = vunpack.c.0.s8 %v1410
      %v1412 = vlaneseq
      %v1413 = vshrl.u32 %v1412, 7
      %v1414 = vsub.s32 %v1411, %v1413
      %v1415 = vrot.slane %v1407, %v1414
      %v1417 = vunpack.c.l.s4 1966171168
      %v1418 = vunpack.c.0.s8 %v1417
      %v1419 = vlaneseq
      %v1420 = vshrl.u32 %v1419, 7
      %v1421 = vsub.s32 %v1418, %v1420
      %v1422 = vrot.slane %v1408, %v1421
      %v1457 = vunpack.c.l.b16 %v1368
      %v1458 = vunpack.c.h.b16 %v1368
      %v1459 = vunpack.c.l.b16 %v1369
      %v1460 = vunpack.c.h.b16 %v1369
      %v1461 = vunpack.c.l.b16 %v1370
      %v1462 = vunpack.c.h.b16 %v1370
      %v1463 = vunpack.c.l.b16 %v1371
      %v1464 = vunpack.c.h.b16 %v1371
      %v1465 = vunpack.c.l.b16 %v1372
      %v1466 = vunpack.c.h.b16 %v1372
      %v1467 = vunpack.c.l.b16 %v1373
      %v1468 = vunpack.c.h.b16 %v1373
      %v1469 = vunpack.c.l.b16 %v1374
      %v1470 = vunpack.c.h.b16 %v1374
      %v1471 = vunpack.c.l.b16 %v1375
      %v1472 = vunpack.c.h.b16 %v1375
      %v1473 = vunpack.c.l.b16 %v1376
      %v1474 = vunpack.c.h.b16 %v1376
      %v1475 = vunpack.c.l.b16 %v1377
      %v1476 = vunpack.c.h.b16 %v1377
      %v1477 = vunpack.c.l.b16 %v1378
      %v1478 = vunpack.c.h.b16 %v1378
      %v1479 = vunpack.c.l.b16 %v1379
      %v1480 = vunpack.c.h.b16 %v1379
      %v1481 = vunpack.c.l.b16 %v1380
      %v1482 = vunpack.c.h.b16 %v1380
      %v1483 = vunpack.c.l.b16 %v1381
      %v1484 = vunpack.c.h.b16 %v1381
      %v1485 = vunpack.c.l.b16 %v1382
      %v1486 = vunpack.c.h.b16 %v1382
      %v1487 = vunpack.c.l.b16 %v1383
      %v1488 = vunpack.c.h.b16 %v1383
      %v1489 = vunpack.c.l.b16 %v1384
      %v1490 = vunpack.c.h.b16 %v1384
      %v1491 = vunpack.c.l.b16 %v1385
      %v1492 = vunpack.c.h.b16 %v1385
      %v1493 = vunpack.c.l.b16 %v1386
      %v1494 = vunpack.c.h.b16 %v1386
      %v1495 = vunpack.c.l.b16 %v1387
      %v1496 = vunpack.c.h.b16 %v1387
      %v1497 = vunpack.c.l.b16 %v1388
      %v1498 = vunpack.c.h.b16 %v1388
      %v1499 = vunpack.c.l.b16 %v1389
      %v1500 = vunpack.c.h.b16 %v1389
      %v1501 = vunpack.c.l.b16 %v1390
      %v1502 = vunpack.c.h.b16 %v1390
      %v1503 = vunpack.c.l.b16 %v1391
      %v1504 = vunpack.c.h.b16 %v1391
      %v1505 = vunpack.c.l.b16 %v1392
      %v1506 = vunpack.c.h.b16 %v1392
      %v1507 = vunpack.c.l.b16 %v1393
      %v1508 = vunpack.c.h.b16 %v1393
      %v1509 = vunpack.c.l.b16 %v1394
      %v1510 = vunpack.c.h.b16 %v1394
      %v1511 = vunpack.c.l.b16 %v1395
      %v1512 = vunpack.c.h.b16 %v1395
      %v1513 = vunpack.c.l.b16 %v1396
      %v1514 = vunpack.c.h.b16 %v1396
      %v1515 = vunpack.c.l.b16 %v1397
      %v1516 = vunpack.c.h.b16 %v1397
      %v1517 = vunpack.c.l.b16 %v1398
      %v1518 = vunpack.c.h.b16 %v1398
      %v1519 = vunpack.c.l.b16 %v1399
      %v1520 = vunpack.c.h.b16 %v1399
      %v1521 = vpack.c.b16 %v1459, %v1457
      %v1522 = vpack.c.b16 %v1460, %v1458
      %v1523 = vpack.c.b16 %v1463, %v1461
      %v1524 = vpack.c.b16 %v1464, %v1462
      %v1525 = vpack.c.b16 %v1467, %v1465
      %v1526 = vpack.c.b16 %v1468, %v1466
      %v1527 = vpack.c.b16 %v1471, %v1469
      %v1528 = vpack.c.b16 %v1472, %v1470
      %v1529 = vpack.c.b16 %v1475, %v1473
      %v1530 = vpack.c.b16 %v1476, %v1474
      %v1531 = vpack.c.b16 %v1479, %v1477
      %v1532 = vpack.c.b16 %v1480, %v1478
      %v1533 = vpack.c.b16 %v1483, %v1481
      %v1534 = vpack.c.b16 %v1484, %v1482
      %v1535 = vpack.c.b16 %v1487, %v1485
      %v1536 = vpack.c.b16 %v1488, %v1486
      %v1537 = vpack.c.b16 %v1491, %v1489
      %v1538 = vpack.c.b16 %v1492, %v1490
      %v1539 = vpack.c.b16 %v1495, %v1493
      %v1540 = vpack.c.b16 %v1496, %v1494
      %v1541 = vpack.c.b16 %v1499, %v1497
      %v1542 = vpack.c.b16 %v1500, %v1498
      %v1543 = vpack.c.b16 %v1503, %v1501
      %v1544 = vpack.c.b16 %v1504, %v1502
      %v1545 = vpack.c.b16 %v1507, %v1505
      %v1546 = vpack.c.b16 %v1508, %v1506
      %v1547 = vpack.c.b16 %v1511, %v1509
      %v1548 = vpack.c.b16 %v1512, %v1510
      %v1549 = vpack.c.b16 %v1515, %v1513
      %v1550 = vpack.c.b16 %v1516, %v1514
      %v1551 = vpack.c.b16 %v1519, %v1517
      %v1552 = vpack.c.b16 %v1520, %v1518
      %1585 = vmatprep.subr.bf16.mxu0 %v1522
      %1586 = vmatpush1.bf16.msra.mxu0 %v1521
      %1587 = vmatprep.subr.bf16.mxu0 %v1524
      %1588 = vmatpush1.bf16.msra.mxu0 %v1523
      %1589 = vmatprep.subr.bf16.mxu0 %v1526
      %1590 = vmatpush1.bf16.msra.mxu0 %v1525
      %1591 = vmatprep.subr.bf16.mxu0 %v1528
      %1592 = vmatpush1.bf16.msra.mxu0 %v1527
      %1593 = vmatprep.subr.bf16.mxu0 %v1530
      %1594 = vmatpush1.bf16.msra.mxu0 %v1529
      %1595 = vmatprep.subr.bf16.mxu0 %v1532
      %1596 = vmatpush1.bf16.msra.mxu0 %v1531
      %1597 = vmatprep.subr.bf16.mxu0 %v1534
      %1598 = vmatpush1.bf16.msra.mxu0 %v1533
      %1599 = vmatprep.subr.bf16.mxu0 %v1536
      %1600 = vmatpush1.bf16.msra.mxu0 %v1535
      %1601 = vmatprep.subr.bf16.mxu0 %v1538
      %1602 = vmatpush1.bf16.msra.mxu0 %v1537
      %1603 = vmatprep.subr.bf16.mxu0 %v1540
      %1604 = vmatpush1.bf16.msra.mxu0 %v1539
      %1605 = vmatprep.subr.bf16.mxu0 %v1542
      %1606 = vmatpush1.bf16.msra.mxu0 %v1541
      %1607 = vmatprep.subr.bf16.mxu0 %v1544
      %1608 = vmatpush1.bf16.msra.mxu0 %v1543
      %1609 = vmatprep.subr.bf16.mxu0 %v1546
      %1610 = vmatpush1.bf16.msra.mxu0 %v1545
      %1611 = vmatprep.subr.bf16.mxu0 %v1548
      %1612 = vmatpush1.bf16.msra.mxu0 %v1547
      %1613 = vmatprep.subr.bf16.mxu0 %v1550
      %1614 = vmatpush1.bf16.msra.mxu0 %v1549
      %1615 = vmatprep.subr.bf16.mxu0 %v1552
      %1616 = vmatpush1.bf16.msra.mxu0 %v1551
      %1617 = vmatprep.mubr.bf16.mxu0 %v1422
      %1618 = vmatmul.mubr.bf16.gmra.mrb[0].mxu0 %v1415
      %v1619 = vpop.f32.mrb[0].mxu0
      %v1620 = vadd.f32 0.0, %v1619
      %v1621 = vpop.f32.mrb[0].mxu0
      %v1622 = vadd.f32 0.0, %v1621
      %v1623 = vpop.f32.mrb[0].mxu0
      %v1624 = vpop.f32.mrb[0].mxu0
      %1625 = vdwg.mxu0
      %v1626 = vadd.f32 %v1347, %v1620
      %v1627 = vadd.f32 %v1348, %v1622
      %s1628 = scalar_lea.vmem %s2, 1280
      %v1629 = vld [vmem:[%s1628] sm:$0xff]
      %v1630 = vld [vmem:[%s1628 + $0x8] sm:$0xff]
      %v1631 = vld [vmem:[%s1628 + $0x10] sm:$0xff]
      %v1632 = vld [vmem:[%s1628 + $0x18] sm:$0xff]
      %v1633 = vld [vmem:[%s1628 + $0x20] sm:$0xff]
      %v1634 = vld [vmem:[%s1628 + $0x28] sm:$0xff]
      %v1635 = vld [vmem:[%s1628 + $0x30] sm:$0xff]
      %v1636 = vld [vmem:[%s1628 + $0x38] sm:$0xff]
      %v1637 = vld [vmem:[%s1628 + $0x40] sm:$0xff]
      %v1638 = vld [vmem:[%s1628 + $0x48] sm:$0xff]
      %v1639 = vld [vmem:[%s1628 + $0x50] sm:$0xff]
      %v1640 = vld [vmem:[%s1628 + $0x58] sm:$0xff]
      %v1641 = vld [vmem:[%s1628 + $0x60] sm:$0xff]
      %v1642 = vld [vmem:[%s1628 + $0x68] sm:$0xff]
      %v1643 = vld [vmem:[%s1628 + $0x70] sm:$0xff]
      %v1644 = vld [vmem:[%s1628 + $0x78] sm:$0xff]
      %v1645 = vld [vmem:[%s1628 + $0x80] sm:$0xff]
      %v1646 = vld [vmem:[%s1628 + $0x88] sm:$0xff]
      %v1647 = vld [vmem:[%s1628 + $0x90] sm:$0xff]
      %v1648 = vld [vmem:[%s1628 + $0x98] sm:$0xff]
      %v1649 = vld [vmem:[%s1628 + $0xa0] sm:$0xff]
      %v1650 = vld [vmem:[%s1628 + $0xa8] sm:$0xff]
      %v1651 = vld [vmem:[%s1628 + $0xb0] sm:$0xff]
      %v1652 = vld [vmem:[%s1628 + $0xb8] sm:$0xff]
      %v1653 = vld [vmem:[%s1628 + $0xc0] sm:$0xff]
      %v1654 = vld [vmem:[%s1628 + $0xc8] sm:$0xff]
      %v1655 = vld [vmem:[%s1628 + $0xd0] sm:$0xff]
      %v1656 = vld [vmem:[%s1628 + $0xd8] sm:$0xff]
      %v1657 = vld [vmem:[%s1628 + $0xe0] sm:$0xff]
      %v1658 = vld [vmem:[%s1628 + $0xe8] sm:$0xff]
      %v1659 = vld [vmem:[%s1628 + $0xf0] sm:$0xff]
      %v1660 = vld [vmem:[%s1628 + $0xf8] sm:$0xff]
      %v1661 = vcombine.low %v273, %v1366
      %v1663 = vunpack.c.l.s4 1966171168
      %v1664 = vunpack.c.0.s8 %v1663
      %v1665 = vlaneseq
      %v1666 = vshrl.u32 %v1665, 7
      %v1667 = vsub.s32 %v1664, %v1666
      %v1668 = vrot.slane %v1661, %v1667
      %v1669 = vcombine.high %v1668, %v1668
      %v1671 = vunpack.c.l.s4 1966171168
      %v1672 = vunpack.c.0.s8 %v1671
      %v1673 = vlaneseq
      %v1674 = vshrl.u32 %v1673, 7
      %v1675 = vsub.s32 %v1672, %v1674
      %v1676 = vrot.slane %v1668, %v1675
      %v1678 = vunpack.c.l.s4 1966171168
      %v1679 = vunpack.c.0.s8 %v1678
      %v1680 = vlaneseq
      %v1681 = vshrl.u32 %v1680, 7
      %v1682 = vsub.s32 %v1679, %v1681
      %v1683 = vrot.slane %v1669, %v1682
      %v1718 = vunpack.c.l.b16 %v1629
      %v1719 = vunpack.c.h.b16 %v1629
      %v1720 = vunpack.c.l.b16 %v1630
      %v1721 = vunpack.c.h.b16 %v1630
      %v1722 = vunpack.c.l.b16 %v1631
      %v1723 = vunpack.c.h.b16 %v1631
      %v1724 = vunpack.c.l.b16 %v1632
      %v1725 = vunpack.c.h.b16 %v1632
      %v1726 = vunpack.c.l.b16 %v1633
      %v1727 = vunpack.c.h.b16 %v1633
      %v1728 = vunpack.c.l.b16 %v1634
      %v1729 = vunpack.c.h.b16 %v1634
      %v1730 = vunpack.c.l.b16 %v1635
      %v1731 = vunpack.c.h.b16 %v1635
      %v1732 = vunpack.c.l.b16 %v1636
      %v1733 = vunpack.c.h.b16 %v1636
      %v1734 = vunpack.c.l.b16 %v1637
      %v1735 = vunpack.c.h.b16 %v1637
      %v1736 = vunpack.c.l.b16 %v1638
      %v1737 = vunpack.c.h.b16 %v1638
      %v1738 = vunpack.c.l.b16 %v1639
      %v1739 = vunpack.c.h.b16 %v1639
      %v1740 = vunpack.c.l.b16 %v1640
      %v1741 = vunpack.c.h.b16 %v1640
      %v1742 = vunpack.c.l.b16 %v1641
      %v1743 = vunpack.c.h.b16 %v1641
      %v1744 = vunpack.c.l.b16 %v1642
      %v1745 = vunpack.c.h.b16 %v1642
      %v1746 = vunpack.c.l.b16 %v1643
      %v1747 = vunpack.c.h.b16 %v1643
      %v1748 = vunpack.c.l.b16 %v1644
      %v1749 = vunpack.c.h.b16 %v1644
      %v1750 = vunpack.c.l.b16 %v1645
      %v1751 = vunpack.c.h.b16 %v1645
      %v1752 = vunpack.c.l.b16 %v1646
      %v1753 = vunpack.c.h.b16 %v1646
      %v1754 = vunpack.c.l.b16 %v1647
      %v1755 = vunpack.c.h.b16 %v1647
      %v1756 = vunpack.c.l.b16 %v1648
      %v1757 = vunpack.c.h.b16 %v1648
      %v1758 = vunpack.c.l.b16 %v1649
      %v1759 = vunpack.c.h.b16 %v1649
      %v1760 = vunpack.c.l.b16 %v1650
      %v1761 = vunpack.c.h.b16 %v1650
      %v1762 = vunpack.c.l.b16 %v1651
      %v1763 = vunpack.c.h.b16 %v1651
      %v1764 = vunpack.c.l.b16 %v1652
      %v1765 = vunpack.c.h.b16 %v1652
      %v1766 = vunpack.c.l.b16 %v1653
      %v1767 = vunpack.c.h.b16 %v1653
      %v1768 = vunpack.c.l.b16 %v1654
      %v1769 = vunpack.c.h.b16 %v1654
      %v1770 = vunpack.c.l.b16 %v1655
      %v1771 = vunpack.c.h.b16 %v1655
      %v1772 = vunpack.c.l.b16 %v1656
      %v1773 = vunpack.c.h.b16 %v1656
      %v1774 = vunpack.c.l.b16 %v1657
      %v1775 = vunpack.c.h.b16 %v1657
      %v1776 = vunpack.c.l.b16 %v1658
      %v1777 = vunpack.c.h.b16 %v1658
      %v1778 = vunpack.c.l.b16 %v1659
      %v1779 = vunpack.c.h.b16 %v1659
      %v1780 = vunpack.c.l.b16 %v1660
      %v1781 = vunpack.c.h.b16 %v1660
      %v1782 = vpack.c.b16 %v1720, %v1718
      %v1783 = vpack.c.b16 %v1721, %v1719
      %v1784 = vpack.c.b16 %v1724, %v1722
      %v1785 = vpack.c.b16 %v1725, %v1723
      %v1786 = vpack.c.b16 %v1728, %v1726
      %v1787 = vpack.c.b16 %v1729, %v1727
      %v1788 = vpack.c.b16 %v1732, %v1730
      %v1789 = vpack.c.b16 %v1733, %v1731
      %v1790 = vpack.c.b16 %v1736, %v1734
      %v1791 = vpack.c.b16 %v1737, %v1735
      %v1792 = vpack.c.b16 %v1740, %v1738
      %v1793 = vpack.c.b16 %v1741, %v1739
      %v1794 = vpack.c.b16 %v1744, %v1742
      %v1795 = vpack.c.b16 %v1745, %v1743
      %v1796 = vpack.c.b16 %v1748, %v1746
      %v1797 = vpack.c.b16 %v1749, %v1747
      %v1798 = vpack.c.b16 %v1752, %v1750
      %v1799 = vpack.c.b16 %v1753, %v1751
      %v1800 = vpack.c.b16 %v1756, %v1754
      %v1801 = vpack.c.b16 %v1757, %v1755
      %v1802 = vpack.c.b16 %v1760, %v1758
      %v1803 = vpack.c.b16 %v1761, %v1759
      %v1804 = vpack.c.b16 %v1764, %v1762
      %v1805 = vpack.c.b16 %v1765, %v1763
      %v1806 = vpack.c.b16 %v1768, %v1766
      %v1807 = vpack.c.b16 %v1769, %v1767
      %v1808 = vpack.c.b16 %v1772, %v1770
      %v1809 = vpack.c.b16 %v1773, %v1771
      %v1810 = vpack.c.b16 %v1776, %v1774
      %v1811 = vpack.c.b16 %v1777, %v1775
      %v1812 = vpack.c.b16 %v1780, %v1778
      %v1813 = vpack.c.b16 %v1781, %v1779
      %1846 = vmatprep.subr.bf16.mxu0 %v1783
      %1847 = vmatpush1.bf16.msra.mxu0 %v1782
      %1848 = vmatprep.subr.bf16.mxu0 %v1785
      %1849 = vmatpush1.bf16.msra.mxu0 %v1784
      %1850 = vmatprep.subr.bf16.mxu0 %v1787
      %1851 = vmatpush1.bf16.msra.mxu0 %v1786
      %1852 = vmatprep.subr.bf16.mxu0 %v1789
      %1853 = vmatpush1.bf16.msra.mxu0 %v1788
      %1854 = vmatprep.subr.bf16.mxu0 %v1791
      %1855 = vmatpush1.bf16.msra.mxu0 %v1790
      %1856 = vmatprep.subr.bf16.mxu0 %v1793
      %1857 = vmatpush1.bf16.msra.mxu0 %v1792
      %1858 = vmatprep.subr.bf16.mxu0 %v1795
      %1859 = vmatpush1.bf16.msra.mxu0 %v1794
      %1860 = vmatprep.subr.bf16.mxu0 %v1797
      %1861 = vmatpush1.bf16.msra.mxu0 %v1796
      %1862 = vmatprep.subr.bf16.mxu0 %v1799
      %1863 = vmatpush1.bf16.msra.mxu0 %v1798
      %1864 = vmatprep.subr.bf16.mxu0 %v1801
      %1865 = vmatpush1.bf16.msra.mxu0 %v1800
      %1866 = vmatprep.subr.bf16.mxu0 %v1803
      %1867 = vmatpush1.bf16.msra.mxu0 %v1802
      %1868 = vmatprep.subr.bf16.mxu0 %v1805
      %1869 = vmatpush1.bf16.msra.mxu0 %v1804
      %1870 = vmatprep.subr.bf16.mxu0 %v1807
      %1871 = vmatpush1.bf16.msra.mxu0 %v1806
      %1872 = vmatprep.subr.bf16.mxu0 %v1809
      %1873 = vmatpush1.bf16.msra.mxu0 %v1808
      %1874 = vmatprep.subr.bf16.mxu0 %v1811
      %1875 = vmatpush1.bf16.msra.mxu0 %v1810
      %1876 = vmatprep.subr.bf16.mxu0 %v1813
      %1877 = vmatpush1.bf16.msra.mxu0 %v1812
      %1878 = vmatprep.mubr.bf16.mxu0 %v1683
      %1879 = vmatmul.mubr.bf16.gmra.mrb[0].mxu0 %v1676
      %v1880 = vpop.f32.mrb[0].mxu0
      %v1881 = vadd.f32 0.0, %v1880
      %v1882 = vpop.f32.mrb[0].mxu0
      %v1883 = vadd.f32 0.0, %v1882
      %v1884 = vpop.f32.mrb[0].mxu0
      %v1885 = vpop.f32.mrb[0].mxu0
      %1886 = vdwg.mxu0
      %v1887 = vadd.f32 %v1626, %v1881
      %v1888 = vadd.f32 %v1627, %v1883
      %v1889 = vld [vmem:[%s3] sm:$0x3]
      %v1891 = vlaneseq
      %v1892 = vshrl.u32 %v1891, 7
      %v1893 = vsub.s32 0, %v1892
      %v1894 = vrot.slane %v1889, %v1893
      %v1895 = vlaneseq
      %v1896 = vshrl.u32 %v1895, 7
      %v1897 = vsub.s32 1, %v1896
      %v1898 = vrot.slane %v1889, %v1897
      %v1901 = vadd.f32 %v1887, %v1894
      %v1902 = vadd.f32 %v1888, %v1898
      %v1903 = vmul.f32 %v1901, 0.1
      %v1904 = vmul.f32 %v1902, 0.1
      %v1905 = vmax.f32 %v1901, %v1903
      %v1906 = vmax.f32 %v1902, %v1904
      %v1909 = vcombine.low %v1905, %v1906
      %1911 = vst [vmem:[%s217] sm:$0xff] %v1909
      %p1912 = scmp.lt.s32.totalorder %s15, 1
      %s1913 = scalar_select %p1912, %s15, 1
      %s1914 = smul.addr %s1913, 2
      %s1915 = smul.addr %s1914, 4
      %s1916 = scalar_lea.vmem %s4, %s1915
      // Predicated region
      $region37: #{shared_conv_base_forward.5} parent=35 // pred_check
        %p1917 = pneg %p127
      $region38: #{shared_conv_base_forward.5} parent=35 // pred_check_branch
        %1919 = sbr.rel (%p1917) target = $region40
      $region39: #{shared_conv_base_forward.5} parent=35 // pred_region
        _
      $region40: #{shared_conv_base_forward.5} parent=35 // pred_fallthru
        _
    $region36: #{shared_conv_base_forward.5} parent=5 // pred_fallthru
      _
    %p1920 = scmp.le.s32.totalorder 2, %s10
    // Predicated region
    $region41: #{shared_conv_base_forward.5} parent=5 // pred_check
      %p1921 = pneg %p1920
    $region42: #{shared_conv_base_forward.5} parent=5 // pred_check_branch
      %1923 = sbr.rel (%p1921) target = $region44
    $region43: #{shared_conv_base_forward.5} parent=5 // pred_region
      %s1924 = ssub.s32 %s10, 2
      // Predicated region
      $region45: #{shared_conv_base_forward.5} parent=43 // pred_check
        %p1925 = pneg %p133
      $region46: #{shared_conv_base_forward.5} parent=43 // pred_check_branch
        %1927 = sbr.rel (%p1925) target = $region48
      $region47: #{shared_conv_base_forward.5} parent=43 // pred_region
        %p1928 = scmp.lt.s32.totalorder %s16, 1
        %s1929 = scalar_select %p1928, %s16, 1
        %s1930 = smul.addr %s1929, 2
        %s1931 = smul.addr %s1930, 4
        %s1932 = scalar_lea.vmem %s4, %s1931
      $region48: #{shared_conv_base_forward.5} parent=43 // pred_fallthru
        _
    $region44: #{shared_conv_base_forward.5} parent=5 // pred_fallthru
      _
  $region6: #{shared_conv_base_forward.5} parent=0 // loop_footer
    %s14 = sadd.s32 1, %s10
  $region7: #{shared_conv_base_forward.5} parent=0 // loop_footer_branch
    %9 = sbr.rel target = $region3
  $region8: #{shared_conv_base_forward.5} parent=0 // loop_exit
    _

</llo_original>
